<compile_context>
chip_gen: v7x
topology: tpu7x:2x2x1
jax: 0.10.0
libtpu: 0.0.40
codegen_flags: <defaults>
</compile_context>

<pallas_src>
import functools

import jax
import jax.numpy as jnp
from jax import lax
from jax.experimental import pallas as pl
from jax.experimental.pallas import tpu as pltpu

# ----------------------- small synthetic configuration -----------------------
CLASSES = ("__background__", "a", "b", "c")
N_CLASSES = len(CLASSES)          # 4
CLASS_AGNOSTIC = False
POOLING_SIZE = 7                  # cfg.POOLING_SIZE
FEAT_STRIDE = 16                  # 1/16 spatial scale
DOUT_BASE = 64                    # dout_base_model (real model: 1024)
HEAD_DIM = 128                    # _head_to_tail output dim (real model: 2048)
NUM_ANCHORS = 3
NUM_ROIS = 8                      # proposals kept per image (real: 300/2000)
IMG_H = IMG_W = 64
BATCH = 2

HEAD_PAD = 128                    # lane-dense padded output width for fused heads
RPN_CPAD = 128                    # lane-dense padded RPN hidden channels
ROI_CPAD = 128                    # lane-dense padded RoIAlign channels
VMEM_LIMIT = 48 * 1024 * 1024     # < v7x physical 64 MiB, plenty on v5e/v6e


def _round_up(x, m):
    return ((x + m - 1) // m) * m


def _pad2d(a, rows, cols, dtype):
    a = a.astype(dtype)
    pr, pc = rows - a.shape[0], cols - a.shape[1]
    if pr or pc:
        a = jnp.pad(a, ((0, pr), (0, pc)))
    return a


# ------------------------- tiled linear (MXU) kernel --------------------------
def _tiled_linear_kernel(x_ref, w_ref, b_ref, o_ref, acc_ref, *, relu):
    @pl.when(pl.program_id(2) == 0)
    def _init():
        acc_ref[...] = jnp.zeros_like(acc_ref)

    acc_ref[...] += jnp.dot(x_ref[...], w_ref[...],
                            preferred_element_type=jnp.float32)

    @pl.when(pl.program_id(2) == pl.num_programs(2) - 1)
    def _finalize():
        out = acc_ref[...] + b_ref[...]
        if relu:
            out = jnp.maximum(out, 0.0)
        o_ref[...] = out.astype(o_ref.dtype)


def pallas_linear(x, w, b, relu=False, out_dtype=jnp.bfloat16):
    """Tiled (X @ W + b, optional ReLU). bf16 operands, f32 VMEM accumulation."""
    M, K = x.shape
    K2, N = w.shape
    assert K == K2
    # Larger K/N tiles (multiples of 128) cut grid-step overhead; double-buffered
    # footprint (tm*tk + tk*tn blocks, bf16) stays a few MiB — fine on v5e/v6e/v7x.
    tm = min(256, _round_up(M, 8))
    tn = min(512, _round_up(N, 128))
    Kr = _round_up(K, 128)
    tk = min(2048, Kr)
    Mp, Np, Kp = _round_up(M, tm), _round_up(N, tn), _round_up(Kr, tk)

    xp = _pad2d(x, Mp, Kp, jnp.bfloat16)
    wp = _pad2d(w, Kp, Np, jnp.bfloat16)
    bp = _pad2d(b.reshape(1, N), 1, Np, jnp.float32)

    out = pl.pallas_call(
        functools.partial(_tiled_linear_kernel, relu=relu),
        grid=(Mp // tm, Np // tn, Kp // tk),
        in_specs=[pl.BlockSpec((tm, tk), lambda i, j, k: (i, k)),
                  pl.BlockSpec((tk, tn), lambda i, j, k: (k, j)),
                  pl.BlockSpec((1, tn), lambda i, j, k: (0, j))],
        out_specs=pl.BlockSpec((tm, tn), lambda i, j, k: (i, j)),
        out_shape=jax.ShapeDtypeStruct((Mp, Np), out_dtype),
        scratch_shapes=[pltpu.VMEM((tm, tn), jnp.float32)],
        compiler_params=pltpu.CompilerParams(
            dimension_semantics=("parallel", "parallel", "arbitrary"),
            vmem_limit_bytes=VMEM_LIMIT),
    )(xp, wp, bp)
    return out[:M, :N]


# ---------------- fused RPN conv (im2col matmul) + RPN head kernel -------------
def _rpn_fused_kernel(x_ref, wc_ref, bc_ref, wh_ref, bh_ref, o_ref, acc_ref):
    @pl.when(pl.program_id(1) == 0)
    def _init():
        acc_ref[...] = jnp.zeros_like(acc_ref)

    acc_ref[...] += jnp.dot(x_ref[...], wc_ref[...],
                            preferred_element_type=jnp.float32)

    @pl.when(pl.program_id(1) == pl.num_programs(1) - 1)
    def _finalize():
        hidden = jnp.maximum(acc_ref[...] + bc_ref[...], 0.0)
        # RPN_cls_score + RPN_bbox_pred fused as a second (C,128) matmul in the epilogue;
        # no (M, C) hidden-activation round trip through HBM.
        z = jnp.dot(hidden.astype(jnp.bfloat16), wh_ref[...],
                    preferred_element_type=jnp.float32) + bh_ref[...]
        o_ref[...] = z.astype(o_ref.dtype)


def rpn_conv_head_fused(patches, params):
    """patches (M, 9*C) -> fused RPN conv + head logits (M, HEAD_PAD)."""
    M, K = patches.shape
    tm = min(256, _round_up(M, 8))
    Mp = _round_up(M, tm)
    Kr = _round_up(K, 128)
    tk = min(2048, Kr)
    Kp = _round_up(Kr, tk)

    xp = _pad2d(patches, Mp, Kp, jnp.bfloat16)
    wc = _pad2d(params["rpn_conv_w"], Kp, RPN_CPAD, jnp.bfloat16)
    bc = _pad2d(params["rpn_conv_b"].reshape(1, -1), 1, RPN_CPAD, jnp.float32)

    out = pl.pallas_call(
        _rpn_fused_kernel,
        grid=(Mp // tm, Kp // tk),
        in_specs=[pl.BlockSpec((tm, tk), lambda i, k: (i, k)),
                  pl.BlockSpec((tk, RPN_CPAD), lambda i, k: (k, 0)),
                  pl.BlockSpec((1, RPN_CPAD), lambda i, k: (0, 0)),
                  pl.BlockSpec((RPN_CPAD, HEAD_PAD), lambda i, k: (0, 0)),
                  pl.BlockSpec((1, HEAD_PAD), lambda i, k: (0, 0))],
        out_specs=pl.BlockSpec((tm, HEAD_PAD), lambda i, k: (i, 0)),
        out_shape=jax.ShapeDtypeStruct((Mp, HEAD_PAD), jnp.float32),
        scratch_shapes=[pltpu.VMEM((tm, RPN_CPAD), jnp.float32)],
        compiler_params=pltpu.CompilerParams(
            dimension_semantics=("parallel", "arbitrary"),
            vmem_limit_bytes=VMEM_LIMIT),
    )(xp, wc, bc, params["rpn_head_w"], params["rpn_head_b"])
    return out[:M]


# ------------- fused structure-inference + RCNN head + class softmax -----------
def _sin_rcnn_kernel(f_ref, e_ref, scn_ref, wu_ref, cw_ref, cw2_ref,
                     rw_ref, rb_ref, o_ref):
    nc = N_CLASSES
    f = f_ref[0]                                  # (R, D) bf16
    e = e_ref[0]                                  # (R, R) f32, per-image edges
    m = jnp.max(e, axis=-1, keepdims=True)
    p = jnp.exp(e - m)
    p = p / jnp.sum(p, axis=-1, keepdims=True)    # exact edge softmax
    fcw = jnp.dot(f, cw_ref[...], preferred_element_type=jnp.float32)      # Concat_w
    msg = jnp.dot(p.astype(jnp.bfloat16), fcw.astype(jnp.bfloat16),
                  preferred_element_type=jnp.float32)
    node = jnp.dot(f, wu_ref[...], preferred_element_type=jnp.float32)     # weight_u
    # scene term (weight_ua @ whole_feat) precomputed once at (B, D); broadcast per row
    upd = node + scn_ref[0] + jnp.dot(msg.astype(jnp.bfloat16), cw2_ref[...],
                                      preferred_element_type=jnp.float32)  # Concat_w2
    feat_new = jnp.maximum(upd, 0.0)

    # Fused RCNN_cls_score + RCNN_bbox_pred + class softmax epilogue.
    z = jnp.dot(feat_new.astype(jnp.bfloat16), rw_ref[...],
                preferred_element_type=jnp.float32) + rb_ref[...]
    col = lax.broadcasted_iota(jnp.int32, z.shape, 1)
    cls_mask = col < nc
    zc = jnp.where(cls_mask, z, -1e30)
    zm = jnp.max(zc, axis=-1, keepdims=True)
    ez = jnp.where(cls_mask, jnp.exp(zc - zm), 0.0)
    probs = ez / jnp.sum(ez, axis=-1, keepdims=True)
    o_ref[0] = jnp.where(cls_mask, probs, z).astype(o_ref.dtype)


def structure_inference_rcnn(edges, pooled_feat, scn, params):
    """edges (B,R,R), pooled_feat (B,R,D), scn (B,1,D) -> (B,R,HEAD_PAD)."""
    # TODO(synk): exact GRU-style update of the original _Structure_inference module is
    #             not reproduced; deterministic matmul/attention stand-in on its params.
    # TODO(synk): at production HEAD_DIM=2048 the (D,D) weight matmuls must be K-tiled
    #             (pltpu.emit_pipeline) to fit v7x's 64 MiB VMEM; full blocks at D=128.
    B, R, D = pooled_feat.shape
    cw2_eff = (params["sin_conf"][0]
               * params["sin_cw2"].astype(jnp.float32)).astype(jnp.bfloat16)
    out = pl.pallas_call(
        _sin_rcnn_kernel,
        grid=(B,),
        in_specs=[pl.BlockSpec((1, R, D), lambda b: (b, 0, 0)),
                  pl.BlockSpec((1, R, R), lambda b: (b, 0, 0)),
                  pl.BlockSpec((1, 1, D), lambda b: (b, 0, 0)),
                  pl.BlockSpec((D, D), lambda b: (0, 0)),
                  pl.BlockSpec((D, D), lambda b: (0, 0)),
                  pl.BlockSpec((D, D), lambda b: (0, 0)),
                  pl.BlockSpec((D, HEAD_PAD), lambda b: (0, 0)),
                  pl.BlockSpec((1, HEAD_PAD), lambda b: (0, 0))],
        out_specs=pl.BlockSpec((1, R, HEAD_PAD), lambda b: (b, 0, 0)),
        out_shape=jax.ShapeDtypeStruct((B, R, HEAD_PAD), jnp.float32),
        compiler_params=pltpu.CompilerParams(
            dimension_semantics=("parallel",), vmem_limit_bytes=VMEM_LIMIT),
    )(pooled_feat.astype(jnp.bfloat16), edges.astype(jnp.float32), scn,
      params["sin_wu"], params["sin_cw"], cw2_eff,
      params["rcnn_head_w"], params["rcnn_head_b"])
    return out


# ------------------------- RoIAlign as a Pallas kernel --------------------------
def _roi_align_kernel(m_ref, f_ref, o_ref):
    # pooled[all rois of image b] = interp_matrix[b] @ feat[b]  (one bf16 MXU matmul)
    o_ref[0] = jnp.dot(m_ref[0], f_ref[0],
                       preferred_element_type=jnp.float32).astype(o_ref.dtype)


def _interp_factors(roi, H, W, P, scale):
    """Separable bilinear factors: wy (P, H), wx (P, W) with <=2 taps per row."""
    x1 = roi[1] * scale
    y1 = roi[2] * scale
    x2 = roi[3] * scale
    y2 = roi[4] * scale
    bin_h = (y2 - y1) / P
    bin_w = (x2 - x1) / P
    ys = y1 + (jnp.arange(P, dtype=jnp.float32) + 0.5) * bin_h
    xs = x1 + (jnp.arange(P, dtype=jnp.float32) + 0.5) * bin_w

    def axis_weights(coords, n):
        c0 = jnp.clip(jnp.floor(coords), 0.0, n - 1.0)
        c1 = jnp.clip(c0 + 1.0, 0.0, n - 1.0)
        frac = jnp.clip(coords - c0, 0.0, 1.0)
        idx = jnp.arange(n, dtype=jnp.float32)[None, :]
        w = ((1.0 - frac)[:, None] * (idx == c0[:, None]).astype(jnp.float32)
             + frac[:, None] * (idx == c1[:, None]).astype(jnp.float32))
        return w                                                            # (P, n)

    return axis_weights(ys, H), axis_weights(xs, W)


def roi_align_pallas(base_feat, rois_per_image, out_size, spatial_scale):
    """base_feat (B,H,W,C) bf16, rois_per_image (B,R1,5) -> (B,R1,P*P,ROI_CPAD) bf16."""
    # TODO(synk): coordinate convention (center offset, no sampling_ratio) differs
    #             slightly from torchvision RoIAlign.
    # TODO(synk): at production sizes (H*W~1900, 300 rois) keep the separable factors
    #             end-to-end (two-stage contraction, roi-group tiling) instead of
    #             materializing the dense (P*P, H*W) matrix per roi.
    B, H, W, C = base_feat.shape
    R1 = rois_per_image.shape[1]
    P = out_size
    PP = P * P
    HW = H * W

    wy, wx = jax.vmap(jax.vmap(
        lambda r: _interp_factors(r, H, W, P, spatial_scale)))(
            rois_per_image.astype(jnp.float32))          # (B,R1,P,H), (B,R1,P,W)
    # Dense per-roi (PP, HW) matrix built from the separable factors (no one_hot(H*W)).
    m = (wy[:, :, :, None, :, None] * wx[:, :, None, :, None, :]).reshape(
        B, R1 * PP, HW)
    rows = _round_up(R1 * PP, 8)
    if rows != R1 * PP:
        m = jnp.pad(m, ((0, 0), (0, rows - R1 * PP), (0, 0)))
    m = m.astype(jnp.bfloat16)

    feat = jnp.pad(base_feat.astype(jnp.bfloat16),
                   ((0, 0), (0, 0), (0, 0), (0, ROI_CPAD - C)))
    feat = feat.reshape(B, HW, ROI_CPAD)                 # lane-dense channels

    out = pl.pallas_call(
        _roi_align_kernel,
        grid=(B,),                                       # feature DMA'd once per image
        in_specs=[pl.BlockSpec((1, rows, HW), lambda b: (b, 0, 0)),
                  pl.BlockSpec((1, HW, ROI_CPAD), lambda b: (b, 0, 0))],
        out_specs=pl.BlockSpec((1, rows, ROI_CPAD), lambda b: (b, 0, 0)),
        out_shape=jax.ShapeDtypeStruct((B, rows, ROI_CPAD), jnp.bfloat16),
        compiler_params=pltpu.CompilerParams(
            dimension_semantics=("parallel",), vmem_limit_bytes=VMEM_LIMIT),
    )(m, feat)
    return out[:, :R1 * PP, :].reshape(B, R1, PP, ROI_CPAD)


# --------------------------------- JAX glue -----------------------------------
def _extract_patches(x_nhwc, fh, fw, sh, sw, padding):
    return lax.conv_general_dilated_patches(
        x_nhwc, filter_shape=(fh, fw), window_strides=(sh, sw), padding=padding,
        dimension_numbers=("NHWC", "HWIO", "NHWC"))


def rcnn_base(im_data_nchw, params):
    # TODO(synk): real ResNet/VGG backbone replaced by a stride-16 patch-embed
    #             (im2col + tiled Pallas matmul) producing the 1/16-resolution base_feat.
    x = jnp.transpose(im_data_nchw, (0, 2, 3, 1)).astype(jnp.float32)     # NCHW -> NHWC
    patches = _extract_patches(x, FEAT_STRIDE, FEAT_STRIDE, FEAT_STRIDE, FEAT_STRIDE,
                               "VALID")
    B, Hf, Wf, K = patches.shape
    feat = pallas_linear(patches.reshape(B * Hf * Wf, K),
                         params["base_w"], params["base_b"], relu=True)
    return feat.reshape(B, Hf, Wf, DOUT_BASE)                             # bf16


def _generate_anchors(Hf, Wf):
    scales = jnp.array([2.0, 4.0, 8.0], jnp.float32) * FEAT_STRIDE
    sy = (jnp.arange(Hf) * FEAT_STRIDE).astype(jnp.float32)
    sx = (jnp.arange(Wf) * FEAT_STRIDE).astype(jnp.float32)
    yy, xx = jnp.meshgrid(sy, sx, indexing="ij")
    ctr = jnp.stack([xx, yy], axis=-1).reshape(-1, 2)
    half = scales / 2.0
    per_scale = []
    for a in range(NUM_ANCHORS):
        x1 = ctr[:, 0] - half[a]
        y1 = ctr[:, 1] - half[a]
        x2 = ctr[:, 0] + half[a]
        y2 = ctr[:, 1] + half[a]
        per_scale.append(jnp.stack([x1, y1, x2, y2], axis=-1))
    return jnp.stack(per_scale, axis=1).reshape(-1, 4)                    # (Hf*Wf*A, 4)


def _bbox_transform_inv(boxes, deltas):
    w = boxes[:, 2] - boxes[:, 0] + 1.0
    h = boxes[:, 3] - boxes[:, 1] + 1.0
    cx = boxes[:, 0] + 0.5 * w
    cy = boxes[:, 1] + 0.5 * h
    dx, dy, dw, dh = deltas[:, 0], deltas[:, 1], deltas[:, 2], deltas[:, 3]
    pcx = dx * w + cx
    pcy = dy * h + cy
    pw = jnp.exp(dw) * w
    ph = jnp.exp(dh) * h
    return jnp.stack([pcx - 0.5 * pw, pcy - 0.5 * ph,
                      pcx + 0.5 * pw, pcy + 0.5 * ph], axis=-1)


def rcnn_rpn(base_feat, im_info, params):
    B, Hf, Wf, C = base_feat.shape
    # TODO(synk): the 3x3 im2col materializes a 9x activation in HBM; a halo-tiled
    #             in-kernel 9-tap conv should replace it at production feature sizes.
    patches = _extract_patches(base_feat, 3, 3, 1, 1, "SAME").reshape(B * Hf * Wf,
                                                                      9 * C)
    rpn_out = rpn_conv_head_fused(patches, params)       # (M, HEAD_PAD) fused conv+head
    na = NUM_ANCHORS
    bg = rpn_out[:, 0:na]
    fg = rpn_out[:, na:2 * na]
    deltas = rpn_out[:, 2 * na:6 * na]
    fg_prob = jax.nn.sigmoid(fg - bg)                    # tiny (M, A) sigmoid in XLA glue

    deltas = deltas.reshape(B, Hf * Wf, na, 4).reshape(B, Hf * Wf * na, 4)
    fg_prob = fg_prob.reshape(B, Hf * Wf * na)
    anchors = _generate_anchors(Hf, Wf)

    def per_image(d, score, info):
        boxes = _bbox_transform_inv(anchors, d)
        boxes = jnp.stack([
            jnp.clip(boxes[:, 0], 0.0, info[1] - 1.0),
            jnp.clip(boxes[:, 1], 0.0, info[0] - 1.0),
            jnp.clip(boxes[:, 2], 0.0, info[1] - 1.0),
            jnp.clip(boxes[:, 3], 0.0, info[0] - 1.0)], axis=-1)
        # TODO(synk): NMS of the proposal layer has no clean Pallas equivalent;
        #             top-K by foreground score is used instead.
        _, order = lax.top_k(score, NUM_ROIS)
        return boxes[order]

    boxes = jax.vmap(per_image)(deltas, fg_prob, im_info)                 # (B, R, 4)
    batch_idx = jnp.broadcast_to(
        jnp.arange(B, dtype=jnp.float32)[:, None, None], (B, NUM_ROIS, 1))
    rois = jnp.concatenate([batch_idx, boxes], axis=-1)                   # (B, R, 5)
    return rois, 0.0, 0.0


def union_box_layer(rois):
    bidx = rois[:, 0:1, 0:1]
    x1 = jnp.min(rois[:, :, 1:2], axis=1, keepdims=True)
    y1 = jnp.min(rois[:, :, 2:3], axis=1, keepdims=True)
    x2 = jnp.max(rois[:, :, 3:4], axis=1, keepdims=True)
    y2 = jnp.max(rois[:, :, 4:5], axis=1, keepdims=True)
    return jnp.concatenate([bidx, x1, y1, x2, y2], axis=-1)               # (B, 1, 5)


def edge_whole_layer(rois):
    # pairwise IoU between proposals as the edge weights
    def per_image(r):
        x1, y1, x2, y2 = r[:, 1], r[:, 2], r[:, 3], r[:, 4]
        area = (x2 - x1 + 1.0) * (y2 - y1 + 1.0)
        xx1 = jnp.maximum(x1[:, None], x1[None, :])
        yy1 = jnp.maximum(y1[:, None], y1[None, :])
        xx2 = jnp.minimum(x2[:, None], x2[None, :])
        yy2 = jnp.minimum(y2[:, None], y2[None, :])
        iw = jnp.maximum(xx2 - xx1 + 1.0, 0.0)
        ih = jnp.maximum(yy2 - yy1 + 1.0, 0.0)
        inter = iw * ih
        return inter / (area[:, None] + area[None, :] - inter)
    return jax.vmap(per_image)(rois)                                      # (B, R, R)


def head_to_tail(pooled_flat, params):
    # TODO(synk): real ResNet layer4 head replaced by a single FC + ReLU (Pallas matmul).
    return pallas_linear(pooled_flat, params["head_w"], params["head_b"], relu=True)


# ------------------------------ parameter init --------------------------------
def init_params(key):
    ks = jax.random.split(key, 12)

    def nrm(k, shape, std):
        return std * jax.random.normal(k, shape, jnp.float32)

    A = NUM_ANCHORS
    p = {}
    p["base_w"] = nrm(ks[0], (3 * FEAT_STRIDE * FEAT_STRIDE, DOUT_BASE),
                      0.01).astype(jnp.bfloat16)
    p["base_b"] = jnp.zeros((DOUT_BASE,), jnp.float32)
    p["rpn_conv_w"] = nrm(ks[1], (9 * DOUT_BASE, DOUT_BASE), 0.01).astype(jnp.bfloat16)
    p["rpn_conv_b"] = jnp.zeros((DOUT_BASE,), jnp.float32)

    # Fused RPN head: columns [bg(A), fg(A), bbox(4A)] padded lane-dense to HEAD_PAD.
    rpn_cls_w = nrm(ks[2], (DOUT_BASE, 2 * A), 0.01)
    rpn_bbox_w = nrm(ks[3], (DOUT_BASE, 4 * A), 0.01)
    p["rpn_head_w"] = _pad2d(jnp.concatenate([rpn_cls_w, rpn_bbox_w], axis=1),
                             RPN_CPAD, HEAD_PAD, jnp.bfloat16)
    p["rpn_head_b"] = jnp.zeros((1, HEAD_PAD), jnp.float32)

    p["head_w"] = nrm(ks[4], (POOLING_SIZE * POOLING_SIZE * ROI_CPAD, HEAD_DIM),
                      0.01).astype(jnp.bfloat16)
    p["head_b"] = jnp.zeros((HEAD_DIM,), jnp.float32)

    p["sin_wu"] = nrm(ks[5], (HEAD_DIM, HEAD_DIM), 0.01).astype(jnp.bfloat16)
    p["sin_wua"] = nrm(ks[6], (HEAD_DIM, HEAD_DIM), 0.01).astype(jnp.bfloat16)
    p["sin_cw"] = nrm(ks[7], (HEAD_DIM, HEAD_DIM), 0.01).astype(jnp.bfloat16)
    p["sin_cw2"] = nrm(ks[8], (HEAD_DIM, HEAD_DIM), 0.01).astype(jnp.bfloat16)
    p["sin_conf"] = jnp.ones((1,), jnp.float32)               # nn.init.constant(..., 1)

    # Fused RCNN head: columns [cls(n_classes), bbox(4*n_classes)] padded to HEAD_PAD.
    n_bbox = 4 if CLASS_AGNOSTIC else 4 * N_CLASSES
    cls_w = nrm(ks[9], (HEAD_DIM, N_CLASSES), 0.01)
    bbox_w = nrm(ks[10], (HEAD_DIM, n_bbox), 0.001)
    p["rcnn_head_w"] = _pad2d(jnp.concatenate([cls_w, bbox_w], axis=1),
                              HEAD_DIM, HEAD_PAD, jnp.bfloat16)
    p["rcnn_head_b"] = jnp.zeros((1, HEAD_PAD), jnp.float32)
    return p


# ------------------------------ forward pass -----------------------------------
def faster_rcnn_forward(params, im_data, im_info, gt_boxes, num_boxes):
    # Inference mode (self.training == False): proposal-target layer and losses skipped.
    del gt_boxes, num_boxes
    B = im_data.shape[0]
    base_feat = rcnn_base(im_data, params)                       # (B, Hf, Wf, C) bf16
    rois, rpn_loss_cls, rpn_loss_bbox = rcnn_rpn(base_feat, im_info, params)

    whole = union_box_layer(rois)                                # (B, 1, 5)
    edges_all = edge_whole_layer(rois)                           # (B, R, R)

    # RoIAlign for proposals and the whole-image union box in ONE Pallas call
    # (per-image grid; feature map DMA'd once per image, lane-dense channel pad).
    rois_plus = jnp.concatenate([rois, whole], axis=1)           # (B, R+1, 5)
    pooled = roi_align_pallas(base_feat, rois_plus, POOLING_SIZE,
                              1.0 / FEAT_STRIDE)                 # (B, R+1, P*P, Cpad)
    R1 = NUM_ROIS + 1
    pooled_flat = pooled.reshape(B * R1, POOLING_SIZE * POOLING_SIZE * ROI_CPAD)

    feats = head_to_tail(pooled_flat, params).reshape(B, R1, HEAD_DIM)   # bf16
    pooled_feat = feats[:, :NUM_ROIS, :]                         # (B, R, D)
    whole_pool_feat = feats[:, NUM_ROIS, :]                      # (B, D)

    # Scene term computed ONCE at (B, D) (no R-fold repeated matmul).
    scn = pallas_linear(whole_pool_feat, params["sin_wua"],
                        jnp.zeros((HEAD_DIM,), jnp.float32), relu=False,
                        out_dtype=jnp.float32).reshape(B, 1, HEAD_DIM)

    head_out = structure_inference_rcnn(edges_all, pooled_feat, scn,
                                        params)                  # (B, R, HEAD_PAD)
    n_bbox = 4 if CLASS_AGNOSTIC else 4 * N_CLASSES
    cls_prob = head_out[..., :N_CLASSES]                         # (B, R, n_classes)
    bbox_pred = head_out[..., N_CLASSES:N_CLASSES + n_bbox]      # (B, R, 4*n_classes)

    rois_label = None
    RCNN_loss_cls = 0.0
    RCNN_loss_bbox = 0.0
    return (rois, cls_prob, bbox_pred, rpn_loss_cls, rpn_loss_bbox,
            RCNN_loss_cls, RCNN_loss_bbox, rois_label)


# ------------------------------------ main --------------------------------------
if __name__ == "__main__":
    key = jax.random.PRNGKey(0)
    k_par, k_img, k_gt = jax.random.split(key, 3)

    params = init_params(k_par)

    im_data = jax.random.normal(k_img, (BATCH, 3, IMG_H, IMG_W), jnp.float32)  # NCHW
    im_info = jnp.tile(jnp.array([[IMG_H, IMG_W, 1.0]], jnp.float32), (BATCH, 1))
    gt_boxes = jax.random.uniform(k_gt, (BATCH, 5, 5), jnp.float32,
                                  minval=0.0, maxval=IMG_W - 1.0)
    num_boxes = jnp.array([3, 2], jnp.int32)

    fwd = jax.jit(faster_rcnn_forward)
    out = fwd(params, im_data, im_info, gt_boxes, num_boxes)
    out = jax.block_until_ready(out)

    rois, cls_prob, bbox_pred = out[0], out[1], out[2]
    assert rois.shape == (BATCH, NUM_ROIS, 5)
    assert cls_prob.shape == (BATCH, NUM_ROIS, N_CLASSES)
    assert bbox_pred.shape == (BATCH, NUM_ROIS, 4 * N_CLASSES)
    assert bool(jnp.all(jnp.isfinite(cls_prob)))
    assert bool(jnp.all(jnp.isfinite(bbox_pred)))
    print("KERNEL_OK")
</pallas_src>

<mosaic_0001>
module attributes {stable_mosaic.version = 11 : i64} {
  func.func @_tiled_linear_kernel(%arg0: i32, %arg1: i32, %arg2: i32, %arg3: memref<32x768xbf16, #tpu.memory_space<vmem>>, %arg4: memref<768x128xbf16, #tpu.memory_space<vmem>>, %arg5: memref<1x128xf32, #tpu.memory_space<vmem>>, %arg6: memref<32x128xbf16, #tpu.memory_space<vmem>>, %arg7: memref<32x128xf32, #tpu.memory_space<vmem>>) attributes {dimension_semantics = [#tpu.dimension_semantics<parallel>, #tpu.dimension_semantics<parallel>, #tpu.dimension_semantics<arbitrary>], iteration_bounds = array<i64: 1, 1, 1>, scalar_prefetch = 0 : i64, scratch_operands = 1 : i64, tpu.core_type = #tpu.core_type<tc>, window_params = [{transform_indices = @transform_0, window_bounds = array<i64: 32, 768>}, {transform_indices = @transform_1, window_bounds = array<i64: 768, 128>}, {transform_indices = @transform_2, window_bounds = array<i64: 1, 128>}, {transform_indices = @transform_3, window_bounds = array<i64: 32, 128>}]} {
    %c0_i32 = arith.constant 0 : i32
    %0 = arith.cmpi eq, %arg2, %c0_i32 : i32
    %1 = arith.extui %0 : i1 to i32
    %c0_i32_0 = arith.constant 0 : i32
    %2 = arith.cmpi ne, %1, %c0_i32_0 : i32
    scf.if %2 {
      %cst_10 = arith.constant 0.000000e+00 : f32
      %12 = vector.broadcast %cst_10 : f32 to vector<32x128xf32>
      %c0_11 = arith.constant 0 : index
      %c0_12 = arith.constant 0 : index
      %13 = vector.load %arg7[%c0_11, %c0_12] : memref<32x128xf32, #tpu.memory_space<vmem>>, vector<32x128xf32>
      tpu.vector_store %arg7[%c0_11, %c0_12], %12 {strides = array<i32>} : memref<32x128xf32, #tpu.memory_space<vmem>>, vector<32x128xf32>,
    } else {
    }
    %c0 = arith.constant 0 : index
    %c0_1 = arith.constant 0 : index
    %3 = vector.load %arg7[%c0, %c0_1] : memref<32x128xf32, #tpu.memory_space<vmem>>, vector<32x128xf32>
    %c0_2 = arith.constant 0 : index
    %c0_3 = arith.constant 0 : index
    %4 = vector.load %arg3[%c0_2, %c0_3] : memref<32x768xbf16, #tpu.memory_space<vmem>>, vector<32x768xbf16>
    %c0_4 = arith.constant 0 : index
    %c0_5 = arith.constant 0 : index
    %5 = vector.load %arg4[%c0_4, %c0_5] : memref<768x128xbf16, #tpu.memory_space<vmem>>, vector<768x128xbf16>
    %cst = arith.constant dense<0.000000e+00> : vector<32x128xf32>
    %6 = tpu.matmul %4, %5, %cst {dimension_numbers = #tpu.dot_dimension_numbers<[1], [0], [0], [1], [0, 0, 1, 1], [], []>} : vector<32x768xbf16>, vector<768x128xbf16>, vector<32x128xf32> -> vector<32x128xf32>
    %7 = arith.addf %3, %6 : vector<32x128xf32>
    %c0_6 = arith.constant 0 : index
    %c0_7 = arith.constant 0 : index
    %8 = vector.load %arg7[%c0_6, %c0_7] : memref<32x128xf32, #tpu.memory_space<vmem>>, vector<32x128xf32>
    tpu.vector_store %arg7[%c0_6, %c0_7], %7 {strides = array<i32>} : memref<32x128xf32, #tpu.memory_space<vmem>>, vector<32x128xf32>,
    %c0_i32_8 = arith.constant 0 : i32
    %9 = arith.cmpi eq, %arg2, %c0_i32_8 : i32
    %10 = arith.extui %9 : i1 to i32
    %c0_i32_9 = arith.constant 0 : i32
    %11 = arith.cmpi ne, %10, %c0_i32_9 : i32
    scf.if %11 {
      %c0_10 = arith.constant 0 : index
      %c0_11 = arith.constant 0 : index
      %12 = vector.load %arg7[%c0_10, %c0_11] : memref<32x128xf32, #tpu.memory_space<vmem>>, vector<32x128xf32>
      %c0_12 = arith.constant 0 : index
      %c0_13 = arith.constant 0 : index
      %13 = vector.load %arg5[%c0_12, %c0_13] : memref<1x128xf32, #tpu.memory_space<vmem>>, vector<1x128xf32>
      %14 = vector.broadcast %13 : vector<1x128xf32> to vector<32x128xf32>
      %15 = arith.addf %12, %14 : vector<32x128xf32>
      %cst_14 = arith.constant 0.000000e+00 : f32
      %16 = vector.broadcast %cst_14 : f32 to vector<32x128xf32>
      %17 = arith.maximumf %15, %16 : vector<32x128xf32>
      %18 = arith.truncf %17 : vector<32x128xf32> to vector<32x128xbf16>
      %c0_15 = arith.constant 0 : index
      %c0_16 = arith.constant 0 : index
      %19 = vector.load %arg6[%c0_15, %c0_16] : memref<32x128xbf16, #tpu.memory_space<vmem>>, vector<32x128xbf16>
      tpu.vector_store %arg6[%c0_15, %c0_16], %18 {strides = array<i32>} : memref<32x128xbf16, #tpu.memory_space<vmem>>, vector<32x128xbf16>,
    } else {
    }
    return
  }
  func.func @transform_0(%arg0: i32, %arg1: i32, %arg2: i32) -> (i32, i32) {
    %c0_i32 = arith.constant 0 : i32
    return %arg0, %arg2 : i32, i32
  }
  func.func @transform_1(%arg0: i32, %arg1: i32, %arg2: i32) -> (i32, i32) {
    %c0_i32 = arith.constant 0 : i32
    return %arg2, %arg1 : i32, i32
  }
  func.func @transform_2(%arg0: i32, %arg1: i32, %arg2: i32) -> (i32, i32) {
    %c0_i32 = arith.constant 0 : i32
    %c0_i32_0 = arith.constant 0 : i32
    return %c0_i32, %arg1 : i32, i32
  }
  func.func @transform_3(%arg0: i32, %arg1: i32, %arg2: i32) -> (i32, i32) {
    %c0_i32 = arith.constant 0 : i32
    return %arg0, %arg1 : i32, i32
  }
}

module attributes {stable_mosaic.version = 11 : i64} {
  func.func @_rpn_fused_kernel(%arg0: i32, %arg1: i32, %arg2: memref<32x640xbf16, #tpu.memory_space<vmem>>, %arg3: memref<640x128xbf16, #tpu.memory_space<vmem>>, %arg4: memref<1x128xf32, #tpu.memory_space<vmem>>, %arg5: memref<128x128xbf16, #tpu.memory_space<vmem>>, %arg6: memref<1x128xf32, #tpu.memory_space<vmem>>, %arg7: memref<32x128xf32, #tpu.memory_space<vmem>>, %arg8: memref<32x128xf32, #tpu.memory_space<vmem>>) attributes {dimension_semantics = [#tpu.dimension_semantics<parallel>, #tpu.dimension_semantics<arbitrary>], iteration_bounds = array<i64: 1, 1>, scalar_prefetch = 0 : i64, scratch_operands = 1 : i64, tpu.core_type = #tpu.core_type<tc>, window_params = [{transform_indices = @transform_0, window_bounds = array<i64: 32, 640>}, {transform_indices = @transform_1, window_bounds = array<i64: 640, 128>}, {pipeline_mode = #tpu.pipeline_mode<synchronous>, transform_indices = @transform_2, window_bounds = array<i64: 1, 128>}, {pipeline_mode = #tpu.pipeline_mode<synchronous>, transform_indices = @transform_3, window_bounds = array<i64: 128, 128>}, {pipeline_mode = #tpu.pipeline_mode<synchronous>, transform_indices = @transform_4, window_bounds = array<i64: 1, 128>}, {transform_indices = @transform_5, window_bounds = array<i64: 32, 128>}]} {
    %c0_i32 = arith.constant 0 : i32
    %0 = arith.cmpi eq, %arg1, %c0_i32 : i32
    %1 = arith.extui %0 : i1 to i32
    %c0_i32_0 = arith.constant 0 : i32
    %2 = arith.cmpi ne, %1, %c0_i32_0 : i32
    scf.if %2 {
      %cst_10 = arith.constant 0.000000e+00 : f32
      %12 = vector.broadcast %cst_10 : f32 to vector<32x128xf32>
      %c0_11 = arith.constant 0 : index
      %c0_12 = arith.constant 0 : index
      %13 = vector.load %arg8[%c0_11, %c0_12] : memref<32x128xf32, #tpu.memory_space<vmem>>, vector<32x128xf32>
      tpu.vector_store %arg8[%c0_11, %c0_12], %12 {strides = array<i32>} : memref<32x128xf32, #tpu.memory_space<vmem>>, vector<32x128xf32>,
    } else {
    }
    %c0 = arith.constant 0 : index
    %c0_1 = arith.constant 0 : index
    %3 = vector.load %arg8[%c0, %c0_1] : memref<32x128xf32, #tpu.memory_space<vmem>>, vector<32x128xf32>
    %c0_2 = arith.constant 0 : index
    %c0_3 = arith.constant 0 : index
    %4 = vector.load %arg2[%c0_2, %c0_3] : memref<32x640xbf16, #tpu.memory_space<vmem>>, vector<32x640xbf16>
    %c0_4 = arith.constant 0 : index
    %c0_5 = arith.constant 0 : index
    %5 = vector.load %arg3[%c0_4, %c0_5] : memref<640x128xbf16, #tpu.memory_space<vmem>>, vector<640x128xbf16>
    %cst = arith.constant dense<0.000000e+00> : vector<32x128xf32>
    %6 = tpu.matmul %4, %5, %cst {dimension_numbers = #tpu.dot_dimension_numbers<[1], [0], [0], [1], [0, 0, 1, 1], [], []>} : vector<32x640xbf16>, vector<640x128xbf16>, vector<32x128xf32> -> vector<32x128xf32>
    %7 = arith.addf %3, %6 : vector<32x128xf32>
    %c0_6 = arith.constant 0 : index
    %c0_7 = arith.constant 0 : index
    %8 = vector.load %arg8[%c0_6, %c0_7] : memref<32x128xf32, #tpu.memory_space<vmem>>, vector<32x128xf32>
    tpu.vector_store %arg8[%c0_6, %c0_7], %7 {strides = array<i32>} : memref<32x128xf32, #tpu.memory_space<vmem>>, vector<32x128xf32>,
    %c0_i32_8 = arith.constant 0 : i32
    %9 = arith.cmpi eq, %arg1, %c0_i32_8 : i32
    %10 = arith.extui %9 : i1 to i32
    %c0_i32_9 = arith.constant 0 : i32
    %11 = arith.cmpi ne, %10, %c0_i32_9 : i32
    scf.if %11 {
      %c0_10 = arith.constant 0 : index
      %c0_11 = arith.constant 0 : index
      %12 = vector.load %arg8[%c0_10, %c0_11] : memref<32x128xf32, #tpu.memory_space<vmem>>, vector<32x128xf32>
      %c0_12 = arith.constant 0 : index
      %c0_13 = arith.constant 0 : index
      %13 = vector.load %arg4[%c0_12, %c0_13] : memref<1x128xf32, #tpu.memory_space<vmem>>, vector<1x128xf32>
      %14 = vector.broadcast %13 : vector<1x128xf32> to vector<32x128xf32>
      %15 = arith.addf %12, %14 : vector<32x128xf32>
      %cst_14 = arith.constant 0.000000e+00 : f32
      %16 = vector.broadcast %cst_14 : f32 to vector<32x128xf32>
      %17 = arith.maximumf %15, %16 : vector<32x128xf32>
      %18 = arith.truncf %17 : vector<32x128xf32> to vector<32x128xbf16>
      %c0_15 = arith.constant 0 : index
      %c0_16 = arith.constant 0 : index
      %19 = vector.load %arg5[%c0_15, %c0_16] : memref<128x128xbf16, #tpu.memory_space<vmem>>, vector<128x128xbf16>
      %cst_17 = arith.constant dense<0.000000e+00> : vector<32x128xf32>
      %20 = tpu.matmul %18, %19, %cst_17 {dimension_numbers = #tpu.dot_dimension_numbers<[1], [0], [0], [1], [0, 0, 1, 1], [], []>} : vector<32x128xbf16>, vector<128x128xbf16>, vector<32x128xf32> -> vector<32x128xf32>
      %c0_18 = arith.constant 0 : index
      %c0_19 = arith.constant 0 : index
      %21 = vector.load %arg6[%c0_18, %c0_19] : memref<1x128xf32, #tpu.memory_space<vmem>>, vector<1x128xf32>
      %22 = vector.broadcast %21 : vector<1x128xf32> to vector<32x128xf32>
      %23 = arith.addf %20, %22 : vector<32x128xf32>
      %c0_20 = arith.constant 0 : index
      %c0_21 = arith.constant 0 : index
      %24 = vector.load %arg7[%c0_20, %c0_21] : memref<32x128xf32, #tpu.memory_space<vmem>>, vector<32x128xf32>
      tpu.vector_store %arg7[%c0_20, %c0_21], %23 {strides = array<i32>} : memref<32x128xf32, #tpu.memory_space<vmem>>, vector<32x128xf32>,
    } else {
    }
    return
  }
  func.func @transform_0(%arg0: i32, %arg1: i32) -> (i32, i32) {
    %c0_i32 = arith.constant 0 : i32
    return %arg0, %arg1 : i32, i32
  }
  func.func @transform_1(%arg0: i32, %arg1: i32) -> (i32, i32) {
    %c0_i32 = arith.constant 0 : i32
    %c0_i32_0 = arith.constant 0 : i32
    return %arg1, %c0_i32 : i32, i32
  }
  func.func @transform_2(%arg0: i32, %arg1: i32) -> (i32, i32) {
    %c0_i32 = arith.constant 0 : i32
    %c0_i32_0 = arith.constant 0 : i32
    %c0_i32_1 = arith.constant 0 : i32
    return %c0_i32, %c0_i32_0 : i32, i32
  }
  func.func @transform_3(%arg0: i32, %arg1: i32) -> (i32, i32) {
    %c0_i32 = arith.constant 0 : i32
    %c0_i32_0 = arith.constant 0 : i32
    %c0_i32_1 = arith.constant 0 : i32
    return %c0_i32, %c0_i32_0 : i32, i32
  }
  func.func @transform_4(%arg0: i32, %arg1: i32) -> (i32, i32) {
    %c0_i32 = arith.constant 0 : i32
    %c0_i32_0 = arith.constant 0 : i32
    %c0_i32_1 = arith.constant 0 : i32
    return %c0_i32, %c0_i32_0 : i32, i32
  }
  func.func @transform_5(%arg0: i32, %arg1: i32) -> (i32, i32) {
    %c0_i32 = arith.constant 0 : i32
    %c0_i32_0 = arith.constant 0 : i32
    return %arg0, %c0_i32 : i32, i32
  }
}

module attributes {stable_mosaic.version = 11 : i64} {
  func.func @_roi_align_kernel(%arg0: i32, %arg1: memref<1x448x16xbf16, #tpu.memory_space<vmem>>, %arg2: memref<1x16x128xbf16, #tpu.memory_space<vmem>>, %arg3: memref<1x448x128xbf16, #tpu.memory_space<vmem>>) attributes {dimension_semantics = [#tpu.dimension_semantics<parallel>], iteration_bounds = array<i64: 2>, scalar_prefetch = 0 : i64, scratch_operands = 0 : i64, tpu.core_type = #tpu.core_type<tc>, window_params = [{transform_indices = @transform_0, window_bounds = array<i64: 1, 448, 16>}, {transform_indices = @transform_1, window_bounds = array<i64: 1, 16, 128>}, {transform_indices = @transform_2, window_bounds = array<i64: 1, 448, 128>}]} {
    %c0 = arith.constant 0 : index
    %c0_0 = arith.constant 0 : index
    %c0_1 = arith.constant 0 : index
    %0 = vector.load %arg1[%c0, %c0_0, %c0_1] : memref<1x448x16xbf16, #tpu.memory_space<vmem>>, vector<1x448x16xbf16>
    %1 = vector.shape_cast %0 : vector<1x448x16xbf16> to vector<448x16xbf16>
    %c0_2 = arith.constant 0 : index
    %c0_3 = arith.constant 0 : index
    %c0_4 = arith.constant 0 : index
    %2 = vector.load %arg2[%c0_2, %c0_3, %c0_4] : memref<1x16x128xbf16, #tpu.memory_space<vmem>>, vector<1x16x128xbf16>
    %3 = vector.shape_cast %2 : vector<1x16x128xbf16> to vector<16x128xbf16>
    %cst = arith.constant dense<0.000000e+00> : vector<448x128xf32>
    %4 = tpu.matmul %1, %3, %cst {dimension_numbers = #tpu.dot_dimension_numbers<[1], [0], [0], [1], [0, 0, 1, 1], [], []>} : vector<448x16xbf16>, vector<16x128xbf16>, vector<448x128xf32> -> vector<448x128xf32>
    %5 = arith.truncf %4 : vector<448x128xf32> to vector<448x128xbf16>
    %c0_5 = arith.constant 0 : index
    %c0_6 = arith.constant 0 : index
    %c0_7 = arith.constant 0 : index
    %6 = vector.load %arg3[%c0_5, %c0_6, %c0_7] : memref<1x448x128xbf16, #tpu.memory_space<vmem>>, vector<1x448x128xbf16>
    %7 = vector.shape_cast %6 : vector<1x448x128xbf16> to vector<448x128xbf16>
    %8 = vector.shape_cast %5 : vector<448x128xbf16> to vector<1x448x128xbf16>
    tpu.vector_store %arg3[%c0_5, %c0_6, %c0_7], %8 {strides = array<i32>} : memref<1x448x128xbf16, #tpu.memory_space<vmem>>, vector<1x448x128xbf16>,
    return
  }
  func.func @transform_0(%arg0: i32) -> (i32, i32, i32) {
    %c0_i32 = arith.constant 0 : i32
    %c0_i32_0 = arith.constant 0 : i32
    %c0_i32_1 = arith.constant 0 : i32
    return %arg0, %c0_i32, %c0_i32_0 : i32, i32, i32
  }
  func.func @transform_1(%arg0: i32) -> (i32, i32, i32) {
    %c0_i32 = arith.constant 0 : i32
    %c0_i32_0 = arith.constant 0 : i32
    %c0_i32_1 = arith.constant 0 : i32
    return %arg0, %c0_i32, %c0_i32_0 : i32, i32, i32
  }
  func.func @transform_2(%arg0: i32) -> (i32, i32, i32) {
    %c0_i32 = arith.constant 0 : i32
    %c0_i32_0 = arith.constant 0 : i32
    %c0_i32_1 = arith.constant 0 : i32
    return %arg0, %c0_i32, %c0_i32_0 : i32, i32, i32
  }
}

module attributes {stable_mosaic.version = 11 : i64} {
  func.func @_tiled_linear_kernel(%arg0: i32, %arg1: i32, %arg2: i32, %arg3: memref<24x2048xbf16, #tpu.memory_space<vmem>>, %arg4: memref<2048x128xbf16, #tpu.memory_space<vmem>>, %arg5: memref<1x128xf32, #tpu.memory_space<vmem>>, %arg6: memref<24x128xbf16, #tpu.memory_space<vmem>>, %arg7: memref<24x128xf32, #tpu.memory_space<vmem>>) attributes {dimension_semantics = [#tpu.dimension_semantics<parallel>, #tpu.dimension_semantics<parallel>, #tpu.dimension_semantics<arbitrary>], iteration_bounds = array<i64: 1, 1, 4>, scalar_prefetch = 0 : i64, scratch_operands = 1 : i64, tpu.core_type = #tpu.core_type<tc>, window_params = [{transform_indices = @transform_0, window_bounds = array<i64: 24, 2048>}, {transform_indices = @transform_1, window_bounds = array<i64: 2048, 128>}, {transform_indices = @transform_2, window_bounds = array<i64: 1, 128>}, {transform_indices = @transform_3, window_bounds = array<i64: 24, 128>}]} {
    %c0_i32 = arith.constant 0 : i32
    %0 = arith.cmpi eq, %arg2, %c0_i32 : i32
    %1 = arith.extui %0 : i1 to i32
    %c0_i32_0 = arith.constant 0 : i32
    %2 = arith.cmpi ne, %1, %c0_i32_0 : i32
    scf.if %2 {
      %cst_9 = arith.constant 0.000000e+00 : f32
      %12 = vector.broadcast %cst_9 : f32 to vector<24x128xf32>
      %c0_10 = arith.constant 0 : index
      %c0_11 = arith.constant 0 : index
      %13 = vector.load %arg7[%c0_10, %c0_11] : memref<24x128xf32, #tpu.memory_space<vmem>>, vector<24x128xf32>
      tpu.vector_store %arg7[%c0_10, %c0_11], %12 {strides = array<i32>} : memref<24x128xf32, #tpu.memory_space<vmem>>, vector<24x128xf32>,
    } else {
    }
    %c0 = arith.constant 0 : index
    %c0_1 = arith.constant 0 : index
    %3 = vector.load %arg7[%c0, %c0_1] : memref<24x128xf32, #tpu.memory_space<vmem>>, vector<24x128xf32>
    %c0_2 = arith.constant 0 : index
    %c0_3 = arith.constant 0 : index
    %4 = vector.load %arg3[%c0_2, %c0_3] : memref<24x2048xbf16, #tpu.memory_space<vmem>>, vector<24x2048xbf16>
    %c0_4 = arith.constant 0 : index
    %c0_5 = arith.constant 0 : index
    %5 = vector.load %arg4[%c0_4, %c0_5] : memref<2048x128xbf16, #tpu.memory_space<vmem>>, vector<2048x128xbf16>
    %cst = arith.constant dense<0.000000e+00> : vector<24x128xf32>
    %6 = tpu.matmul %4, %5, %cst {dimension_numbers = #tpu.dot_dimension_numbers<[1], [0], [0], [1], [0, 0, 1, 1], [], []>} : vector<24x2048xbf16>, vector<2048x128xbf16>, vector<24x128xf32> -> vector<24x128xf32>
    %7 = arith.addf %3, %6 : vector<24x128xf32>
    %c0_6 = arith.constant 0 : index
    %c0_7 = arith.constant 0 : index
    %8 = vector.load %arg7[%c0_6, %c0_7] : memref<24x128xf32, #tpu.memory_space<vmem>>, vector<24x128xf32>
    tpu.vector_store %arg7[%c0_6, %c0_7], %7 {strides = array<i32>} : memref<24x128xf32, #tpu.memory_space<vmem>>, vector<24x128xf32>,
    %c3_i32 = arith.constant 3 : i32
    %9 = arith.cmpi eq, %arg2, %c3_i32 : i32
    %10 = arith.extui %9 : i1 to i32
    %c0_i32_8 = arith.constant 0 : i32
    %11 = arith.cmpi ne, %10, %c0_i32_8 : i32
    scf.if %11 {
      %c0_9 = arith.constant 0 : index
      %c0_10 = arith.constant 0 : index
      %12 = vector.load %arg7[%c0_9, %c0_10] : memref<24x128xf32, #tpu.memory_space<vmem>>, vector<24x128xf32>
      %c0_11 = arith.constant 0 : index
      %c0_12 = arith.constant 0 : index
      %13 = vector.load %arg5[%c0_11, %c0_12] : memref<1x128xf32, #tpu.memory_space<vmem>>, vector<1x128xf32>
      %14 = vector.broadcast %13 : vector<1x128xf32> to vector<24x128xf32>
      %15 = arith.addf %12, %14 : vector<24x128xf32>
      %cst_13 = arith.constant 0.000000e+00 : f32
      %16 = vector.broadcast %cst_13 : f32 to vector<24x128xf32>
      %17 = arith.maximumf %15, %16 : vector<24x128xf32>
      %18 = arith.truncf %17 : vector<24x128xf32> to vector<24x128xbf16>
      %c0_14 = arith.constant 0 : index
      %c0_15 = arith.constant 0 : index
      %19 = vector.load %arg6[%c0_14, %c0_15] : memref<24x128xbf16, #tpu.memory_space<vmem>>, vector<24x128xbf16>
      tpu.vector_store %arg6[%c0_14, %c0_15], %18 {strides = array<i32>} : memref<24x128xbf16, #tpu.memory_space<vmem>>, vector<24x128xbf16>,
    } else {
    }
    return
  }
  func.func @transform_0(%arg0: i32, %arg1: i32, %arg2: i32) -> (i32, i32) {
    %c0_i32 = arith.constant 0 : i32
    return %arg0, %arg2 : i32, i32
  }
  func.func @transform_1(%arg0: i32, %arg1: i32, %arg2: i32) -> (i32, i32) {
    %c0_i32 = arith.constant 0 : i32
    return %arg2, %arg1 : i32, i32
  }
  func.func @transform_2(%arg0: i32, %arg1: i32, %arg2: i32) -> (i32, i32) {
    %c0_i32 = arith.constant 0 : i32
    %c0_i32_0 = arith.constant 0 : i32
    return %c0_i32, %arg1 : i32, i32
  }
  func.func @transform_3(%arg0: i32, %arg1: i32, %arg2: i32) -> (i32, i32) {
    %c0_i32 = arith.constant 0 : i32
    return %arg0, %arg1 : i32, i32
  }
}

module attributes {stable_mosaic.version = 11 : i64} {
  func.func @_tiled_linear_kernel(%arg0: i32, %arg1: i32, %arg2: i32, %arg3: memref<8x128xbf16, #tpu.memory_space<vmem>>, %arg4: memref<128x128xbf16, #tpu.memory_space<vmem>>, %arg5: memref<1x128xf32, #tpu.memory_space<vmem>>, %arg6: memref<8x128xf32, #tpu.memory_space<vmem>>, %arg7: memref<8x128xf32, #tpu.memory_space<vmem>>) attributes {dimension_semantics = [#tpu.dimension_semantics<parallel>, #tpu.dimension_semantics<parallel>, #tpu.dimension_semantics<arbitrary>], iteration_bounds = array<i64: 1, 1, 1>, scalar_prefetch = 0 : i64, scratch_operands = 1 : i64, tpu.core_type = #tpu.core_type<tc>, window_params = [{transform_indices = @transform_0, window_bounds = array<i64: 8, 128>}, {transform_indices = @transform_1, window_bounds = array<i64: 128, 128>}, {transform_indices = @transform_2, window_bounds = array<i64: 1, 128>}, {transform_indices = @transform_3, window_bounds = array<i64: 8, 128>}]} {
    %c0_i32 = arith.constant 0 : i32
    %0 = arith.cmpi eq, %arg2, %c0_i32 : i32
    %1 = arith.extui %0 : i1 to i32
    %c0_i32_0 = arith.constant 0 : i32
    %2 = arith.cmpi ne, %1, %c0_i32_0 : i32
    scf.if %2 {
      %cst_10 = arith.constant 0.000000e+00 : f32
      %12 = vector.broadcast %cst_10 : f32 to vector<8x128xf32>
      %c0_11 = arith.constant 0 : index
      %c0_12 = arith.constant 0 : index
      %13 = vector.load %arg7[%c0_11, %c0_12] : memref<8x128xf32, #tpu.memory_space<vmem>>, vector<8x128xf32>
      tpu.vector_store %arg7[%c0_11, %c0_12], %12 {strides = array<i32>} : memref<8x128xf32, #tpu.memory_space<vmem>>, vector<8x128xf32>,
    } else {
    }
    %c0 = arith.constant 0 : index
    %c0_1 = arith.constant 0 : index
    %3 = vector.load %arg7[%c0, %c0_1] : memref<8x128xf32, #tpu.memory_space<vmem>>, vector<8x128xf32>
    %c0_2 = arith.constant 0 : index
    %c0_3 = arith.constant 0 : index
    %4 = vector.load %arg3[%c0_2, %c0_3] : memref<8x128xbf16, #tpu.memory_space<vmem>>, vector<8x128xbf16>
    %c0_4 = arith.constant 0 : index
    %c0_5 = arith.constant 0 : index
    %5 = vector.load %arg4[%c0_4, %c0_5] : memref<128x128xbf16, #tpu.memory_space<vmem>>, vector<128x128xbf16>
    %cst = arith.constant dense<0.000000e+00> : vector<8x128xf32>
    %6 = tpu.matmul %4, %5, %cst {dimension_numbers = #tpu.dot_dimension_numbers<[1], [0], [0], [1], [0, 0, 1, 1], [], []>} : vector<8x128xbf16>, vector<128x128xbf16>, vector<8x128xf32> -> vector<8x128xf32>
    %7 = arith.addf %3, %6 : vector<8x128xf32>
    %c0_6 = arith.constant 0 : index
    %c0_7 = arith.constant 0 : index
    %8 = vector.load %arg7[%c0_6, %c0_7] : memref<8x128xf32, #tpu.memory_space<vmem>>, vector<8x128xf32>
    tpu.vector_store %arg7[%c0_6, %c0_7], %7 {strides = array<i32>} : memref<8x128xf32, #tpu.memory_space<vmem>>, vector<8x128xf32>,
    %c0_i32_8 = arith.constant 0 : i32
    %9 = arith.cmpi eq, %arg2, %c0_i32_8 : i32
    %10 = arith.extui %9 : i1 to i32
    %c0_i32_9 = arith.constant 0 : i32
    %11 = arith.cmpi ne, %10, %c0_i32_9 : i32
    scf.if %11 {
      %c0_10 = arith.constant 0 : index
      %c0_11 = arith.constant 0 : index
      %12 = vector.load %arg7[%c0_10, %c0_11] : memref<8x128xf32, #tpu.memory_space<vmem>>, vector<8x128xf32>
      %c0_12 = arith.constant 0 : index
      %c0_13 = arith.constant 0 : index
      %13 = vector.load %arg5[%c0_12, %c0_13] : memref<1x128xf32, #tpu.memory_space<vmem>>, vector<1x128xf32>
      %14 = vector.broadcast %13 : vector<1x128xf32> to vector<8x128xf32>
      %15 = arith.addf %12, %14 : vector<8x128xf32>
      %c0_14 = arith.constant 0 : index
      %c0_15 = arith.constant 0 : index
      %16 = vector.load %arg6[%c0_14, %c0_15] : memref<8x128xf32, #tpu.memory_space<vmem>>, vector<8x128xf32>
      tpu.vector_store %arg6[%c0_14, %c0_15], %15 {strides = array<i32>} : memref<8x128xf32, #tpu.memory_space<vmem>>, vector<8x128xf32>,
    } else {
    }
    return
  }
  func.func @transform_0(%arg0: i32, %arg1: i32, %arg2: i32) -> (i32, i32) {
    %c0_i32 = arith.constant 0 : i32
    return %arg0, %arg2 : i32, i32
  }
  func.func @transform_1(%arg0: i32, %arg1: i32, %arg2: i32) -> (i32, i32) {
    %c0_i32 = arith.constant 0 : i32
    return %arg2, %arg1 : i32, i32
  }
  func.func @transform_2(%arg0: i32, %arg1: i32, %arg2: i32) -> (i32, i32) {
    %c0_i32 = arith.constant 0 : i32
    %c0_i32_0 = arith.constant 0 : i32
    return %c0_i32, %arg1 : i32, i32
  }
  func.func @transform_3(%arg0: i32, %arg1: i32, %arg2: i32) -> (i32, i32) {
    %c0_i32 = arith.constant 0 : i32
    return %arg0, %arg1 : i32, i32
  }
}

module attributes {stable_mosaic.version = 11 : i64} {
  func.func @_sin_rcnn_kernel(%arg0: i32, %arg1: memref<1x8x128xbf16, #tpu.memory_space<vmem>>, %arg2: memref<1x8x8xf32, #tpu.memory_space<vmem>>, %arg3: memref<1x1x128xf32, #tpu.memory_space<vmem>>, %arg4: memref<128x128xbf16, #tpu.memory_space<vmem>>, %arg5: memref<128x128xbf16, #tpu.memory_space<vmem>>, %arg6: memref<128x128xbf16, #tpu.memory_space<vmem>>, %arg7: memref<128x128xbf16, #tpu.memory_space<vmem>>, %arg8: memref<1x128xf32, #tpu.memory_space<vmem>>, %arg9: memref<1x8x128xf32, #tpu.memory_space<vmem>>) attributes {dimension_semantics = [#tpu.dimension_semantics<parallel>], iteration_bounds = array<i64: 2>, scalar_prefetch = 0 : i64, scratch_operands = 0 : i64, tpu.core_type = #tpu.core_type<tc>, window_params = [{transform_indices = @transform_0, window_bounds = array<i64: 1, 8, 128>}, {transform_indices = @transform_1, window_bounds = array<i64: 1, 8, 8>}, {transform_indices = @transform_2, window_bounds = array<i64: 1, 1, 128>}, {pipeline_mode = #tpu.pipeline_mode<synchronous>, transform_indices = @transform_3, window_bounds = array<i64: 128, 128>}, {pipeline_mode = #tpu.pipeline_mode<synchronous>, transform_indices = @transform_4, window_bounds = array<i64: 128, 128>}, {pipeline_mode = #tpu.pipeline_mode<synchronous>, transform_indices = @transform_5, window_bounds = array<i64: 128, 128>}, {pipeline_mode = #tpu.pipeline_mode<synchronous>, transform_indices = @transform_6, window_bounds = array<i64: 128, 128>}, {pipeline_mode = #tpu.pipeline_mode<synchronous>, transform_indices = @transform_7, window_bounds = array<i64: 1, 128>}, {transform_indices = @transform_8, window_bounds = array<i64: 1, 8, 128>}]} {
    %c0 = arith.constant 0 : index
    %c0_0 = arith.constant 0 : index
    %c0_1 = arith.constant 0 : index
    %0 = vector.load %arg1[%c0, %c0_0, %c0_1] : memref<1x8x128xbf16, #tpu.memory_space<vmem>>, vector<1x8x128xbf16>
    %1 = vector.shape_cast %0 : vector<1x8x128xbf16> to vector<8x128xbf16>
    %c0_2 = arith.constant 0 : index
    %c0_3 = arith.constant 0 : index
    %c0_4 = arith.constant 0 : index
    %2 = vector.load %arg2[%c0_2, %c0_3, %c0_4] : memref<1x8x8xf32, #tpu.memory_space<vmem>>, vector<1x8x8xf32>
    %3 = vector.shape_cast %2 : vector<1x8x8xf32> to vector<8x8xf32>
    %cst = arith.constant dense<0xFF800000> : vector<8xf32>
    %4 = vector.multi_reduction <maximumf>, %3, %cst [1] : vector<8x8xf32> to vector<8xf32>
    %5 = vector.shape_cast %4 : vector<8xf32> to vector<8x1xf32>
    %6 = vector.broadcast %5 : vector<8x1xf32> to vector<8x8xf32>
    %7 = arith.subf %3, %6 : vector<8x8xf32>
    %8 = math.exp %7 : vector<8x8xf32>
    %cst_5 = arith.constant dense<0.000000e+00> : vector<8xf32>
    %9 = vector.multi_reduction <add>, %8, %cst_5 [1] : vector<8x8xf32> to vector<8xf32>
    %10 = vector.shape_cast %9 : vector<8xf32> to vector<8x1xf32>
    %11 = vector.broadcast %10 : vector<8x1xf32> to vector<8x8xf32>
    %12 = arith.divf %8, %11 : vector<8x8xf32>
    %c0_6 = arith.constant 0 : index
    %c0_7 = arith.constant 0 : index
    %13 = vector.load %arg5[%c0_6, %c0_7] : memref<128x128xbf16, #tpu.memory_space<vmem>>, vector<128x128xbf16>
    %cst_8 = arith.constant dense<0.000000e+00> : vector<8x128xf32>
    %14 = tpu.matmul %1, %13, %cst_8 {dimension_numbers = #tpu.dot_dimension_numbers<[1], [0], [0], [1], [0, 0, 1, 1], [], []>} : vector<8x128xbf16>, vector<128x128xbf16>, vector<8x128xf32> -> vector<8x128xf32>
    %15 = arith.truncf %12 : vector<8x8xf32> to vector<8x8xbf16>
    %16 = arith.truncf %14 : vector<8x128xf32> to vector<8x128xbf16>
    %cst_9 = arith.constant dense<0.000000e+00> : vector<8x128xf32>
    %17 = tpu.matmul %15, %16, %cst_9 {dimension_numbers = #tpu.dot_dimension_numbers<[1], [0], [0], [1], [0, 0, 1, 1], [], []>} : vector<8x8xbf16>, vector<8x128xbf16>, vector<8x128xf32> -> vector<8x128xf32>
    %c0_10 = arith.constant 0 : index
    %c0_11 = arith.constant 0 : index
    %18 = vector.load %arg4[%c0_10, %c0_11] : memref<128x128xbf16, #tpu.memory_space<vmem>>, vector<128x128xbf16>
    %cst_12 = arith.constant dense<0.000000e+00> : vector<8x128xf32>
    %19 = tpu.matmul %1, %18, %cst_12 {dimension_numbers = #tpu.dot_dimension_numbers<[1], [0], [0], [1], [0, 0, 1, 1], [], []>} : vector<8x128xbf16>, vector<128x128xbf16>, vector<8x128xf32> -> vector<8x128xf32>
    %c0_13 = arith.constant 0 : index
    %c0_14 = arith.constant 0 : index
    %c0_15 = arith.constant 0 : index
    %20 = vector.load %arg3[%c0_13, %c0_14, %c0_15] : memref<1x1x128xf32, #tpu.memory_space<vmem>>, vector<1x1x128xf32>
    %21 = vector.shape_cast %20 : vector<1x1x128xf32> to vector<1x128xf32>
    %22 = vector.broadcast %21 : vector<1x128xf32> to vector<8x128xf32>
    %23 = arith.addf %19, %22 : vector<8x128xf32>
    %24 = arith.truncf %17 : vector<8x128xf32> to vector<8x128xbf16>
    %c0_16 = arith.constant 0 : index
    %c0_17 = arith.constant 0 : index
    %25 = vector.load %arg6[%c0_16, %c0_17] : memref<128x128xbf16, #tpu.memory_space<vmem>>, vector<128x128xbf16>
    %cst_18 = arith.constant dense<0.000000e+00> : vector<8x128xf32>
    %26 = tpu.matmul %24, %25, %cst_18 {dimension_numbers = #tpu.dot_dimension_numbers<[1], [0], [0], [1], [0, 0, 1, 1], [], []>} : vector<8x128xbf16>, vector<128x128xbf16>, vector<8x128xf32> -> vector<8x128xf32>
    %27 = arith.addf %23, %26 : vector<8x128xf32>
    %cst_19 = arith.constant 0.000000e+00 : f32
    %28 = vector.broadcast %cst_19 : f32 to vector<8x128xf32>
    %29 = arith.maximumf %27, %28 : vector<8x128xf32>
    %30 = arith.truncf %29 : vector<8x128xf32> to vector<8x128xbf16>
    %c0_20 = arith.constant 0 : index
    %c0_21 = arith.constant 0 : index
    %31 = vector.load %arg7[%c0_20, %c0_21] : memref<128x128xbf16, #tpu.memory_space<vmem>>, vector<128x128xbf16>
    %cst_22 = arith.constant dense<0.000000e+00> : vector<8x128xf32>
    %32 = tpu.matmul %30, %31, %cst_22 {dimension_numbers = #tpu.dot_dimension_numbers<[1], [0], [0], [1], [0, 0, 1, 1], [], []>} : vector<8x128xbf16>, vector<128x128xbf16>, vector<8x128xf32> -> vector<8x128xf32>
    %c0_23 = arith.constant 0 : index
    %c0_24 = arith.constant 0 : index
    %33 = vector.load %arg8[%c0_23, %c0_24] : memref<1x128xf32, #tpu.memory_space<vmem>>, vector<1x128xf32>
    %34 = vector.broadcast %33 : vector<1x128xf32> to vector<8x128xf32>
    %35 = arith.addf %32, %34 : vector<8x128xf32>
    %36 = tpu.iota {dimensions = array<i32: 1>} : vector<8x128xi32>
    %c4_i32 = arith.constant 4 : i32
    %37 = vector.broadcast %c4_i32 : i32 to vector<8x128xi32>
    %38 = arith.cmpi slt, %36, %37 : vector<8x128xi32>
    %cst_25 = arith.constant -1.000000e+30 : f32
    %39 = vector.broadcast %cst_25 : f32 to vector<8x128xf32>
    %40 = arith.select %38, %35, %39 : vector<8x128xi1>, vector<8x128xf32>
    %cst_26 = arith.constant dense<0xFF800000> : vector<8xf32>
    %41 = vector.multi_reduction <maximumf>, %40, %cst_26 [1] : vector<8x128xf32> to vector<8xf32>
    %42 = vector.shape_cast %41 : vector<8xf32> to vector<8x1xf32>
    %43 = vector.broadcast %42 : vector<8x1xf32> to vector<8x128xf32>
    %44 = arith.subf %40, %43 : vector<8x128xf32>
    %45 = math.exp %44 : vector<8x128xf32>
    %cst_27 = arith.constant 0.000000e+00 : f32
    %46 = vector.broadcast %cst_27 : f32 to vector<8x128xf32>
    %47 = arith.select %38, %45, %46 : vector<8x128xi1>, vector<8x128xf32>
    %cst_28 = arith.constant dense<0.000000e+00> : vector<8xf32>
    %48 = vector.multi_reduction <add>, %47, %cst_28 [1] : vector<8x128xf32> to vector<8xf32>
    %49 = vector.shape_cast %48 : vector<8xf32> to vector<8x1xf32>
    %50 = vector.broadcast %49 : vector<8x1xf32> to vector<8x128xf32>
    %51 = arith.divf %47, %50 : vector<8x128xf32>
    %52 = arith.select %38, %51, %35 : vector<8x128xi1>, vector<8x128xf32>
    %c0_29 = arith.constant 0 : index
    %c0_30 = arith.constant 0 : index
    %c0_31 = arith.constant 0 : index
    %53 = vector.load %arg9[%c0_29, %c0_30, %c0_31] : memref<1x8x128xf32, #tpu.memory_space<vmem>>, vector<1x8x128xf32>
    %54 = vector.shape_cast %53 : vector<1x8x128xf32> to vector<8x128xf32>
    %55 = vector.shape_cast %52 : vector<8x128xf32> to vector<1x8x128xf32>
    tpu.vector_store %arg9[%c0_29, %c0_30, %c0_31], %55 {strides = array<i32>} : memref<1x8x128xf32, #tpu.memory_space<vmem>>, vector<1x8x128xf32>,
    return
  }
  func.func @transform_0(%arg0: i32) -> (i32, i32, i32) {
    %c0_i32 = arith.constant 0 : i32
    %c0_i32_0 = arith.constant 0 : i32
    %c0_i32_1 = arith.constant 0 : i32
    return %arg0, %c0_i32, %c0_i32_0 : i32, i32, i32
  }
  func.func @transform_1(%arg0: i32) -> (i32, i32, i32) {
    %c0_i32 = arith.constant 0 : i32
    %c0_i32_0 = arith.constant 0 : i32
    %c0_i32_1 = arith.constant 0 : i32
    return %arg0, %c0_i32, %c0_i32_0 : i32, i32, i32
  }
  func.func @transform_2(%arg0: i32) -> (i32, i32, i32) {
    %c0_i32 = arith.constant 0 : i32
    %c0_i32_0 = arith.constant 0 : i32
    %c0_i32_1 = arith.constant 0 : i32
    return %arg0, %c0_i32, %c0_i32_0 : i32, i32, i32
  }
  func.func @transform_3(%arg0: i32) -> (i32, i32) {
    %c0_i32 = arith.constant 0 : i32
    %c0_i32_0 = arith.constant 0 : i32
    %c0_i32_1 = arith.constant 0 : i32
    return %c0_i32, %c0_i32_0 : i32, i32
  }
  func.func @transform_4(%arg0: i32) -> (i32, i32) {
    %c0_i32 = arith.constant 0 : i32
    %c0_i32_0 = arith.constant 0 : i32
    %c0_i32_1 = arith.constant 0 : i32
    return %c0_i32, %c0_i32_0 : i32, i32
  }
  func.func @transform_5(%arg0: i32) -> (i32, i32) {
    %c0_i32 = arith.constant 0 : i32
    %c0_i32_0 = arith.constant 0 : i32
    %c0_i32_1 = arith.constant 0 : i32
    return %c0_i32, %c0_i32_0 : i32, i32
  }
  func.func @transform_6(%arg0: i32) -> (i32, i32) {
    %c0_i32 = arith.constant 0 : i32
    %c0_i32_0 = arith.constant 0 : i32
    %c0_i32_1 = arith.constant 0 : i32
    return %c0_i32, %c0_i32_0 : i32, i32
  }
  func.func @transform_7(%arg0: i32) -> (i32, i32) {
    %c0_i32 = arith.constant 0 : i32
    %c0_i32_0 = arith.constant 0 : i32
    %c0_i32_1 = arith.constant 0 : i32
    return %c0_i32, %c0_i32_0 : i32, i32
  }
  func.func @transform_8(%arg0: i32) -> (i32, i32, i32) {
    %c0_i32 = arith.constant 0 : i32
    %c0_i32_0 = arith.constant 0 : i32
    %c0_i32_1 = arith.constant 0 : i32
    return %arg0, %c0_i32, %c0_i32_0 : i32, i32, i32
  }
}

</mosaic_0001>

<llo_original>
// kernel: faster_rcnn_forward.6
$region0: #{faster_rcnn_forward.6}
  #allocation0 [shape = 'u32[]', space=smem, size = 0x4, offset = 0x4, fixed_abs, tag = 'smem constant byte address 0x4 - core index']
  #allocation1 [shape = 'u32[144,128]{1,0:T(1,128)}', space=vmem, size = 0x12000, scoped, tag = 'internal scratch']
  #allocation2 [shape = 'f32[32,128]{1,0:T(8,128)}', space=vmem, size = 0x4000, scoped, tag = 'scratch operand']
  %s0 = inlined_call_operand.vmem [shape: bf16[32,768], index: 0, kind: input, shape index: {}]
  %s1 = inlined_call_operand.vmem [shape: bf16[768,128], index: 1, kind: input, shape index: {}]
  %s2 = inlined_call_operand.vmem [shape: f32[1,128], index: 2, kind: input, shape index: {}]
  %s3 = inlined_call_operand.vmem [shape: bf16[32,128], index: 3, kind: output, shape index: {}]
  %s4 = sld [smem:[#allocation0]]
  $region30: #{faster_rcnn_forward.6} parent=0
    _
  %s6 = ssub.s32 1, %s4
  %s7 = scalar_select 0, %s6, %s4
  // Predicated region
  $region2: #{faster_rcnn_forward.6} parent=0 // pred_check
    _
  $region3: #{faster_rcnn_forward.6} parent=0 // pred_check_branch
    %9 = sbr.rel (0) target = $region5
  $region4: #{faster_rcnn_forward.6} parent=0 // pred_region
    _
  $region5: #{faster_rcnn_forward.6} parent=0 // pred_fallthru
    _
  // Predicated region
  $region6: #{faster_rcnn_forward.6} parent=0 // pred_check
    _
  $region7: #{faster_rcnn_forward.6} parent=0 // pred_check_branch
    %11 = sbr.rel (0) target = $region9
  $region8: #{faster_rcnn_forward.6} parent=0 // pred_region
    _
  $region9: #{faster_rcnn_forward.6} parent=0 // pred_fallthru
    _
  // Predicated region
  $region10: #{faster_rcnn_forward.6} parent=0 // pred_check
    _
  $region11: #{faster_rcnn_forward.6} parent=0 // pred_check_branch
    %13 = sbr.rel (0) target = $region13
  $region12: #{faster_rcnn_forward.6} parent=0 // pred_region
    _
  $region13: #{faster_rcnn_forward.6} parent=0 // pred_fallthru
    _
  %p15 = scmp.eq.s32.totalorder 0, 0
  // Predicated region
  $region14: #{faster_rcnn_forward.6} parent=0 // pred_check
    %p16 = pneg %p15
  $region15: #{faster_rcnn_forward.6} parent=0 // pred_check_branch
    %18 = sbr.rel (%p16) target = $region17
  $region16: #{faster_rcnn_forward.6} parent=0 // pred_region
    %19 = vst [vmem:[#allocation2] sm:$0xff] 0.0
    %20 = vst [vmem:[#allocation2 + $0x8] sm:$0xff] 0.0
    %21 = vst [vmem:[#allocation2 + $0x10] sm:$0xff] 0.0
    %22 = vst [vmem:[#allocation2 + $0x18] sm:$0xff] 0.0
  $region17: #{faster_rcnn_forward.6} parent=0 // pred_fallthru
    _
  %v23 = vld [vmem:[#allocation2] sm:$0xff]
  %v24 = vld [vmem:[#allocation2 + $0x8] sm:$0xff]
  %v25 = vld [vmem:[#allocation2 + $0x10] sm:$0xff]
  %v26 = vld [vmem:[#allocation2 + $0x18] sm:$0xff]
  %v27 = vld [vmem:[%s0] sm:$0xff]
  %v28 = vld [vmem:[%s0 + $0x8] sm:$0xff]
  %v29 = vld [vmem:[%s0 + $0x10] sm:$0xff]
  %v30 = vld [vmem:[%s0 + $0x18] sm:$0xff]
  %v31 = vld [vmem:[%s0 + $0x20] sm:$0xff]
  %v32 = vld [vmem:[%s0 + $0x28] sm:$0xff]
  %v33 = vld [vmem:[%s0 + $0x30] sm:$0xff]
  %v34 = vld [vmem:[%s0 + $0x38] sm:$0xff]
  %v35 = vld [vmem:[%s0 + $0x40] sm:$0xff]
  %v36 = vld [vmem:[%s0 + $0x48] sm:$0xff]
  %v37 = vld [vmem:[%s0 + $0x50] sm:$0xff]
  %v38 = vld [vmem:[%s0 + $0x58] sm:$0xff]
  %v39 = vld [vmem:[%s1] sm:$0xf]
  %v40 = vld [vmem:[%s1 + $0x4] sm:$0xf]
  %v41 = vld [vmem:[%s1 + $0x8] sm:$0xf]
  %v42 = vld [vmem:[%s1 + $0xc] sm:$0xf]
  %v43 = vld [vmem:[%s1 + $0x10] sm:$0xf]
  %v44 = vld [vmem:[%s1 + $0x14] sm:$0xf]
  %v45 = vld [vmem:[%s1 + $0x18] sm:$0xf]
  %v46 = vld [vmem:[%s1 + $0x1c] sm:$0xf]
  %v47 = vld [vmem:[%s1 + $0x20] sm:$0xf]
  %v48 = vld [vmem:[%s1 + $0x24] sm:$0xf]
  %v49 = vld [vmem:[%s1 + $0x28] sm:$0xf]
  %v50 = vld [vmem:[%s1 + $0x2c] sm:$0xf]
  %v51 = vld [vmem:[%s1 + $0x30] sm:$0xf]
  %v52 = vld [vmem:[%s1 + $0x34] sm:$0xf]
  %v53 = vld [vmem:[%s1 + $0x38] sm:$0xf]
  %v54 = vld [vmem:[%s1 + $0x3c] sm:$0xf]
  %v55 = vld [vmem:[%s1 + $0x40] sm:$0xf]
  %v56 = vld [vmem:[%s1 + $0x44] sm:$0xf]
  %v57 = vld [vmem:[%s1 + $0x48] sm:$0xf]
  %v58 = vld [vmem:[%s1 + $0x4c] sm:$0xf]
  %v59 = vld [vmem:[%s1 + $0x50] sm:$0xf]
  %v60 = vld [vmem:[%s1 + $0x54] sm:$0xf]
  %v61 = vld [vmem:[%s1 + $0x58] sm:$0xf]
  %v62 = vld [vmem:[%s1 + $0x5c] sm:$0xf]
  %v63 = vld [vmem:[%s1 + $0x60] sm:$0xf]
  %v64 = vld [vmem:[%s1 + $0x64] sm:$0xf]
  %v65 = vld [vmem:[%s1 + $0x68] sm:$0xf]
  %v66 = vld [vmem:[%s1 + $0x6c] sm:$0xf]
  %v67 = vld [vmem:[%s1 + $0x70] sm:$0xf]
  %v68 = vld [vmem:[%s1 + $0x74] sm:$0xf]
  %v69 = vld [vmem:[%s1 + $0x78] sm:$0xf]
  %v70 = vld [vmem:[%s1 + $0x7c] sm:$0xf]
  %v71 = vld [vmem:[%s1 + $0x80] sm:$0xf]
  %v72 = vld [vmem:[%s1 + $0x84] sm:$0xf]
  %v73 = vld [vmem:[%s1 + $0x88] sm:$0xf]
  %v74 = vld [vmem:[%s1 + $0x8c] sm:$0xf]
  %v75 = vld [vmem:[%s1 + $0x90] sm:$0xf]
  %v76 = vld [vmem:[%s1 + $0x94] sm:$0xf]
  %v77 = vld [vmem:[%s1 + $0x98] sm:$0xf]
  %v78 = vld [vmem:[%s1 + $0x9c] sm:$0xf]
  %v79 = vld [vmem:[%s1 + $0xa0] sm:$0xf]
  %v80 = vld [vmem:[%s1 + $0xa4] sm:$0xf]
  %v81 = vld [vmem:[%s1 + $0xa8] sm:$0xf]
  %v82 = vld [vmem:[%s1 + $0xac] sm:$0xf]
  %v83 = vld [vmem:[%s1 + $0xb0] sm:$0xf]
  %v84 = vld [vmem:[%s1 + $0xb4] sm:$0xf]
  %v85 = vld [vmem:[%s1 + $0xb8] sm:$0xf]
  %v86 = vld [vmem:[%s1 + $0xbc] sm:$0xf]
  %v87 = vld [vmem:[%s1 + $0xc0] sm:$0xf]
  %v88 = vld [vmem:[%s1 + $0xc4] sm:$0xf]
  %v89 = vld [vmem:[%s1 + $0xc8] sm:$0xf]
  %v90 = vld [vmem:[%s1 + $0xcc] sm:$0xf]
  %v91 = vld [vmem:[%s1 + $0xd0] sm:$0xf]
  %v92 = vld [vmem:[%s1 + $0xd4] sm:$0xf]
  %v93 = vld [vmem:[%s1 + $0xd8] sm:$0xf]
  %v94 = vld [vmem:[%s1 + $0xdc] sm:$0xf]
  %v95 = vld [vmem:[%s1 + $0xe0] sm:$0xf]
  %v96 = vld [vmem:[%s1 + $0xe4] sm:$0xf]
  %v97 = vld [vmem:[%s1 + $0xe8] sm:$0xf]
  %v98 = vld [vmem:[%s1 + $0xec] sm:$0xf]
  %v99 = vld [vmem:[%s1 + $0xf0] sm:$0xf]
  %v100 = vld [vmem:[%s1 + $0xf4] sm:$0xf]
  %v101 = vld [vmem:[%s1 + $0xf8] sm:$0xf]
  %v102 = vld [vmem:[%s1 + $0xfc] sm:$0xf]
  %v103 = vld [vmem:[%s1 + $0x100] sm:$0xf]
  %v104 = vld [vmem:[%s1 + $0x104] sm:$0xf]
  %v105 = vld [vmem:[%s1 + $0x108] sm:$0xf]
  %v106 = vld [vmem:[%s1 + $0x10c] sm:$0xf]
  %v107 = vld [vmem:[%s1 + $0x110] sm:$0xf]
  %v108 = vld [vmem:[%s1 + $0x114] sm:$0xf]
  %v109 = vld [vmem:[%s1 + $0x118] sm:$0xf]
  %v110 = vld [vmem:[%s1 + $0x11c] sm:$0xf]
  %v111 = vld [vmem:[%s1 + $0x120] sm:$0xf]
  %v112 = vld [vmem:[%s1 + $0x124] sm:$0xf]
  %v113 = vld [vmem:[%s1 + $0x128] sm:$0xf]
  %v114 = vld [vmem:[%s1 + $0x12c] sm:$0xf]
  %v115 = vld [vmem:[%s1 + $0x130] sm:$0xf]
  %v116 = vld [vmem:[%s1 + $0x134] sm:$0xf]
  %v117 = vld [vmem:[%s1 + $0x138] sm:$0xf]
  %v118 = vld [vmem:[%s1 + $0x13c] sm:$0xf]
  %v119 = vld [vmem:[%s1 + $0x140] sm:$0xf]
  %v120 = vld [vmem:[%s1 + $0x144] sm:$0xf]
  %v121 = vld [vmem:[%s1 + $0x148] sm:$0xf]
  %v122 = vld [vmem:[%s1 + $0x14c] sm:$0xf]
  %v123 = vld [vmem:[%s1 + $0x150] sm:$0xf]
  %v124 = vld [vmem:[%s1 + $0x154] sm:$0xf]
  %v125 = vld [vmem:[%s1 + $0x158] sm:$0xf]
  %v126 = vld [vmem:[%s1 + $0x15c] sm:$0xf]
  %v127 = vld [vmem:[%s1 + $0x160] sm:$0xf]
  %v128 = vld [vmem:[%s1 + $0x164] sm:$0xf]
  %v129 = vld [vmem:[%s1 + $0x168] sm:$0xf]
  %v130 = vld [vmem:[%s1 + $0x16c] sm:$0xf]
  %v131 = vld [vmem:[%s1 + $0x170] sm:$0xf]
  %v132 = vld [vmem:[%s1 + $0x174] sm:$0xf]
  %v133 = vld [vmem:[%s1 + $0x178] sm:$0xf]
  %v134 = vld [vmem:[%s1 + $0x17c] sm:$0xf]
  %v147 = vunpack.c.l.b16 %v27
  %v148 = vunpack.c.h.b16 %v27
  %v149 = vunpack.c.l.b16 %v28
  %v150 = vunpack.c.h.b16 %v28
  %v151 = vunpack.c.l.b16 %v29
  %v152 = vunpack.c.h.b16 %v29
  %v153 = vunpack.c.l.b16 %v30
  %v154 = vunpack.c.h.b16 %v30
  %v155 = vunpack.c.l.b16 %v31
  %v156 = vunpack.c.h.b16 %v31
  %v157 = vunpack.c.l.b16 %v32
  %v158 = vunpack.c.h.b16 %v32
  %v159 = vunpack.c.l.b16 %v33
  %v160 = vunpack.c.h.b16 %v33
  %v161 = vunpack.c.l.b16 %v34
  %v162 = vunpack.c.h.b16 %v34
  %v163 = vunpack.c.l.b16 %v35
  %v164 = vunpack.c.h.b16 %v35
  %v165 = vunpack.c.l.b16 %v36
  %v166 = vunpack.c.h.b16 %v36
  %v167 = vunpack.c.l.b16 %v37
  %v168 = vunpack.c.h.b16 %v37
  %v169 = vunpack.c.l.b16 %v38
  %v170 = vunpack.c.h.b16 %v38
  %v171 = vpack.c.b16 %v153, %v147
  %v172 = vpack.c.b16 %v154, %v148
  %v173 = vpack.c.b16 %v155, %v149
  %v174 = vpack.c.b16 %v156, %v150
  %v175 = vpack.c.b16 %v157, %v151
  %v176 = vpack.c.b16 %v158, %v152
  %v177 = vpack.c.b16 %v165, %v159
  %v178 = vpack.c.b16 %v166, %v160
  %v179 = vpack.c.b16 %v167, %v161
  %v180 = vpack.c.b16 %v168, %v162
  %v181 = vpack.c.b16 %v169, %v163
  %v182 = vpack.c.b16 %v170, %v164
  %v291 = vunpack.c.l.b16 %v39
  %v292 = vunpack.c.l.b16 %v40
  %v293 = vunpack.c.l.b16 %v41
  %v294 = vunpack.c.l.b16 %v42
  %v295 = vunpack.c.l.b16 %v43
  %v296 = vunpack.c.l.b16 %v44
  %v297 = vunpack.c.l.b16 %v45
  %v298 = vunpack.c.l.b16 %v46
  %v299 = vunpack.c.l.b16 %v47
  %v300 = vunpack.c.l.b16 %v48
  %v301 = vunpack.c.l.b16 %v49
  %v302 = vunpack.c.l.b16 %v50
  %v303 = vunpack.c.l.b16 %v51
  %v304 = vunpack.c.l.b16 %v52
  %v305 = vunpack.c.l.b16 %v53
  %v306 = vunpack.c.l.b16 %v54
  %v307 = vunpack.c.l.b16 %v55
  %v308 = vunpack.c.l.b16 %v56
  %v309 = vunpack.c.l.b16 %v57
  %v310 = vunpack.c.l.b16 %v58
  %v311 = vunpack.c.l.b16 %v59
  %v312 = vunpack.c.l.b16 %v60
  %v313 = vunpack.c.l.b16 %v61
  %v314 = vunpack.c.l.b16 %v62
  %v315 = vunpack.c.l.b16 %v63
  %v316 = vunpack.c.l.b16 %v64
  %v317 = vunpack.c.l.b16 %v65
  %v318 = vunpack.c.l.b16 %v66
  %v319 = vunpack.c.l.b16 %v67
  %v320 = vunpack.c.l.b16 %v68
  %v321 = vunpack.c.l.b16 %v69
  %v322 = vunpack.c.l.b16 %v70
  %v323 = vunpack.c.l.b16 %v71
  %v324 = vunpack.c.l.b16 %v72
  %v325 = vunpack.c.l.b16 %v73
  %v326 = vunpack.c.l.b16 %v74
  %v327 = vunpack.c.l.b16 %v75
  %v328 = vunpack.c.l.b16 %v76
  %v329 = vunpack.c.l.b16 %v77
  %v330 = vunpack.c.l.b16 %v78
  %v331 = vunpack.c.l.b16 %v79
  %v332 = vunpack.c.l.b16 %v80
  %v333 = vunpack.c.l.b16 %v81
  %v334 = vunpack.c.l.b16 %v82
  %v335 = vunpack.c.l.b16 %v83
  %v336 = vunpack.c.l.b16 %v84
  %v337 = vunpack.c.l.b16 %v85
  %v338 = vunpack.c.l.b16 %v86
  %v339 = vunpack.c.l.b16 %v87
  %v340 = vunpack.c.l.b16 %v88
  %v341 = vunpack.c.l.b16 %v89
  %v342 = vunpack.c.l.b16 %v90
  %v343 = vunpack.c.l.b16 %v91
  %v344 = vunpack.c.l.b16 %v92
  %v345 = vunpack.c.l.b16 %v93
  %v346 = vunpack.c.l.b16 %v94
  %v347 = vunpack.c.l.b16 %v95
  %v348 = vunpack.c.l.b16 %v96
  %v349 = vunpack.c.l.b16 %v97
  %v350 = vunpack.c.l.b16 %v98
  %v351 = vunpack.c.l.b16 %v99
  %v352 = vunpack.c.l.b16 %v100
  %v353 = vunpack.c.l.b16 %v101
  %v354 = vunpack.c.l.b16 %v102
  %v355 = vunpack.c.l.b16 %v103
  %v356 = vunpack.c.l.b16 %v104
  %v357 = vunpack.c.l.b16 %v105
  %v358 = vunpack.c.l.b16 %v106
  %v359 = vunpack.c.l.b16 %v107
  %v360 = vunpack.c.l.b16 %v108
  %v361 = vunpack.c.l.b16 %v109
  %v362 = vunpack.c.l.b16 %v110
  %v363 = vunpack.c.l.b16 %v111
  %v364 = vunpack.c.l.b16 %v112
  %v365 = vunpack.c.l.b16 %v113
  %v366 = vunpack.c.l.b16 %v114
  %v367 = vunpack.c.l.b16 %v115
  %v368 = vunpack.c.l.b16 %v116
  %v369 = vunpack.c.l.b16 %v117
  %v370 = vunpack.c.l.b16 %v118
  %v371 = vunpack.c.l.b16 %v119
  %v372 = vunpack.c.l.b16 %v120
  %v373 = vunpack.c.l.b16 %v121
  %v374 = vunpack.c.l.b16 %v122
  %v375 = vunpack.c.l.b16 %v123
  %v376 = vunpack.c.l.b16 %v124
  %v377 = vunpack.c.l.b16 %v125
  %v378 = vunpack.c.l.b16 %v126
  %v379 = vunpack.c.l.b16 %v127
  %v380 = vunpack.c.l.b16 %v128
  %v381 = vunpack.c.l.b16 %v129
  %v382 = vunpack.c.l.b16 %v130
  %v383 = vunpack.c.l.b16 %v131
  %v384 = vunpack.c.l.b16 %v132
  %v385 = vunpack.c.l.b16 %v133
  %v386 = vunpack.c.l.b16 %v134
  %v387 = vpack.c.b16 %v292, %v291
  %v388 = vpack.c.b16 %v294, %v293
  %v389 = vpack.c.b16 %v296, %v295
  %v390 = vpack.c.b16 %v298, %v297
  %v391 = vpack.c.b16 %v300, %v299
  %v392 = vpack.c.b16 %v302, %v301
  %v393 = vpack.c.b16 %v304, %v303
  %v394 = vpack.c.b16 %v306, %v305
  %v395 = vpack.c.b16 %v308, %v307
  %v396 = vpack.c.b16 %v310, %v309
  %v397 = vpack.c.b16 %v312, %v311
  %v398 = vpack.c.b16 %v314, %v313
  %v399 = vpack.c.b16 %v316, %v315
  %v400 = vpack.c.b16 %v318, %v317
  %v401 = vpack.c.b16 %v320, %v319
  %v402 = vpack.c.b16 %v322, %v321
  %v403 = vpack.c.b16 %v324, %v323
  %v404 = vpack.c.b16 %v326, %v325
  %v405 = vpack.c.b16 %v328, %v327
  %v406 = vpack.c.b16 %v330, %v329
  %v407 = vpack.c.b16 %v332, %v331
  %v408 = vpack.c.b16 %v334, %v333
  %v409 = vpack.c.b16 %v336, %v335
  %v410 = vpack.c.b16 %v338, %v337
  %v411 = vpack.c.b16 %v340, %v339
  %v412 = vpack.c.b16 %v342, %v341
  %v413 = vpack.c.b16 %v344, %v343
  %v414 = vpack.c.b16 %v346, %v345
  %v415 = vpack.c.b16 %v348, %v347
  %v416 = vpack.c.b16 %v350, %v349
  %v417 = vpack.c.b16 %v352, %v351
  %v418 = vpack.c.b16 %v354, %v353
  %v419 = vpack.c.b16 %v356, %v355
  %v420 = vpack.c.b16 %v358, %v357
  %v421 = vpack.c.b16 %v360, %v359
  %v422 = vpack.c.b16 %v362, %v361
  %v423 = vpack.c.b16 %v364, %v363
  %v424 = vpack.c.b16 %v366, %v365
  %v425 = vpack.c.b16 %v368, %v367
  %v426 = vpack.c.b16 %v370, %v369
  %v427 = vpack.c.b16 %v372, %v371
  %v428 = vpack.c.b16 %v374, %v373
  %v429 = vpack.c.b16 %v376, %v375
  %v430 = vpack.c.b16 %v378, %v377
  %v431 = vpack.c.b16 %v380, %v379
  %v432 = vpack.c.b16 %v382, %v381
  %v433 = vpack.c.b16 %v384, %v383
  %v434 = vpack.c.b16 %v386, %v385
  %483 = vmatprep.subr.bf16.mxu0 0
  %484 = vmatpush1.bf16.msra.mxu0 %v387
  %485 = vmatprep.subr.bf16.mxu0 0
  %486 = vmatpush1.bf16.msra.mxu0 %v388
  %487 = vmatprep.subr.bf16.mxu0 0
  %488 = vmatpush1.bf16.msra.mxu0 %v389
  %489 = vmatprep.subr.bf16.mxu0 0
  %490 = vmatpush1.bf16.msra.mxu0 %v390
  %491 = vmatprep.subr.bf16.mxu0 0
  %492 = vmatpush1.bf16.msra.mxu0 %v391
  %493 = vmatprep.subr.bf16.mxu0 0
  %494 = vmatpush1.bf16.msra.mxu0 %v392
  %495 = vmatprep.subr.bf16.mxu0 0
  %496 = vmatpush1.bf16.msra.mxu0 %v393
  %497 = vmatprep.subr.bf16.mxu0 0
  %498 = vmatpush1.bf16.msra.mxu0 %v394
  %499 = vmatprep.subr.bf16.mxu0 0
  %500 = vmatpush1.bf16.msra.mxu0 %v395
  %501 = vmatprep.subr.bf16.mxu0 0
  %502 = vmatpush1.bf16.msra.mxu0 %v396
  %503 = vmatprep.subr.bf16.mxu0 0
  %504 = vmatpush1.bf16.msra.mxu0 %v397
  %505 = vmatprep.subr.bf16.mxu0 0
  %506 = vmatpush1.bf16.msra.mxu0 %v398
  %507 = vmatprep.subr.bf16.mxu0 0
  %508 = vmatpush1.bf16.msra.mxu0 %v399
  %509 = vmatprep.subr.bf16.mxu0 0
  %510 = vmatpush1.bf16.msra.mxu0 %v400
  %511 = vmatprep.subr.bf16.mxu0 0
  %512 = vmatpush1.bf16.msra.mxu0 %v401
  %513 = vmatprep.subr.bf16.mxu0 0
  %514 = vmatpush1.bf16.msra.mxu0 %v402
  %515 = vmatprep.mubr.bf16.mxu0 %v172
  %516 = vmatmul.mubr.bf16.gmra.mrb[0].mxu0 %v171
  %v517 = vpop.f32.mrb[0].mxu0
  %v518 = vadd.f32 0.0, %v517
  %v519 = vpop.f32.mrb[0].mxu0
  %v520 = vpop.f32.mrb[0].mxu0
  %v521 = vadd.f32 0.0, %v520
  %v522 = vpop.f32.mrb[0].mxu0
  %523 = vmatprep.mubr.bf16.mxu0 %v178
  %524 = vmatmul.mubr.bf16.gmra.mrb[0].mxu0 %v177
  %v525 = vpop.f32.mrb[0].mxu0
  %v526 = vadd.f32 0.0, %v525
  %v527 = vpop.f32.mrb[0].mxu0
  %v528 = vpop.f32.mrb[0].mxu0
  %v529 = vadd.f32 0.0, %v528
  %v530 = vpop.f32.mrb[0].mxu0
  %531 = vdwg.mxu0
  %532 = vmatprep.subr.bf16.mxu0 0
  %533 = vmatpush1.bf16.msra.mxu0 %v403
  %534 = vmatprep.subr.bf16.mxu0 0
  %535 = vmatpush1.bf16.msra.mxu0 %v404
  %536 = vmatprep.subr.bf16.mxu0 0
  %537 = vmatpush1.bf16.msra.mxu0 %v405
  %538 = vmatprep.subr.bf16.mxu0 0
  %539 = vmatpush1.bf16.msra.mxu0 %v406
  %540 = vmatprep.subr.bf16.mxu0 0
  %541 = vmatpush1.bf16.msra.mxu0 %v407
  %542 = vmatprep.subr.bf16.mxu0 0
  %543 = vmatpush1.bf16.msra.mxu0 %v408
  %544 = vmatprep.subr.bf16.mxu0 0
  %545 = vmatpush1.bf16.msra.mxu0 %v409
  %546 = vmatprep.subr.bf16.mxu0 0
  %547 = vmatpush1.bf16.msra.mxu0 %v410
  %548 = vmatprep.subr.bf16.mxu0 0
  %549 = vmatpush1.bf16.msra.mxu0 %v411
  %550 = vmatprep.subr.bf16.mxu0 0
  %551 = vmatpush1.bf16.msra.mxu0 %v412
  %552 = vmatprep.subr.bf16.mxu0 0
  %553 = vmatpush1.bf16.msra.mxu0 %v413
  %554 = vmatprep.subr.bf16.mxu0 0
  %555 = vmatpush1.bf16.msra.mxu0 %v414
  %556 = vmatprep.subr.bf16.mxu0 0
  %557 = vmatpush1.bf16.msra.mxu0 %v415
  %558 = vmatprep.subr.bf16.mxu0 0
  %559 = vmatpush1.bf16.msra.mxu0 %v416
  %560 = vmatprep.subr.bf16.mxu0 0
  %561 = vmatpush1.bf16.msra.mxu0 %v417
  %562 = vmatprep.subr.bf16.mxu0 0
  %563 = vmatpush1.bf16.msra.mxu0 %v418
  %564 = vmatprep.mubr.bf16.mxu0 %v174
  %565 = vmatmul.mubr.bf16.gmra.mrb[0].mxu0 %v173
  %v566 = vpop.f32.mrb[0].mxu0
  %v567 = vadd.f32 %v518, %v566
  %v568 = vpop.f32.mrb[0].mxu0
  %v569 = vpop.f32.mrb[0].mxu0
  %v570 = vadd.f32 %v521, %v569
  %v571 = vpop.f32.mrb[0].mxu0
  %572 = vmatprep.mubr.bf16.mxu0 %v180
  %573 = vmatmul.mubr.bf16.gmra.mrb[0].mxu0 %v179
  %v574 = vpop.f32.mrb[0].mxu0
  %v575 = vadd.f32 %v526, %v574
  %v576 = vpop.f32.mrb[0].mxu0
  %v577 = vpop.f32.mrb[0].mxu0
  %v578 = vadd.f32 %v529, %v577
  %v579 = vpop.f32.mrb[0].mxu0
  %580 = vdwg.mxu0
  %581 = vmatprep.subr.bf16.mxu0 0
  %582 = vmatpush1.bf16.msra.mxu0 %v419
  %583 = vmatprep.subr.bf16.mxu0 0
  %584 = vmatpush1.bf16.msra.mxu0 %v420
  %585 = vmatprep.subr.bf16.mxu0 0
  %586 = vmatpush1.bf16.msra.mxu0 %v421
  %587 = vmatprep.subr.bf16.mxu0 0
  %588 = vmatpush1.bf16.msra.mxu0 %v422
  %589 = vmatprep.subr.bf16.mxu0 0
  %590 = vmatpush1.bf16.msra.mxu0 %v423
  %591 = vmatprep.subr.bf16.mxu0 0
  %592 = vmatpush1.bf16.msra.mxu0 %v424
  %593 = vmatprep.subr.bf16.mxu0 0
  %594 = vmatpush1.bf16.msra.mxu0 %v425
  %595 = vmatprep.subr.bf16.mxu0 0
  %596 = vmatpush1.bf16.msra.mxu0 %v426
  %597 = vmatprep.subr.bf16.mxu0 0
  %598 = vmatpush1.bf16.msra.mxu0 %v427
  %599 = vmatprep.subr.bf16.mxu0 0
  %600 = vmatpush1.bf16.msra.mxu0 %v428
  %601 = vmatprep.subr.bf16.mxu0 0
  %602 = vmatpush1.bf16.msra.mxu0 %v429
  %603 = vmatprep.subr.bf16.mxu0 0
  %604 = vmatpush1.bf16.msra.mxu0 %v430
  %605 = vmatprep.subr.bf16.mxu0 0
  %606 = vmatpush1.bf16.msra.mxu0 %v431
  %607 = vmatprep.subr.bf16.mxu0 0
  %608 = vmatpush1.bf16.msra.mxu0 %v432
  %609 = vmatprep.subr.bf16.mxu0 0
  %610 = vmatpush1.bf16.msra.mxu0 %v433
  %611 = vmatprep.subr.bf16.mxu0 0
  %612 = vmatpush1.bf16.msra.mxu0 %v434
  %613 = vmatprep.mubr.bf16.mxu0 %v176
  %614 = vmatmul.mubr.bf16.gmra.mrb[0].mxu0 %v175
  %v615 = vpop.f32.mrb[0].mxu0
  %v616 = vadd.f32 %v567, %v615
  %v617 = vpop.f32.mrb[0].mxu0
  %v618 = vpop.f32.mrb[0].mxu0
  %v619 = vadd.f32 %v570, %v618
  %v620 = vpop.f32.mrb[0].mxu0
  %621 = vmatprep.mubr.bf16.mxu0 %v182
  %622 = vmatmul.mubr.bf16.gmra.mrb[0].mxu0 %v181
  %v623 = vpop.f32.mrb[0].mxu0
  %v624 = vadd.f32 %v575, %v623
  %v625 = vpop.f32.mrb[0].mxu0
  %v626 = vpop.f32.mrb[0].mxu0
  %v627 = vadd.f32 %v578, %v626
  %v628 = vpop.f32.mrb[0].mxu0
  %629 = vdwg.mxu0
  %v630 = vadd.f32 %v23, %v616
  %v631 = vadd.f32 %v24, %v619
  %v632 = vadd.f32 %v25, %v624
  %v633 = vadd.f32 %v26, %v627
  %634 = vst [vmem:[#allocation2] sm:$0xff] %v630
  %635 = vst [vmem:[#allocation2 + $0x8] sm:$0xff] %v631
  %636 = vst [vmem:[#allocation2 + $0x10] sm:$0xff] %v632
  %637 = vst [vmem:[#allocation2 + $0x18] sm:$0xff] %v633
  // Predicated region
  $region18: #{faster_rcnn_forward.6} parent=0 // pred_check
    %p638 = pneg %p15
  $region19: #{faster_rcnn_forward.6} parent=0 // pred_check_branch
    %640 = sbr.rel (%p638) target = $region21
  $region20: #{faster_rcnn_forward.6} parent=0 // pred_region
    %v641 = vld [vmem:[#allocation2] sm:$0xff]
    %v642 = vld [vmem:[#allocation2 + $0x8] sm:$0xff]
    %v643 = vld [vmem:[#allocation2 + $0x10] sm:$0xff]
    %v644 = vld [vmem:[#allocation2 + $0x18] sm:$0xff]
    %v645 = vld [vmem:[%s2] sm:$0x1]
    %v647 = vlaneseq
    %v648 = vshrl.u32 %v647, 7
    %v649 = vsub.s32 0, %v648
    %v650 = vrot.slane %v645, %v649
    %v652 = vadd.f32 %v641, %v650
    %v653 = vadd.f32 %v642, %v650
    %v654 = vadd.f32 %v643, %v650
    %v655 = vadd.f32 %v644, %v650
    %v656 = vmax.f32 %v652, 0.0
    %v657 = vmax.f32 %v653, 0.0
    %v658 = vmax.f32 %v654, 0.0
    %v659 = vmax.f32 %v655, 0.0
    %v660 = vpack.c.bf16 %v657, %v656
    %v661 = vpack.c.bf16 %v659, %v658
    %v664 = vunpack.c.l.b16 %v660
    %v665 = vunpack.c.h.b16 %v660
    %v666 = vunpack.c.l.b16 %v661
    %v667 = vunpack.c.h.b16 %v661
    %v668 = vpack.c.b16 %v664, %v664
    %v669 = vpack.c.b16 %v665, %v665
    %v670 = vpack.c.b16 %v666, %v666
    %v671 = vpack.c.b16 %v667, %v667
    %676 = vst [vmem:[%s3] sm:$0xf] %v668
    %677 = vst [vmem:[%s3 + $0x4] sm:$0xf] %v669
    %678 = vst [vmem:[%s3 + $0x8] sm:$0xf] %v670
    %679 = vst [vmem:[%s3 + $0xc] sm:$0xf] %v671
  $region21: #{faster_rcnn_forward.6} parent=0 // pred_fallthru
    _
  // Predicated region
  $region22: #{faster_rcnn_forward.6} parent=0 // pred_check
    _
  $region23: #{faster_rcnn_forward.6} parent=0 // pred_check_branch
    %681 = sbr.rel (0) target = $region25
  $region24: #{faster_rcnn_forward.6} parent=0 // pred_region
    _
  $region25: #{faster_rcnn_forward.6} parent=0 // pred_fallthru
    _
  // Predicated region
  $region26: #{faster_rcnn_forward.6} parent=0 // pred_check
    _
  $region27: #{faster_rcnn_forward.6} parent=0 // pred_check_branch
    %683 = sbr.rel (0) target = $region29
  $region28: #{faster_rcnn_forward.6} parent=0 // pred_region
    _
  $region29: #{faster_rcnn_forward.6} parent=0 // pred_fallthru
    _

// kernel: faster_rcnn_forward.7
$region0: #{faster_rcnn_forward.7}
  #allocation0 [shape = 'u32[]', space=smem, size = 0x4, offset = 0x4, fixed_abs, tag = 'smem constant byte address 0x4 - core index']
  #allocation1 [shape = 'u32[144,128]{1,0:T(1,128)}', space=vmem, size = 0x12000, scoped, tag = 'internal scratch']
  #allocation2 [shape = 'f32[32,128]{1,0:T(8,128)}', space=vmem, size = 0x4000, scoped, tag = 'scratch operand']
  %s0 = inlined_call_operand.vmem [shape: bf16[32,640], index: 0, kind: input, shape index: {}]
  %s1 = inlined_call_operand.vmem [shape: bf16[640,128], index: 1, kind: input, shape index: {}]
  %s2 = inlined_call_operand.vmem [shape: f32[1,128], index: 2, kind: input, shape index: {}]
  %s3 = inlined_call_operand.vmem [shape: bf16[128,128], index: 3, kind: input, shape index: {}]
  %s4 = inlined_call_operand.vmem [shape: f32[1,128], index: 4, kind: input, shape index: {}]
  %s5 = inlined_call_operand.vmem [shape: f32[32,128], index: 5, kind: output, shape index: {}]
  %s6 = sld [smem:[#allocation0]]
  $region38: #{faster_rcnn_forward.7} parent=0
    _
  %s8 = ssub.s32 1, %s6
  %s9 = scalar_select 0, %s8, %s6
  // Predicated region
  $region2: #{faster_rcnn_forward.7} parent=0 // pred_check
    _
  $region3: #{faster_rcnn_forward.7} parent=0 // pred_check_branch
    %11 = sbr.rel (0) target = $region5
  $region4: #{faster_rcnn_forward.7} parent=0 // pred_region
    _
  $region5: #{faster_rcnn_forward.7} parent=0 // pred_fallthru
    _
  // Predicated region
  $region6: #{faster_rcnn_forward.7} parent=0 // pred_check
    _
  $region7: #{faster_rcnn_forward.7} parent=0 // pred_check_branch
    %13 = sbr.rel (0) target = $region9
  $region8: #{faster_rcnn_forward.7} parent=0 // pred_region
    _
  $region9: #{faster_rcnn_forward.7} parent=0 // pred_fallthru
    _
  // Predicated region
  $region10: #{faster_rcnn_forward.7} parent=0 // pred_check
    _
  $region11: #{faster_rcnn_forward.7} parent=0 // pred_check_branch
    %15 = sbr.rel (0) target = $region13
  $region12: #{faster_rcnn_forward.7} parent=0 // pred_region
    _
  $region13: #{faster_rcnn_forward.7} parent=0 // pred_fallthru
    _
  // Predicated region
  $region14: #{faster_rcnn_forward.7} parent=0 // pred_check
    _
  $region15: #{faster_rcnn_forward.7} parent=0 // pred_check_branch
    %17 = sbr.rel (0) target = $region17
  $region16: #{faster_rcnn_forward.7} parent=0 // pred_region
    _
  $region17: #{faster_rcnn_forward.7} parent=0 // pred_fallthru
    _
  // Predicated region
  $region18: #{faster_rcnn_forward.7} parent=0 // pred_check
    _
  $region19: #{faster_rcnn_forward.7} parent=0 // pred_check_branch
    %19 = sbr.rel (0) target = $region21
  $region20: #{faster_rcnn_forward.7} parent=0 // pred_region
    _
  $region21: #{faster_rcnn_forward.7} parent=0 // pred_fallthru
    _
  %p21 = scmp.eq.s32.totalorder 0, 0
  // Predicated region
  $region22: #{faster_rcnn_forward.7} parent=0 // pred_check
    %p22 = pneg %p21
  $region23: #{faster_rcnn_forward.7} parent=0 // pred_check_branch
    %24 = sbr.rel (%p22) target = $region25
  $region24: #{faster_rcnn_forward.7} parent=0 // pred_region
    %25 = vst [vmem:[#allocation2] sm:$0xff] 0.0
    %26 = vst [vmem:[#allocation2 + $0x8] sm:$0xff] 0.0
    %27 = vst [vmem:[#allocation2 + $0x10] sm:$0xff] 0.0
    %28 = vst [vmem:[#allocation2 + $0x18] sm:$0xff] 0.0
  $region25: #{faster_rcnn_forward.7} parent=0 // pred_fallthru
    _
  %v29 = vld [vmem:[#allocation2] sm:$0xff]
  %v30 = vld [vmem:[#allocation2 + $0x8] sm:$0xff]
  %v31 = vld [vmem:[#allocation2 + $0x10] sm:$0xff]
  %v32 = vld [vmem:[#allocation2 + $0x18] sm:$0xff]
  %v33 = vld [vmem:[%s0] sm:$0xff]
  %v34 = vld [vmem:[%s0 + $0x8] sm:$0xff]
  %v35 = vld [vmem:[%s0 + $0x10] sm:$0xf]
  %v36 = vld [vmem:[%s0 + $0x14] sm:$0xff]
  %v37 = vld [vmem:[%s0 + $0x1c] sm:$0xff]
  %v38 = vld [vmem:[%s0 + $0x24] sm:$0xf]
  %v39 = vld [vmem:[%s0 + $0x28] sm:$0xff]
  %v40 = vld [vmem:[%s0 + $0x30] sm:$0xff]
  %v41 = vld [vmem:[%s0 + $0x38] sm:$0xf]
  %v42 = vld [vmem:[%s0 + $0x3c] sm:$0xff]
  %v43 = vld [vmem:[%s0 + $0x44] sm:$0xff]
  %v44 = vld [vmem:[%s0 + $0x4c] sm:$0xf]
  %v45 = vld [vmem:[%s1] sm:$0xf]
  %v46 = vld [vmem:[%s1 + $0x4] sm:$0xf]
  %v47 = vld [vmem:[%s1 + $0x8] sm:$0xf]
  %v48 = vld [vmem:[%s1 + $0xc] sm:$0xf]
  %v49 = vld [vmem:[%s1 + $0x10] sm:$0xf]
  %v50 = vld [vmem:[%s1 + $0x14] sm:$0xf]
  %v51 = vld [vmem:[%s1 + $0x18] sm:$0xf]
  %v52 = vld [vmem:[%s1 + $0x1c] sm:$0xf]
  %v53 = vld [vmem:[%s1 + $0x20] sm:$0xf]
  %v54 = vld [vmem:[%s1 + $0x24] sm:$0xf]
  %v55 = vld [vmem:[%s1 + $0x28] sm:$0xf]
  %v56 = vld [vmem:[%s1 + $0x2c] sm:$0xf]
  %v57 = vld [vmem:[%s1 + $0x30] sm:$0xf]
  %v58 = vld [vmem:[%s1 + $0x34] sm:$0xf]
  %v59 = vld [vmem:[%s1 + $0x38] sm:$0xf]
  %v60 = vld [vmem:[%s1 + $0x3c] sm:$0xf]
  %v61 = vld [vmem:[%s1 + $0x40] sm:$0xf]
  %v62 = vld [vmem:[%s1 + $0x44] sm:$0xf]
  %v63 = vld [vmem:[%s1 + $0x48] sm:$0xf]
  %v64 = vld [vmem:[%s1 + $0x4c] sm:$0xf]
  %v65 = vld [vmem:[%s1 + $0x50] sm:$0xf]
  %v66 = vld [vmem:[%s1 + $0x54] sm:$0xf]
  %v67 = vld [vmem:[%s1 + $0x58] sm:$0xf]
  %v68 = vld [vmem:[%s1 + $0x5c] sm:$0xf]
  %v69 = vld [vmem:[%s1 + $0x60] sm:$0xf]
  %v70 = vld [vmem:[%s1 + $0x64] sm:$0xf]
  %v71 = vld [vmem:[%s1 + $0x68] sm:$0xf]
  %v72 = vld [vmem:[%s1 + $0x6c] sm:$0xf]
  %v73 = vld [vmem:[%s1 + $0x70] sm:$0xf]
  %v74 = vld [vmem:[%s1 + $0x74] sm:$0xf]
  %v75 = vld [vmem:[%s1 + $0x78] sm:$0xf]
  %v76 = vld [vmem:[%s1 + $0x7c] sm:$0xf]
  %v77 = vld [vmem:[%s1 + $0x80] sm:$0xf]
  %v78 = vld [vmem:[%s1 + $0x84] sm:$0xf]
  %v79 = vld [vmem:[%s1 + $0x88] sm:$0xf]
  %v80 = vld [vmem:[%s1 + $0x8c] sm:$0xf]
  %v81 = vld [vmem:[%s1 + $0x90] sm:$0xf]
  %v82 = vld [vmem:[%s1 + $0x94] sm:$0xf]
  %v83 = vld [vmem:[%s1 + $0x98] sm:$0xf]
  %v84 = vld [vmem:[%s1 + $0x9c] sm:$0xf]
  %v85 = vld [vmem:[%s1 + $0xa0] sm:$0xf]
  %v86 = vld [vmem:[%s1 + $0xa4] sm:$0xf]
  %v87 = vld [vmem:[%s1 + $0xa8] sm:$0xf]
  %v88 = vld [vmem:[%s1 + $0xac] sm:$0xf]
  %v89 = vld [vmem:[%s1 + $0xb0] sm:$0xf]
  %v90 = vld [vmem:[%s1 + $0xb4] sm:$0xf]
  %v91 = vld [vmem:[%s1 + $0xb8] sm:$0xf]
  %v92 = vld [vmem:[%s1 + $0xbc] sm:$0xf]
  %v93 = vld [vmem:[%s1 + $0xc0] sm:$0xf]
  %v94 = vld [vmem:[%s1 + $0xc4] sm:$0xf]
  %v95 = vld [vmem:[%s1 + $0xc8] sm:$0xf]
  %v96 = vld [vmem:[%s1 + $0xcc] sm:$0xf]
  %v97 = vld [vmem:[%s1 + $0xd0] sm:$0xf]
  %v98 = vld [vmem:[%s1 + $0xd4] sm:$0xf]
  %v99 = vld [vmem:[%s1 + $0xd8] sm:$0xf]
  %v100 = vld [vmem:[%s1 + $0xdc] sm:$0xf]
  %v101 = vld [vmem:[%s1 + $0xe0] sm:$0xf]
  %v102 = vld [vmem:[%s1 + $0xe4] sm:$0xf]
  %v103 = vld [vmem:[%s1 + $0xe8] sm:$0xf]
  %v104 = vld [vmem:[%s1 + $0xec] sm:$0xf]
  %v105 = vld [vmem:[%s1 + $0xf0] sm:$0xf]
  %v106 = vld [vmem:[%s1 + $0xf4] sm:$0xf]
  %v107 = vld [vmem:[%s1 + $0xf8] sm:$0xf]
  %v108 = vld [vmem:[%s1 + $0xfc] sm:$0xf]
  %v109 = vld [vmem:[%s1 + $0x100] sm:$0xf]
  %v110 = vld [vmem:[%s1 + $0x104] sm:$0xf]
  %v111 = vld [vmem:[%s1 + $0x108] sm:$0xf]
  %v112 = vld [vmem:[%s1 + $0x10c] sm:$0xf]
  %v113 = vld [vmem:[%s1 + $0x110] sm:$0xf]
  %v114 = vld [vmem:[%s1 + $0x114] sm:$0xf]
  %v115 = vld [vmem:[%s1 + $0x118] sm:$0xf]
  %v116 = vld [vmem:[%s1 + $0x11c] sm:$0xf]
  %v117 = vld [vmem:[%s1 + $0x120] sm:$0xf]
  %v118 = vld [vmem:[%s1 + $0x124] sm:$0xf]
  %v119 = vld [vmem:[%s1 + $0x128] sm:$0xf]
  %v120 = vld [vmem:[%s1 + $0x12c] sm:$0xf]
  %v121 = vld [vmem:[%s1 + $0x130] sm:$0xf]
  %v122 = vld [vmem:[%s1 + $0x134] sm:$0xf]
  %v123 = vld [vmem:[%s1 + $0x138] sm:$0xf]
  %v124 = vld [vmem:[%s1 + $0x13c] sm:$0xf]
  %v137 = vunpack.c.l.b16 %v33
  %v138 = vunpack.c.h.b16 %v33
  %v139 = vunpack.c.l.b16 %v34
  %v140 = vunpack.c.h.b16 %v34
  %v141 = vunpack.c.l.b16 %v35
  %v142 = vunpack.c.l.b16 %v36
  %v143 = vunpack.c.h.b16 %v36
  %v144 = vunpack.c.l.b16 %v37
  %v145 = vunpack.c.h.b16 %v37
  %v146 = vunpack.c.l.b16 %v38
  %v147 = vunpack.c.l.b16 %v39
  %v148 = vunpack.c.h.b16 %v39
  %v149 = vunpack.c.l.b16 %v40
  %v150 = vunpack.c.h.b16 %v40
  %v151 = vunpack.c.l.b16 %v41
  %v152 = vunpack.c.l.b16 %v42
  %v153 = vunpack.c.h.b16 %v42
  %v154 = vunpack.c.l.b16 %v43
  %v155 = vunpack.c.h.b16 %v43
  %v156 = vunpack.c.l.b16 %v44
  %v157 = vpack.c.b16 %v142, %v137
  %v158 = vpack.c.b16 %v143, %v138
  %v159 = vpack.c.b16 %v144, %v139
  %v160 = vpack.c.b16 %v145, %v140
  %v161 = vpack.c.b16 %v146, %v141
  %v162 = vpack.c.b16 %v152, %v147
  %v163 = vpack.c.b16 %v153, %v148
  %v164 = vpack.c.b16 %v154, %v149
  %v165 = vpack.c.b16 %v155, %v150
  %v166 = vpack.c.b16 %v156, %v151
  %v257 = vunpack.c.l.b16 %v45
  %v258 = vunpack.c.l.b16 %v46
  %v259 = vunpack.c.l.b16 %v47
  %v260 = vunpack.c.l.b16 %v48
  %v261 = vunpack.c.l.b16 %v49
  %v262 = vunpack.c.l.b16 %v50
  %v263 = vunpack.c.l.b16 %v51
  %v264 = vunpack.c.l.b16 %v52
  %v265 = vunpack.c.l.b16 %v53
  %v266 = vunpack.c.l.b16 %v54
  %v267 = vunpack.c.l.b16 %v55
  %v268 = vunpack.c.l.b16 %v56
  %v269 = vunpack.c.l.b16 %v57
  %v270 = vunpack.c.l.b16 %v58
  %v271 = vunpack.c.l.b16 %v59
  %v272 = vunpack.c.l.b16 %v60
  %v273 = vunpack.c.l.b16 %v61
  %v274 = vunpack.c.l.b16 %v62
  %v275 = vunpack.c.l.b16 %v63
  %v276 = vunpack.c.l.b16 %v64
  %v277 = vunpack.c.l.b16 %v65
  %v278 = vunpack.c.l.b16 %v66
  %v279 = vunpack.c.l.b16 %v67
  %v280 = vunpack.c.l.b16 %v68
  %v281 = vunpack.c.l.b16 %v69
  %v282 = vunpack.c.l.b16 %v70
  %v283 = vunpack.c.l.b16 %v71
  %v284 = vunpack.c.l.b16 %v72
  %v285 = vunpack.c.l.b16 %v73
  %v286 = vunpack.c.l.b16 %v74
  %v287 = vunpack.c.l.b16 %v75
  %v288 = vunpack.c.l.b16 %v76
  %v289 = vunpack.c.l.b16 %v77
  %v290 = vunpack.c.l.b16 %v78
  %v291 = vunpack.c.l.b16 %v79
  %v292 = vunpack.c.l.b16 %v80
  %v293 = vunpack.c.l.b16 %v81
  %v294 = vunpack.c.l.b16 %v82
  %v295 = vunpack.c.l.b16 %v83
  %v296 = vunpack.c.l.b16 %v84
  %v297 = vunpack.c.l.b16 %v85
  %v298 = vunpack.c.l.b16 %v86
  %v299 = vunpack.c.l.b16 %v87
  %v300 = vunpack.c.l.b16 %v88
  %v301 = vunpack.c.l.b16 %v89
  %v302 = vunpack.c.l.b16 %v90
  %v303 = vunpack.c.l.b16 %v91
  %v304 = vunpack.c.l.b16 %v92
  %v305 = vunpack.c.l.b16 %v93
  %v306 = vunpack.c.l.b16 %v94
  %v307 = vunpack.c.l.b16 %v95
  %v308 = vunpack.c.l.b16 %v96
  %v309 = vunpack.c.l.b16 %v97
  %v310 = vunpack.c.l.b16 %v98
  %v311 = vunpack.c.l.b16 %v99
  %v312 = vunpack.c.l.b16 %v100
  %v313 = vunpack.c.l.b16 %v101
  %v314 = vunpack.c.l.b16 %v102
  %v315 = vunpack.c.l.b16 %v103
  %v316 = vunpack.c.l.b16 %v104
  %v317 = vunpack.c.l.b16 %v105
  %v318 = vunpack.c.l.b16 %v106
  %v319 = vunpack.c.l.b16 %v107
  %v320 = vunpack.c.l.b16 %v108
  %v321 = vunpack.c.l.b16 %v109
  %v322 = vunpack.c.l.b16 %v110
  %v323 = vunpack.c.l.b16 %v111
  %v324 = vunpack.c.l.b16 %v112
  %v325 = vunpack.c.l.b16 %v113
  %v326 = vunpack.c.l.b16 %v114
  %v327 = vunpack.c.l.b16 %v115
  %v328 = vunpack.c.l.b16 %v116
  %v329 = vunpack.c.l.b16 %v117
  %v330 = vunpack.c.l.b16 %v118
  %v331 = vunpack.c.l.b16 %v119
  %v332 = vunpack.c.l.b16 %v120
  %v333 = vunpack.c.l.b16 %v121
  %v334 = vunpack.c.l.b16 %v122
  %v335 = vunpack.c.l.b16 %v123
  %v336 = vunpack.c.l.b16 %v124
  %v337 = vpack.c.b16 %v258, %v257
  %v338 = vpack.c.b16 %v260, %v259
  %v339 = vpack.c.b16 %v262, %v261
  %v340 = vpack.c.b16 %v264, %v263
  %v341 = vpack.c.b16 %v266, %v265
  %v342 = vpack.c.b16 %v268, %v267
  %v343 = vpack.c.b16 %v270, %v269
  %v344 = vpack.c.b16 %v272, %v271
  %v345 = vpack.c.b16 %v274, %v273
  %v346 = vpack.c.b16 %v276, %v275
  %v347 = vpack.c.b16 %v278, %v277
  %v348 = vpack.c.b16 %v280, %v279
  %v349 = vpack.c.b16 %v282, %v281
  %v350 = vpack.c.b16 %v284, %v283
  %v351 = vpack.c.b16 %v286, %v285
  %v352 = vpack.c.b16 %v288, %v287
  %v353 = vpack.c.b16 %v290, %v289
  %v354 = vpack.c.b16 %v292, %v291
  %v355 = vpack.c.b16 %v294, %v293
  %v356 = vpack.c.b16 %v296, %v295
  %v357 = vpack.c.b16 %v298, %v297
  %v358 = vpack.c.b16 %v300, %v299
  %v359 = vpack.c.b16 %v302, %v301
  %v360 = vpack.c.b16 %v304, %v303
  %v361 = vpack.c.b16 %v306, %v305
  %v362 = vpack.c.b16 %v308, %v307
  %v363 = vpack.c.b16 %v310, %v309
  %v364 = vpack.c.b16 %v312, %v311
  %v365 = vpack.c.b16 %v314, %v313
  %v366 = vpack.c.b16 %v316, %v315
  %v367 = vpack.c.b16 %v318, %v317
  %v368 = vpack.c.b16 %v320, %v319
  %v369 = vpack.c.b16 %v322, %v321
  %v370 = vpack.c.b16 %v324, %v323
  %v371 = vpack.c.b16 %v326, %v325
  %v372 = vpack.c.b16 %v328, %v327
  %v373 = vpack.c.b16 %v330, %v329
  %v374 = vpack.c.b16 %v332, %v331
  %v375 = vpack.c.b16 %v334, %v333
  %v376 = vpack.c.b16 %v336, %v335
  %417 = vmatprep.subr.bf16.mxu0 0
  %418 = vmatpush1.bf16.msra.mxu0 %v337
  %419 = vmatprep.subr.bf16.mxu0 0
  %420 = vmatpush1.bf16.msra.mxu0 %v338
  %421 = vmatprep.subr.bf16.mxu0 0
  %422 = vmatpush1.bf16.msra.mxu0 %v339
  %423 = vmatprep.subr.bf16.mxu0 0
  %424 = vmatpush1.bf16.msra.mxu0 %v340
  %425 = vmatprep.subr.bf16.mxu0 0
  %426 = vmatpush1.bf16.msra.mxu0 %v341
  %427 = vmatprep.subr.bf16.mxu0 0
  %428 = vmatpush1.bf16.msra.mxu0 %v342
  %429 = vmatprep.subr.bf16.mxu0 0
  %430 = vmatpush1.bf16.msra.mxu0 %v343
  %431 = vmatprep.subr.bf16.mxu0 0
  %432 = vmatpush1.bf16.msra.mxu0 %v344
  %433 = vmatprep.subr.bf16.mxu0 0
  %434 = vmatpush1.bf16.msra.mxu0 %v345
  %435 = vmatprep.subr.bf16.mxu0 0
  %436 = vmatpush1.bf16.msra.mxu0 %v346
  %437 = vmatprep.subr.bf16.mxu0 0
  %438 = vmatpush1.bf16.msra.mxu0 %v347
  %439 = vmatprep.subr.bf16.mxu0 0
  %440 = vmatpush1.bf16.msra.mxu0 %v348
  %441 = vmatprep.subr.bf16.mxu0 0
  %442 = vmatpush1.bf16.msra.mxu0 %v349
  %443 = vmatprep.subr.bf16.mxu0 0
  %444 = vmatpush1.bf16.msra.mxu0 %v350
  %445 = vmatprep.subr.bf16.mxu0 0
  %446 = vmatpush1.bf16.msra.mxu0 %v351
  %447 = vmatprep.subr.bf16.mxu0 0
  %448 = vmatpush1.bf16.msra.mxu0 %v352
  %449 = vmatprep.mubr.bf16.mxu0 %v158
  %450 = vmatmul.mubr.bf16.gmra.mrb[0].mxu0 %v157
  %v451 = vpop.f32.mrb[0].mxu0
  %v452 = vadd.f32 0.0, %v451
  %v453 = vpop.f32.mrb[0].mxu0
  %v454 = vpop.f32.mrb[0].mxu0
  %v455 = vadd.f32 0.0, %v454
  %v456 = vpop.f32.mrb[0].mxu0
  %457 = vmatprep.mubr.bf16.mxu0 %v163
  %458 = vmatmul.mubr.bf16.gmra.mrb[0].mxu0 %v162
  %v459 = vpop.f32.mrb[0].mxu0
  %v460 = vadd.f32 0.0, %v459
  %v461 = vpop.f32.mrb[0].mxu0
  %v462 = vpop.f32.mrb[0].mxu0
  %v463 = vadd.f32 0.0, %v462
  %v464 = vpop.f32.mrb[0].mxu0
  %465 = vdwg.mxu0
  %466 = vmatprep.subr.bf16.mxu0 0
  %467 = vmatpush1.bf16.msra.mxu0 %v353
  %468 = vmatprep.subr.bf16.mxu0 0
  %469 = vmatpush1.bf16.msra.mxu0 %v354
  %470 = vmatprep.subr.bf16.mxu0 0
  %471 = vmatpush1.bf16.msra.mxu0 %v355
  %472 = vmatprep.subr.bf16.mxu0 0
  %473 = vmatpush1.bf16.msra.mxu0 %v356
  %474 = vmatprep.subr.bf16.mxu0 0
  %475 = vmatpush1.bf16.msra.mxu0 %v357
  %476 = vmatprep.subr.bf16.mxu0 0
  %477 = vmatpush1.bf16.msra.mxu0 %v358
  %478 = vmatprep.subr.bf16.mxu0 0
  %479 = vmatpush1.bf16.msra.mxu0 %v359
  %480 = vmatprep.subr.bf16.mxu0 0
  %481 = vmatpush1.bf16.msra.mxu0 %v360
  %482 = vmatprep.subr.bf16.mxu0 0
  %483 = vmatpush1.bf16.msra.mxu0 %v361
  %484 = vmatprep.subr.bf16.mxu0 0
  %485 = vmatpush1.bf16.msra.mxu0 %v362
  %486 = vmatprep.subr.bf16.mxu0 0
  %487 = vmatpush1.bf16.msra.mxu0 %v363
  %488 = vmatprep.subr.bf16.mxu0 0
  %489 = vmatpush1.bf16.msra.mxu0 %v364
  %490 = vmatprep.subr.bf16.mxu0 0
  %491 = vmatpush1.bf16.msra.mxu0 %v365
  %492 = vmatprep.subr.bf16.mxu0 0
  %493 = vmatpush1.bf16.msra.mxu0 %v366
  %494 = vmatprep.subr.bf16.mxu0 0
  %495 = vmatpush1.bf16.msra.mxu0 %v367
  %496 = vmatprep.subr.bf16.mxu0 0
  %497 = vmatpush1.bf16.msra.mxu0 %v368
  %498 = vmatprep.mubr.bf16.mxu0 %v160
  %499 = vmatmul.mubr.bf16.gmra.mrb[0].mxu0 %v159
  %v500 = vpop.f32.mrb[0].mxu0
  %v501 = vadd.f32 %v452, %v500
  %v502 = vpop.f32.mrb[0].mxu0
  %v503 = vpop.f32.mrb[0].mxu0
  %v504 = vadd.f32 %v455, %v503
  %v505 = vpop.f32.mrb[0].mxu0
  %506 = vmatprep.mubr.bf16.mxu0 %v165
  %507 = vmatmul.mubr.bf16.gmra.mrb[0].mxu0 %v164
  %v508 = vpop.f32.mrb[0].mxu0
  %v509 = vadd.f32 %v460, %v508
  %v510 = vpop.f32.mrb[0].mxu0
  %v511 = vpop.f32.mrb[0].mxu0
  %v512 = vadd.f32 %v463, %v511
  %v513 = vpop.f32.mrb[0].mxu0
  %514 = vdwg.mxu0
  %515 = vmatprep.subr.bf16.mxu0 0
  %516 = vmatpush1.bf16.msra.mxu0 %v369
  %517 = vmatprep.subr.bf16.mxu0 0
  %518 = vmatpush1.bf16.msra.mxu0 %v370
  %519 = vmatprep.subr.bf16.mxu0 0
  %520 = vmatpush1.bf16.msra.mxu0 %v371
  %521 = vmatprep.subr.bf16.mxu0 0
  %522 = vmatpush1.bf16.msra.mxu0 %v372
  %523 = vmatprep.subr.bf16.mxu0 0
  %524 = vmatpush1.bf16.msra.mxu0 %v373
  %525 = vmatprep.subr.bf16.mxu0 0
  %526 = vmatpush1.bf16.msra.mxu0 %v374
  %527 = vmatprep.subr.bf16.mxu0 0
  %528 = vmatpush1.bf16.msra.mxu0 %v375
  %529 = vmatprep.subr.bf16.mxu0 0
  %530 = vmatpush1.bf16.msra.mxu0 %v376
  %531 = vmatprep.subr.bf16.mxu0 0
  %532 = vmatpush1.bf16.msra.mxu0 0
  %533 = vmatprep.subr.bf16.mxu0 0
  %534 = vmatpush1.bf16.msra.mxu0 0
  %535 = vmatprep.subr.bf16.mxu0 0
  %536 = vmatpush1.bf16.msra.mxu0 0
  %537 = vmatprep.subr.bf16.mxu0 0
  %538 = vmatpush1.bf16.msra.mxu0 0
  %539 = vmatprep.subr.bf16.mxu0 0
  %540 = vmatpush1.bf16.msra.mxu0 0
  %541 = vmatprep.subr.bf16.mxu0 0
  %542 = vmatpush1.bf16.msra.mxu0 0
  %543 = vmatprep.subr.bf16.mxu0 0
  %544 = vmatpush1.bf16.msra.mxu0 0
  %545 = vmatprep.subr.bf16.mxu0 0
  %546 = vmatpush1.bf16.msra.mxu0 0
  %547 = vmatprep.mubr.bf16.mxu0 0
  %548 = vmatmul.mubr.bf16.gmra.mrb[0].mxu0 %v161
  %v549 = vpop.f32.mrb[0].mxu0
  %v550 = vadd.f32 %v501, %v549
  %v551 = vpop.f32.mrb[0].mxu0
  %v552 = vpop.f32.mrb[0].mxu0
  %v553 = vadd.f32 %v504, %v552
  %v554 = vpop.f32.mrb[0].mxu0
  %555 = vmatprep.mubr.bf16.mxu0 0
  %556 = vmatmul.mubr.bf16.gmra.mrb[0].mxu0 %v166
  %v557 = vpop.f32.mrb[0].mxu0
  %v558 = vadd.f32 %v509, %v557
  %v559 = vpop.f32.mrb[0].mxu0
  %v560 = vpop.f32.mrb[0].mxu0
  %v561 = vadd.f32 %v512, %v560
  %v562 = vpop.f32.mrb[0].mxu0
  %563 = vdwg.mxu0
  %v564 = vadd.f32 %v29, %v550
  %v565 = vadd.f32 %v30, %v553
  %v566 = vadd.f32 %v31, %v558
  %v567 = vadd.f32 %v32, %v561
  %568 = vst [vmem:[#allocation2] sm:$0xff] %v564
  %569 = vst [vmem:[#allocation2 + $0x8] sm:$0xff] %v565
  %570 = vst [vmem:[#allocation2 + $0x10] sm:$0xff] %v566
  %571 = vst [vmem:[#allocation2 + $0x18] sm:$0xff] %v567
  // Predicated region
  $region26: #{faster_rcnn_forward.7} parent=0 // pred_check
    %p572 = pneg %p21
  $region27: #{faster_rcnn_forward.7} parent=0 // pred_check_branch
    %574 = sbr.rel (%p572) target = $region29
  $region28: #{faster_rcnn_forward.7} parent=0 // pred_region
    %v575 = vld [vmem:[#allocation2] sm:$0xff]
    %v576 = vld [vmem:[#allocation2 + $0x8] sm:$0xff]
    %v577 = vld [vmem:[#allocation2 + $0x10] sm:$0xff]
    %v578 = vld [vmem:[#allocation2 + $0x18] sm:$0xff]
    %v579 = vld [vmem:[%s2] sm:$0x1]
    %v581 = vlaneseq
    %v582 = vshrl.u32 %v581, 7
    %v583 = vsub.s32 0, %v582
    %v584 = vrot.slane %v579, %v583
    %v586 = vadd.f32 %v575, %v584
    %v587 = vadd.f32 %v576, %v584
    %v588 = vadd.f32 %v577, %v584
    %v589 = vadd.f32 %v578, %v584
    %v590 = vmax.f32 %v586, 0.0
    %v591 = vmax.f32 %v587, 0.0
    %v592 = vmax.f32 %v588, 0.0
    %v593 = vmax.f32 %v589, 0.0
    %v594 = vpack.c.bf16 %v591, %v590
    %v595 = vpack.c.bf16 %v593, %v592
    %v596 = vld [vmem:[%s3] sm:$0xf]
    %v597 = vld [vmem:[%s3 + $0x4] sm:$0xf]
    %v598 = vld [vmem:[%s3 + $0x8] sm:$0xf]
    %v599 = vld [vmem:[%s3 + $0xc] sm:$0xf]
    %v600 = vld [vmem:[%s3 + $0x10] sm:$0xf]
    %v601 = vld [vmem:[%s3 + $0x14] sm:$0xf]
    %v602 = vld [vmem:[%s3 + $0x18] sm:$0xf]
    %v603 = vld [vmem:[%s3 + $0x1c] sm:$0xf]
    %v604 = vld [vmem:[%s3 + $0x20] sm:$0xf]
    %v605 = vld [vmem:[%s3 + $0x24] sm:$0xf]
    %v606 = vld [vmem:[%s3 + $0x28] sm:$0xf]
    %v607 = vld [vmem:[%s3 + $0x2c] sm:$0xf]
    %v608 = vld [vmem:[%s3 + $0x30] sm:$0xf]
    %v609 = vld [vmem:[%s3 + $0x34] sm:$0xf]
    %v610 = vld [vmem:[%s3 + $0x38] sm:$0xf]
    %v611 = vld [vmem:[%s3 + $0x3c] sm:$0xf]
    %v612 = vld [vmem:[%s4] sm:$0x1]
    %v614 = vlaneseq
    %v615 = vshrl.u32 %v614, 7
    %v616 = vsub.s32 0, %v615
    %v617 = vrot.slane %v612, %v616
    %v635 = vunpack.c.l.b16 %v596
    %v636 = vunpack.c.l.b16 %v597
    %v637 = vunpack.c.l.b16 %v598
    %v638 = vunpack.c.l.b16 %v599
    %v639 = vunpack.c.l.b16 %v600
    %v640 = vunpack.c.l.b16 %v601
    %v641 = vunpack.c.l.b16 %v602
    %v642 = vunpack.c.l.b16 %v603
    %v643 = vunpack.c.l.b16 %v604
    %v644 = vunpack.c.l.b16 %v605
    %v645 = vunpack.c.l.b16 %v606
    %v646 = vunpack.c.l.b16 %v607
    %v647 = vunpack.c.l.b16 %v608
    %v648 = vunpack.c.l.b16 %v609
    %v649 = vunpack.c.l.b16 %v610
    %v650 = vunpack.c.l.b16 %v611
    %v651 = vpack.c.b16 %v636, %v635
    %v652 = vpack.c.b16 %v638, %v637
    %v653 = vpack.c.b16 %v640, %v639
    %v654 = vpack.c.b16 %v642, %v641
    %v655 = vpack.c.b16 %v644, %v643
    %v656 = vpack.c.b16 %v646, %v645
    %v657 = vpack.c.b16 %v648, %v647
    %v658 = vpack.c.b16 %v650, %v649
    %667 = vmatprep.subr.bf16.mxu0 0
    %668 = vmatpush1.bf16.msra.mxu0 %v651
    %669 = vmatprep.subr.bf16.mxu0 0
    %670 = vmatpush1.bf16.msra.mxu0 %v652
    %671 = vmatprep.subr.bf16.mxu0 0
    %672 = vmatpush1.bf16.msra.mxu0 %v653
    %673 = vmatprep.subr.bf16.mxu0 0
    %674 = vmatpush1.bf16.msra.mxu0 %v654
    %675 = vmatprep.subr.bf16.mxu0 0
    %676 = vmatpush1.bf16.msra.mxu0 %v655
    %677 = vmatprep.subr.bf16.mxu0 0
    %678 = vmatpush1.bf16.msra.mxu0 %v656
    %679 = vmatprep.subr.bf16.mxu0 0
    %680 = vmatpush1.bf16.msra.mxu0 %v657
    %681 = vmatprep.subr.bf16.mxu0 0
    %682 = vmatpush1.bf16.msra.mxu0 %v658
    %683 = vmatprep.subr.bf16.mxu0 0
    %684 = vmatpush1.bf16.msra.mxu0 0
    %685 = vmatprep.subr.bf16.mxu0 0
    %686 = vmatpush1.bf16.msra.mxu0 0
    %687 = vmatprep.subr.bf16.mxu0 0
    %688 = vmatpush1.bf16.msra.mxu0 0
    %689 = vmatprep.subr.bf16.mxu0 0
    %690 = vmatpush1.bf16.msra.mxu0 0
    %691 = vmatprep.subr.bf16.mxu0 0
    %692 = vmatpush1.bf16.msra.mxu0 0
    %693 = vmatprep.subr.bf16.mxu0 0
    %694 = vmatpush1.bf16.msra.mxu0 0
    %695 = vmatprep.subr.bf16.mxu0 0
    %696 = vmatpush1.bf16.msra.mxu0 0
    %697 = vmatprep.subr.bf16.mxu0 0
    %698 = vmatpush1.bf16.msra.mxu0 0
    %699 = vmatprep.mubr.bf16.mxu0 0
    %700 = vmatmul.mubr.bf16.gmra.mrb[0].mxu0 %v594
    %v701 = vpop.f32.mrb[0].mxu0
    %v702 = vadd.f32 %v617, %v701
    %v703 = vpop.f32.mrb[0].mxu0
    %v704 = vpop.f32.mrb[0].mxu0
    %v705 = vadd.f32 %v617, %v704
    %v706 = vpop.f32.mrb[0].mxu0
    %707 = vmatprep.mubr.bf16.mxu0 0
    %708 = vmatmul.mubr.bf16.gmra.mrb[0].mxu0 %v595
    %v709 = vpop.f32.mrb[0].mxu0
    %v710 = vadd.f32 %v617, %v709
    %v711 = vpop.f32.mrb[0].mxu0
    %v712 = vpop.f32.mrb[0].mxu0
    %v713 = vadd.f32 %v617, %v712
    %v714 = vpop.f32.mrb[0].mxu0
    %715 = vdwg.mxu0
    %716 = vst [vmem:[%s5] sm:$0xff] %v702
    %717 = vst [vmem:[%s5 + $0x8] sm:$0xff] %v705
    %718 = vst [vmem:[%s5 + $0x10] sm:$0xff] %v710
    %719 = vst [vmem:[%s5 + $0x18] sm:$0xff] %v713
  $region29: #{faster_rcnn_forward.7} parent=0 // pred_fallthru
    _
  // Predicated region
  $region30: #{faster_rcnn_forward.7} parent=0 // pred_check
    _
  $region31: #{faster_rcnn_forward.7} parent=0 // pred_check_branch
    %721 = sbr.rel (0) target = $region33
  $region32: #{faster_rcnn_forward.7} parent=0 // pred_region
    _
  $region33: #{faster_rcnn_forward.7} parent=0 // pred_fallthru
    _
  // Predicated region
  $region34: #{faster_rcnn_forward.7} parent=0 // pred_check
    _
  $region35: #{faster_rcnn_forward.7} parent=0 // pred_check_branch
    %723 = sbr.rel (0) target = $region37
  $region36: #{faster_rcnn_forward.7} parent=0 // pred_region
    _
  $region37: #{faster_rcnn_forward.7} parent=0 // pred_fallthru
    _

// kernel: faster_rcnn_forward.8
$region0: #{faster_rcnn_forward.8}
  #allocation0 [shape = 'u32[]', space=smem, size = 0x4, offset = 0x4, fixed_abs, tag = 'smem constant byte address 0x4 - core index']
  #allocation1 [shape = 'u32[144,128]{1,0:T(1,128)}', space=vmem, size = 0x12000, scoped, tag = 'internal scratch']
  %s0 = inlined_call_operand.vmem [shape: bf16[2,448,16], index: 0, kind: input, shape index: {}]
  %s1 = inlined_call_operand.vmem [shape: bf16[2,16,128], index: 1, kind: input, shape index: {}]
  %s2 = inlined_call_operand.vmem [shape: bf16[2,448,128], index: 2, kind: output, shape index: {}]
  %s3 = sld [smem:[#allocation0]]
  $region41: #{faster_rcnn_forward.8} parent=0
    _
  %s5 = ssub.s32 1, %s3
  %s6 = scalar_select 0, %s5, %s3
  loop: start=0, step=1, limit=4
  $region2: #{faster_rcnn_forward.8} parent=0 // loop_pre_header
    _
  $region3: #{faster_rcnn_forward.8} parent=0 // loop_header
    %s8 = sphi 0, %s12
    %p9 = scmp.ge.s32.totalorder %s8, 4
    %s18 = sphi 0, %s20
    %s21 = sphi 0, %s18
    %s22 = sphi 0, %s21
    %s38 = sphi 0, %s22
    %s44 = sphi 0, %s46
    %s47 = sphi 0, %s44
    %s48 = sphi 0, %s47
    %s64 = sphi 0, %s48
    %s70 = sphi 0, %s72
    %s73 = sphi 0, %s70
    %s74 = sphi 0, %s73
    %s90 = sphi 0, %s74
  $region4: #{faster_rcnn_forward.8} parent=0 // loop_header_branch
    %11 = sbr.rel (%p9) target = $region8
  $region5: #{faster_rcnn_forward.8} parent=0 // loop_body
    %s13 = ssub.s32 %s8, 1
    %s14 = ssub.s32 %s8, 2
    %s15 = sadd.s32 %s8, 1
    %s16 = ssub.s32 %s8, %s15
    %p17 = scmp.eq.s32.totalorder %s16, 0
    %s19 = sadd.s32 %s18, 1
    %s20 = scalar_select %p17, %s18, %s19
    %p23 = pneg %p17
    %p24 = scmp.eq.s32.totalorder %s8, 1
    %p25 = por %p23, %p24
    %p26 = scmp.ne.s32.totalorder %s18, %s21
    %p27 = scmp.eq.s32.totalorder %s8, 0
    %p28 = por %p26, %p27
    %p29 = scmp.ne.s32.totalorder %s18, %s21
    %p30 = scmp.eq.s32.totalorder %s13, 1
    %p31 = por %p29, %p30
    %p32 = scmp.ne.s32.totalorder %s21, %s22
    %p33 = scmp.eq.s32.totalorder %s13, 0
    %p34 = por %p32, %p33
    %p35 = scmp.ne.s32.totalorder %s21, %s22
    %p36 = scmp.eq.s32.totalorder %s14, 1
    %p37 = por %p35, %p36
    %p39 = scmp.ne.s32.totalorder %s22, %s38
    %p40 = scmp.eq.s32.totalorder %s14, 0
    %p41 = por %p39, %p40
    %s42 = ssub.s32 %s8, %s15
    %p43 = scmp.eq.s32.totalorder %s42, 0
    %s45 = sadd.s32 %s44, 1
    %s46 = scalar_select %p43, %s44, %s45
    %p49 = pneg %p43
    %p50 = scmp.eq.s32.totalorder %s8, 1
    %p51 = por %p49, %p50
    %p52 = scmp.ne.s32.totalorder %s44, %s47
    %p53 = scmp.eq.s32.totalorder %s8, 0
    %p54 = por %p52, %p53
    %p55 = scmp.ne.s32.totalorder %s44, %s47
    %p56 = scmp.eq.s32.totalorder %s13, 1
    %p57 = por %p55, %p56
    %p58 = scmp.ne.s32.totalorder %s47, %s48
    %p59 = scmp.eq.s32.totalorder %s13, 0
    %p60 = por %p58, %p59
    %p61 = scmp.ne.s32.totalorder %s47, %s48
    %p62 = scmp.eq.s32.totalorder %s14, 1
    %p63 = por %p61, %p62
    %p65 = scmp.ne.s32.totalorder %s48, %s64
    %p66 = scmp.eq.s32.totalorder %s14, 0
    %p67 = por %p65, %p66
    %s68 = ssub.s32 %s8, %s15
    %p69 = scmp.eq.s32.totalorder %s68, 0
    %s71 = sadd.s32 %s70, 1
    %s72 = scalar_select %p69, %s70, %s71
    %p75 = pneg %p69
    %p76 = scmp.eq.s32.totalorder %s8, 1
    %p77 = por %p75, %p76
    %p78 = scmp.ne.s32.totalorder %s70, %s73
    %p79 = scmp.eq.s32.totalorder %s8, 0
    %p80 = por %p78, %p79
    %p81 = scmp.ne.s32.totalorder %s70, %s73
    %p82 = scmp.eq.s32.totalorder %s13, 1
    %p83 = por %p81, %p82
    %p84 = scmp.ne.s32.totalorder %s73, %s74
    %p85 = scmp.eq.s32.totalorder %s13, 0
    %p86 = por %p84, %p85
    %p87 = scmp.ne.s32.totalorder %s73, %s74
    %p88 = scmp.eq.s32.totalorder %s14, 1
    %p89 = por %p87, %p88
    %p91 = scmp.ne.s32.totalorder %s74, %s90
    %p92 = scmp.eq.s32.totalorder %s14, 0
    %p93 = por %p91, %p92
    %p94 = scmp.le.s32.totalorder 1, %s8
    %p95 = scmp.lt.s32.totalorder %s8, 3
    %p96 = pnand %p94, %p95
    %p97 = pneg %p96
    // Predicated region
    $region9: #{faster_rcnn_forward.8} parent=5 // pred_check
      _
    $region10: #{faster_rcnn_forward.8} parent=5 // pred_check_branch
      %99 = sbr.rel (%p96) target = $region12
    $region11: #{faster_rcnn_forward.8} parent=5 // pred_region
      %s100 = ssub.s32 %s8, 1
    $region12: #{faster_rcnn_forward.8} parent=5 // pred_fallthru
      _
    %p101 = scmp.lt.s32.totalorder %s8, 2
    // Predicated region
    $region13: #{faster_rcnn_forward.8} parent=5 // pred_check
      %p102 = pneg %p101
    $region14: #{faster_rcnn_forward.8} parent=5 // pred_check_branch
      %104 = sbr.rel (%p102) target = $region16
    $region15: #{faster_rcnn_forward.8} parent=5 // pred_region
      // Predicated region
      $region17: #{faster_rcnn_forward.8} parent=15 // pred_check
        %p105 = pneg %p28
      $region18: #{faster_rcnn_forward.8} parent=15 // pred_check_branch
        %107 = sbr.rel (%p105) target = $region20
      $region19: #{faster_rcnn_forward.8} parent=15 // pred_region
        %p108 = scmp.lt.s32.totalorder %s8, 1
        %s109 = scalar_select %p108, %s8, 1
        %s110 = smul.addr %s109, 56
        %s111 = smul.addr %s110, 4
        %s112 = scalar_lea.vmem %s0, %s111
      $region20: #{faster_rcnn_forward.8} parent=15 // pred_fallthru
        _
      // Predicated region
      $region21: #{faster_rcnn_forward.8} parent=15 // pred_check
        %p113 = pneg %p54
      $region22: #{faster_rcnn_forward.8} parent=15 // pred_check_branch
        %115 = sbr.rel (%p113) target = $region24
      $region23: #{faster_rcnn_forward.8} parent=15 // pred_region
        %p116 = scmp.lt.s32.totalorder %s8, 1
        %s117 = scalar_select %p116, %s8, 1
        %s118 = smul.addr %s117, 2
        %s119 = smul.addr %s118, 4
        %s120 = scalar_lea.vmem %s1, %s119
      $region24: #{faster_rcnn_forward.8} parent=15 // pred_fallthru
        _
    $region16: #{faster_rcnn_forward.8} parent=5 // pred_fallthru
      _
    %p121 = scmp.le.s32.totalorder 1, %s8
    %p122 = scmp.lt.s32.totalorder %s8, 3
    %p123 = pnand %p121, %p122
    %p124 = pneg %p123
    // Predicated region
    $region25: #{faster_rcnn_forward.8} parent=5 // pred_check
      _
    $region26: #{faster_rcnn_forward.8} parent=5 // pred_check_branch
      %126 = sbr.rel (%p123) target = $region28
    $region27: #{faster_rcnn_forward.8} parent=5 // pred_region
      %s127 = ssub.s32 %s8, 1
      %p128 = scmp.lt.s32.totalorder %s13, 1
      %s129 = scalar_select %p128, %s13, 1
      %s130 = smul.addr %s129, 56
      %s131 = smul.addr %s130, 4
      %s132 = scalar_lea.vmem %s0, %s131
      %p133 = pneg %p34
      %p134 = pneg %p31
      %p135 = scmp.lt.s32.totalorder %s13, 1
      %s136 = scalar_select %p135, %s13, 1
      %s137 = smul.addr %s136, 2
      %s138 = smul.addr %s137, 4
      %s139 = scalar_lea.vmem %s1, %s138
      %p140 = pneg %p60
      %p141 = pneg %p57
      %p142 = pneg %p86
      %p143 = pneg %p83
      %p144 = scmp.lt.s32.totalorder %s13, 1
      %s145 = scalar_select %p144, %s13, 1
      %s146 = smul.addr %s145, 56
      %s147 = smul.addr %s146, 4
      %s148 = scalar_lea.vmem %s2, %s147
      %p149 = scmp.lt.s32.totalorder %s13, 1
      %s150 = scalar_select %p149, %s13, 1
      %s151 = smul.addr %s150, 56
      %s152 = smul.addr %s151, 4
      %s153 = scalar_lea.vmem %s0, %s152
      %p154 = scmp.lt.s32.totalorder %s13, 1
      %s155 = scalar_select %p154, %s13, 1
      %s156 = smul.addr %s155, 2
      %s157 = smul.addr %s156, 4
      %s158 = scalar_lea.vmem %s1, %s157
      %p159 = scmp.lt.s32.totalorder %s13, 1
      %s160 = scalar_select %p159, %s13, 1
      %s161 = smul.addr %s160, 56
      %s162 = smul.addr %s161, 4
      %s163 = scalar_lea.vmem %s2, %s162
      %v165 = vld [vmem:[%s153] sm:$0xf]
      %v166 = vld [vmem:[%s153 + $0x4] sm:$0xf]
      %v167 = vld [vmem:[%s153 + $0x8] sm:$0xf]
      %v168 = vld [vmem:[%s153 + $0xc] sm:$0xf]
      %v169 = vld [vmem:[%s153 + $0x10] sm:$0xf]
      %v170 = vld [vmem:[%s153 + $0x14] sm:$0xf]
      %v171 = vld [vmem:[%s153 + $0x18] sm:$0xf]
      %v172 = vld [vmem:[%s153 + $0x1c] sm:$0xf]
      %v173 = vld [vmem:[%s153 + $0x20] sm:$0xf]
      %v174 = vld [vmem:[%s153 + $0x24] sm:$0xf]
      %v175 = vld [vmem:[%s153 + $0x28] sm:$0xf]
      %v176 = vld [vmem:[%s153 + $0x2c] sm:$0xf]
      %v177 = vld [vmem:[%s153 + $0x30] sm:$0xf]
      %v178 = vld [vmem:[%s153 + $0x34] sm:$0xf]
      %v179 = vld [vmem:[%s153 + $0x38] sm:$0xf]
      %v180 = vld [vmem:[%s153 + $0x3c] sm:$0xf]
      %v181 = vld [vmem:[%s153 + $0x40] sm:$0xf]
      %v182 = vld [vmem:[%s153 + $0x44] sm:$0xf]
      %v183 = vld [vmem:[%s153 + $0x48] sm:$0xf]
      %v184 = vld [vmem:[%s153 + $0x4c] sm:$0xf]
      %v185 = vld [vmem:[%s153 + $0x50] sm:$0xf]
      %v186 = vld [vmem:[%s153 + $0x54] sm:$0xf]
      %v187 = vld [vmem:[%s153 + $0x58] sm:$0xf]
      %v188 = vld [vmem:[%s153 + $0x5c] sm:$0xf]
      %v189 = vld [vmem:[%s153 + $0x60] sm:$0xf]
      %v190 = vld [vmem:[%s153 + $0x64] sm:$0xf]
      %v191 = vld [vmem:[%s153 + $0x68] sm:$0xf]
      %v192 = vld [vmem:[%s153 + $0x6c] sm:$0xf]
      %v193 = vld [vmem:[%s153 + $0x70] sm:$0xf]
      %v194 = vld [vmem:[%s153 + $0x74] sm:$0xf]
      %v195 = vld [vmem:[%s153 + $0x78] sm:$0xf]
      %v196 = vld [vmem:[%s153 + $0x7c] sm:$0xf]
      %v197 = vld [vmem:[%s153 + $0x80] sm:$0xf]
      %v198 = vld [vmem:[%s153 + $0x84] sm:$0xf]
      %v199 = vld [vmem:[%s153 + $0x88] sm:$0xf]
      %v200 = vld [vmem:[%s153 + $0x8c] sm:$0xf]
      %v201 = vld [vmem:[%s153 + $0x90] sm:$0xf]
      %v202 = vld [vmem:[%s153 + $0x94] sm:$0xf]
      %v203 = vld [vmem:[%s153 + $0x98] sm:$0xf]
      %v204 = vld [vmem:[%s153 + $0x9c] sm:$0xf]
      %v205 = vld [vmem:[%s153 + $0xa0] sm:$0xf]
      %v206 = vld [vmem:[%s153 + $0xa4] sm:$0xf]
      %v207 = vld [vmem:[%s153 + $0xa8] sm:$0xf]
      %v208 = vld [vmem:[%s153 + $0xac] sm:$0xf]
      %v209 = vld [vmem:[%s153 + $0xb0] sm:$0xf]
      %v210 = vld [vmem:[%s153 + $0xb4] sm:$0xf]
      %v211 = vld [vmem:[%s153 + $0xb8] sm:$0xf]
      %v212 = vld [vmem:[%s153 + $0xbc] sm:$0xf]
      %v213 = vld [vmem:[%s153 + $0xc0] sm:$0xf]
      %v214 = vld [vmem:[%s153 + $0xc4] sm:$0xf]
      %v215 = vld [vmem:[%s153 + $0xc8] sm:$0xf]
      %v216 = vld [vmem:[%s153 + $0xcc] sm:$0xf]
      %v217 = vld [vmem:[%s153 + $0xd0] sm:$0xf]
      %v218 = vld [vmem:[%s153 + $0xd4] sm:$0xf]
      %v219 = vld [vmem:[%s153 + $0xd8] sm:$0xf]
      %v220 = vld [vmem:[%s153 + $0xdc] sm:$0xf]
      %v221 = vld [vmem:[%s158] sm:$0xf]
      %v222 = vld [vmem:[%s158 + $0x4] sm:$0xf]
      %v279 = vunpack.c.l.b16 %v165
      %v280 = vunpack.c.l.b16 %v166
      %v281 = vunpack.c.l.b16 %v167
      %v282 = vunpack.c.l.b16 %v168
      %v283 = vunpack.c.l.b16 %v169
      %v284 = vunpack.c.l.b16 %v170
      %v285 = vunpack.c.l.b16 %v171
      %v286 = vunpack.c.l.b16 %v172
      %v287 = vunpack.c.l.b16 %v173
      %v288 = vunpack.c.l.b16 %v174
      %v289 = vunpack.c.l.b16 %v175
      %v290 = vunpack.c.l.b16 %v176
      %v291 = vunpack.c.l.b16 %v177
      %v292 = vunpack.c.l.b16 %v178
      %v293 = vunpack.c.l.b16 %v179
      %v294 = vunpack.c.l.b16 %v180
      %v295 = vunpack.c.l.b16 %v181
      %v296 = vunpack.c.l.b16 %v182
      %v297 = vunpack.c.l.b16 %v183
      %v298 = vunpack.c.l.b16 %v184
      %v299 = vunpack.c.l.b16 %v185
      %v300 = vunpack.c.l.b16 %v186
      %v301 = vunpack.c.l.b16 %v187
      %v302 = vunpack.c.l.b16 %v188
      %v303 = vunpack.c.l.b16 %v189
      %v304 = vunpack.c.l.b16 %v190
      %v305 = vunpack.c.l.b16 %v191
      %v306 = vunpack.c.l.b16 %v192
      %v307 = vunpack.c.l.b16 %v193
      %v308 = vunpack.c.l.b16 %v194
      %v309 = vunpack.c.l.b16 %v195
      %v310 = vunpack.c.l.b16 %v196
      %v311 = vunpack.c.l.b16 %v197
      %v312 = vunpack.c.l.b16 %v198
      %v313 = vunpack.c.l.b16 %v199
      %v314 = vunpack.c.l.b16 %v200
      %v315 = vunpack.c.l.b16 %v201
      %v316 = vunpack.c.l.b16 %v202
      %v317 = vunpack.c.l.b16 %v203
      %v318 = vunpack.c.l.b16 %v204
      %v319 = vunpack.c.l.b16 %v205
      %v320 = vunpack.c.l.b16 %v206
      %v321 = vunpack.c.l.b16 %v207
      %v322 = vunpack.c.l.b16 %v208
      %v323 = vunpack.c.l.b16 %v209
      %v324 = vunpack.c.l.b16 %v210
      %v325 = vunpack.c.l.b16 %v211
      %v326 = vunpack.c.l.b16 %v212
      %v327 = vunpack.c.l.b16 %v213
      %v328 = vunpack.c.l.b16 %v214
      %v329 = vunpack.c.l.b16 %v215
      %v330 = vunpack.c.l.b16 %v216
      %v331 = vunpack.c.l.b16 %v217
      %v332 = vunpack.c.l.b16 %v218
      %v333 = vunpack.c.l.b16 %v219
      %v334 = vunpack.c.l.b16 %v220
      %v335 = vpack.c.b16 %v280, %v279
      %v336 = vpack.c.b16 %v282, %v281
      %v337 = vpack.c.b16 %v284, %v283
      %v338 = vpack.c.b16 %v286, %v285
      %v339 = vpack.c.b16 %v288, %v287
      %v340 = vpack.c.b16 %v290, %v289
      %v341 = vpack.c.b16 %v292, %v291
      %v342 = vpack.c.b16 %v294, %v293
      %v343 = vpack.c.b16 %v296, %v295
      %v344 = vpack.c.b16 %v298, %v297
      %v345 = vpack.c.b16 %v300, %v299
      %v346 = vpack.c.b16 %v302, %v301
      %v347 = vpack.c.b16 %v304, %v303
      %v348 = vpack.c.b16 %v306, %v305
      %v349 = vpack.c.b16 %v308, %v307
      %v350 = vpack.c.b16 %v310, %v309
      %v351 = vpack.c.b16 %v312, %v311
      %v352 = vpack.c.b16 %v314, %v313
      %v353 = vpack.c.b16 %v316, %v315
      %v354 = vpack.c.b16 %v318, %v317
      %v355 = vpack.c.b16 %v320, %v319
      %v356 = vpack.c.b16 %v322, %v321
      %v357 = vpack.c.b16 %v324, %v323
      %v358 = vpack.c.b16 %v326, %v325
      %v359 = vpack.c.b16 %v328, %v327
      %v360 = vpack.c.b16 %v330, %v329
      %v361 = vpack.c.b16 %v332, %v331
      %v362 = vpack.c.b16 %v334, %v333
      %v365 = vunpack.c.l.b16 %v221
      %v366 = vunpack.c.l.b16 %v222
      %v367 = vpack.c.b16 %v366, %v365
      %vm369 = vcmask 130048
      %v371 = vsel %vm369, %v335, 0
      %v374 = vsel %vm369, %v336, 0
      %v377 = vsel %vm369, %v337, 0
      %v380 = vsel %vm369, %v338, 0
      %v383 = vsel %vm369, %v339, 0
      %v386 = vsel %vm369, %v340, 0
      %v389 = vsel %vm369, %v341, 0
      %v392 = vsel %vm369, %v342, 0
      %v395 = vsel %vm369, %v343, 0
      %v398 = vsel %vm369, %v344, 0
      %v401 = vsel %vm369, %v345, 0
      %v404 = vsel %vm369, %v346, 0
      %v407 = vsel %vm369, %v347, 0
      %v410 = vsel %vm369, %v348, 0
      %v413 = vsel %vm369, %v349, 0
      %v416 = vsel %vm369, %v350, 0
      %v419 = vsel %vm369, %v351, 0
      %v422 = vsel %vm369, %v352, 0
      %v425 = vsel %vm369, %v353, 0
      %v428 = vsel %vm369, %v354, 0
      %v431 = vsel %vm369, %v355, 0
      %v434 = vsel %vm369, %v356, 0
      %v437 = vsel %vm369, %v357, 0
      %v440 = vsel %vm369, %v358, 0
      %v443 = vsel %vm369, %v359, 0
      %v446 = vsel %vm369, %v360, 0
      %v449 = vsel %vm369, %v361, 0
      %v452 = vsel %vm369, %v362, 0
      %454 = vmatprep.subr.bf16.mxu0 0
      %455 = vmatpush1.bf16.msra.mxu0 %v367
      %456 = vmatprep.subr.bf16.mxu0 0
      %457 = vmatpush1.bf16.msra.mxu0 0
      %458 = vmatprep.subr.bf16.mxu0 0
      %459 = vmatpush1.bf16.msra.mxu0 0
      %460 = vmatprep.subr.bf16.mxu0 0
      %461 = vmatpush1.bf16.msra.mxu0 0
      %462 = vmatprep.subr.bf16.mxu0 0
      %463 = vmatpush1.bf16.msra.mxu0 0
      %464 = vmatprep.subr.bf16.mxu0 0
      %465 = vmatpush1.bf16.msra.mxu0 0
      %466 = vmatprep.subr.bf16.mxu0 0
      %467 = vmatpush1.bf16.msra.mxu0 0
      %468 = vmatprep.subr.bf16.mxu0 0
      %469 = vmatpush1.bf16.msra.mxu0 0
      %470 = vmatprep.subr.bf16.mxu0 0
      %471 = vmatpush1.bf16.msra.mxu0 0
      %472 = vmatprep.subr.bf16.mxu0 0
      %473 = vmatpush1.bf16.msra.mxu0 0
      %474 = vmatprep.subr.bf16.mxu0 0
      %475 = vmatpush1.bf16.msra.mxu0 0
      %476 = vmatprep.subr.bf16.mxu0 0
      %477 = vmatpush1.bf16.msra.mxu0 0
      %478 = vmatprep.subr.bf16.mxu0 0
      %479 = vmatpush1.bf16.msra.mxu0 0
      %480 = vmatprep.subr.bf16.mxu0 0
      %481 = vmatpush1.bf16.msra.mxu0 0
      %482 = vmatprep.subr.bf16.mxu0 0
      %483 = vmatpush1.bf16.msra.mxu0 0
      %484 = vmatprep.subr.bf16.mxu0 0
      %485 = vmatpush1.bf16.msra.mxu0 0
      %486 = vmatprep.mubr.bf16.mxu0 0
      %487 = vmatmul.mubr.bf16.gmra.mrb[0].mxu0 %v371
      %v488 = vpop.f32.mrb[0].mxu0
      %v489 = vadd.f32 0.0, %v488
      %v490 = vpop.f32.mrb[0].mxu0
      %v491 = vpop.f32.mrb[0].mxu0
      %v492 = vadd.f32 0.0, %v491
      %v493 = vpop.f32.mrb[0].mxu0
      %494 = vmatprep.mubr.bf16.mxu0 0
      %495 = vmatmul.mubr.bf16.gmra.mrb[0].mxu0 %v374
      %v496 = vpop.f32.mrb[0].mxu0
      %v497 = vadd.f32 0.0, %v496
      %v498 = vpop.f32.mrb[0].mxu0
      %v499 = vpop.f32.mrb[0].mxu0
      %v500 = vadd.f32 0.0, %v499
      %v501 = vpop.f32.mrb[0].mxu0
      %502 = vmatprep.mubr.bf16.mxu0 0
      %503 = vmatmul.mubr.bf16.gmra.mrb[0].mxu0 %v377
      %v504 = vpop.f32.mrb[0].mxu0
      %v505 = vadd.f32 0.0, %v504
      %v506 = vpop.f32.mrb[0].mxu0
      %v507 = vpop.f32.mrb[0].mxu0
      %v508 = vadd.f32 0.0, %v507
      %v509 = vpop.f32.mrb[0].mxu0
      %510 = vmatprep.mubr.bf16.mxu0 0
      %511 = vmatmul.mubr.bf16.gmra.mrb[0].mxu0 %v380
      %v512 = vpop.f32.mrb[0].mxu0
      %v513 = vadd.f32 0.0, %v512
      %v514 = vpop.f32.mrb[0].mxu0
      %v515 = vpop.f32.mrb[0].mxu0
      %v516 = vadd.f32 0.0, %v515
      %v517 = vpop.f32.mrb[0].mxu0
      %518 = vmatprep.mubr.bf16.mxu0 0
      %519 = vmatmul.mubr.bf16.gmra.mrb[0].mxu0 %v383
      %v520 = vpop.f32.mrb[0].mxu0
      %v521 = vadd.f32 0.0, %v520
      %v522 = vpop.f32.mrb[0].mxu0
      %v523 = vpop.f32.mrb[0].mxu0
      %v524 = vadd.f32 0.0, %v523
      %v525 = vpop.f32.mrb[0].mxu0
      %526 = vmatprep.mubr.bf16.mxu0 0
      %527 = vmatmul.mubr.bf16.gmra.mrb[0].mxu0 %v386
      %v528 = vpop.f32.mrb[0].mxu0
      %v529 = vadd.f32 0.0, %v528
      %v530 = vpop.f32.mrb[0].mxu0
      %v531 = vpop.f32.mrb[0].mxu0
      %v532 = vadd.f32 0.0, %v531
      %v533 = vpop.f32.mrb[0].mxu0
      %534 = vmatprep.mubr.bf16.mxu0 0
      %535 = vmatmul.mubr.bf16.gmra.mrb[0].mxu0 %v389
      %v536 = vpop.f32.mrb[0].mxu0
      %v537 = vadd.f32 0.0, %v536
      %v538 = vpop.f32.mrb[0].mxu0
      %v539 = vpop.f32.mrb[0].mxu0
      %v540 = vadd.f32 0.0, %v539
      %v541 = vpop.f32.mrb[0].mxu0
      %542 = vmatprep.mubr.bf16.mxu0 0
      %543 = vmatmul.mubr.bf16.gmra.mrb[0].mxu0 %v392
      %v544 = vpop.f32.mrb[0].mxu0
      %v545 = vadd.f32 0.0, %v544
      %v546 = vpop.f32.mrb[0].mxu0
      %v547 = vpop.f32.mrb[0].mxu0
      %v548 = vadd.f32 0.0, %v547
      %v549 = vpop.f32.mrb[0].mxu0
      %550 = vmatprep.mubr.bf16.mxu0 0
      %551 = vmatmul.mubr.bf16.gmra.mrb[0].mxu0 %v395
      %v552 = vpop.f32.mrb[0].mxu0
      %v553 = vadd.f32 0.0, %v552
      %v554 = vpop.f32.mrb[0].mxu0
      %v555 = vpop.f32.mrb[0].mxu0
      %v556 = vadd.f32 0.0, %v555
      %v557 = vpop.f32.mrb[0].mxu0
      %558 = vmatprep.mubr.bf16.mxu0 0
      %559 = vmatmul.mubr.bf16.gmra.mrb[0].mxu0 %v398
      %v560 = vpop.f32.mrb[0].mxu0
      %v561 = vadd.f32 0.0, %v560
      %v562 = vpop.f32.mrb[0].mxu0
      %v563 = vpop.f32.mrb[0].mxu0
      %v564 = vadd.f32 0.0, %v563
      %v565 = vpop.f32.mrb[0].mxu0
      %566 = vmatprep.mubr.bf16.mxu0 0
      %567 = vmatmul.mubr.bf16.gmra.mrb[0].mxu0 %v401
      %v568 = vpop.f32.mrb[0].mxu0
      %v569 = vadd.f32 0.0, %v568
      %v570 = vpop.f32.mrb[0].mxu0
      %v571 = vpop.f32.mrb[0].mxu0
      %v572 = vadd.f32 0.0, %v571
      %v573 = vpop.f32.mrb[0].mxu0
      %574 = vmatprep.mubr.bf16.mxu0 0
      %575 = vmatmul.mubr.bf16.gmra.mrb[0].mxu0 %v404
      %v576 = vpop.f32.mrb[0].mxu0
      %v577 = vadd.f32 0.0, %v576
      %v578 = vpop.f32.mrb[0].mxu0
      %v579 = vpop.f32.mrb[0].mxu0
      %v580 = vadd.f32 0.0, %v579
      %v581 = vpop.f32.mrb[0].mxu0
      %582 = vmatprep.mubr.bf16.mxu0 0
      %583 = vmatmul.mubr.bf16.gmra.mrb[0].mxu0 %v407
      %v584 = vpop.f32.mrb[0].mxu0
      %v585 = vadd.f32 0.0, %v584
      %v586 = vpop.f32.mrb[0].mxu0
      %v587 = vpop.f32.mrb[0].mxu0
      %v588 = vadd.f32 0.0, %v587
      %v589 = vpop.f32.mrb[0].mxu0
      %590 = vmatprep.mubr.bf16.mxu0 0
      %591 = vmatmul.mubr.bf16.gmra.mrb[0].mxu0 %v410
      %v592 = vpop.f32.mrb[0].mxu0
      %v593 = vadd.f32 0.0, %v592
      %v594 = vpop.f32.mrb[0].mxu0
      %v595 = vpop.f32.mrb[0].mxu0
      %v596 = vadd.f32 0.0, %v595
      %v597 = vpop.f32.mrb[0].mxu0
      %598 = vmatprep.mubr.bf16.mxu0 0
      %599 = vmatmul.mubr.bf16.gmra.mrb[0].mxu0 %v413
      %v600 = vpop.f32.mrb[0].mxu0
      %v601 = vadd.f32 0.0, %v600
      %v602 = vpop.f32.mrb[0].mxu0
      %v603 = vpop.f32.mrb[0].mxu0
      %v604 = vadd.f32 0.0, %v603
      %v605 = vpop.f32.mrb[0].mxu0
      %606 = vmatprep.mubr.bf16.mxu0 0
      %607 = vmatmul.mubr.bf16.gmra.mrb[0].mxu0 %v416
      %v608 = vpop.f32.mrb[0].mxu0
      %v609 = vadd.f32 0.0, %v608
      %v610 = vpop.f32.mrb[0].mxu0
      %v611 = vpop.f32.mrb[0].mxu0
      %v612 = vadd.f32 0.0, %v611
      %v613 = vpop.f32.mrb[0].mxu0
      %614 = vmatprep.mubr.bf16.mxu0 0
      %615 = vmatmul.mubr.bf16.gmra.mrb[0].mxu0 %v419
      %v616 = vpop.f32.mrb[0].mxu0
      %v617 = vadd.f32 0.0, %v616
      %v618 = vpop.f32.mrb[0].mxu0
      %v619 = vpop.f32.mrb[0].mxu0
      %v620 = vadd.f32 0.0, %v619
      %v621 = vpop.f32.mrb[0].mxu0
      %622 = vmatprep.mubr.bf16.mxu0 0
      %623 = vmatmul.mubr.bf16.gmra.mrb[0].mxu0 %v422
      %v624 = vpop.f32.mrb[0].mxu0
      %v625 = vadd.f32 0.0, %v624
      %v626 = vpop.f32.mrb[0].mxu0
      %v627 = vpop.f32.mrb[0].mxu0
      %v628 = vadd.f32 0.0, %v627
      %v629 = vpop.f32.mrb[0].mxu0
      %630 = vmatprep.mubr.bf16.mxu0 0
      %631 = vmatmul.mubr.bf16.gmra.mrb[0].mxu0 %v425
      %v632 = vpop.f32.mrb[0].mxu0
      %v633 = vadd.f32 0.0, %v632
      %v634 = vpop.f32.mrb[0].mxu0
      %v635 = vpop.f32.mrb[0].mxu0
      %v636 = vadd.f32 0.0, %v635
      %v637 = vpop.f32.mrb[0].mxu0
      %638 = vmatprep.mubr.bf16.mxu0 0
      %639 = vmatmul.mubr.bf16.gmra.mrb[0].mxu0 %v428
      %v640 = vpop.f32.mrb[0].mxu0
      %v641 = vadd.f32 0.0, %v640
      %v642 = vpop.f32.mrb[0].mxu0
      %v643 = vpop.f32.mrb[0].mxu0
      %v644 = vadd.f32 0.0, %v643
      %v645 = vpop.f32.mrb[0].mxu0
      %646 = vmatprep.mubr.bf16.mxu0 0
      %647 = vmatmul.mubr.bf16.gmra.mrb[0].mxu0 %v431
      %v648 = vpop.f32.mrb[0].mxu0
      %v649 = vadd.f32 0.0, %v648
      %v650 = vpop.f32.mrb[0].mxu0
      %v651 = vpop.f32.mrb[0].mxu0
      %v652 = vadd.f32 0.0, %v651
      %v653 = vpop.f32.mrb[0].mxu0
      %654 = vmatprep.mubr.bf16.mxu0 0
      %655 = vmatmul.mubr.bf16.gmra.mrb[0].mxu0 %v434
      %v656 = vpop.f32.mrb[0].mxu0
      %v657 = vadd.f32 0.0, %v656
      %v658 = vpop.f32.mrb[0].mxu0
      %v659 = vpop.f32.mrb[0].mxu0
      %v660 = vadd.f32 0.0, %v659
      %v661 = vpop.f32.mrb[0].mxu0
      %662 = vmatprep.mubr.bf16.mxu0 0
      %663 = vmatmul.mubr.bf16.gmra.mrb[0].mxu0 %v437
      %v664 = vpop.f32.mrb[0].mxu0
      %v665 = vadd.f32 0.0, %v664
      %v666 = vpop.f32.mrb[0].mxu0
      %v667 = vpop.f32.mrb[0].mxu0
      %v668 = vadd.f32 0.0, %v667
      %v669 = vpop.f32.mrb[0].mxu0
      %670 = vmatprep.mubr.bf16.mxu0 0
      %671 = vmatmul.mubr.bf16.gmra.mrb[0].mxu0 %v440
      %v672 = vpop.f32.mrb[0].mxu0
      %v673 = vadd.f32 0.0, %v672
      %v674 = vpop.f32.mrb[0].mxu0
      %v675 = vpop.f32.mrb[0].mxu0
      %v676 = vadd.f32 0.0, %v675
      %v677 = vpop.f32.mrb[0].mxu0
      %678 = vmatprep.mubr.bf16.mxu0 0
      %679 = vmatmul.mubr.bf16.gmra.mrb[0].mxu0 %v443
      %v680 = vpop.f32.mrb[0].mxu0
      %v681 = vadd.f32 0.0, %v680
      %v682 = vpop.f32.mrb[0].mxu0
      %v683 = vpop.f32.mrb[0].mxu0
      %v684 = vadd.f32 0.0, %v683
      %v685 = vpop.f32.mrb[0].mxu0
      %686 = vmatprep.mubr.bf16.mxu0 0
      %687 = vmatmul.mubr.bf16.gmra.mrb[0].mxu0 %v446
      %v688 = vpop.f32.mrb[0].mxu0
      %v689 = vadd.f32 0.0, %v688
      %v690 = vpop.f32.mrb[0].mxu0
      %v691 = vpop.f32.mrb[0].mxu0
      %v692 = vadd.f32 0.0, %v691
      %v693 = vpop.f32.mrb[0].mxu0
      %694 = vmatprep.mubr.bf16.mxu0 0
      %695 = vmatmul.mubr.bf16.gmra.mrb[0].mxu0 %v449
      %v696 = vpop.f32.mrb[0].mxu0
      %v697 = vadd.f32 0.0, %v696
      %v698 = vpop.f32.mrb[0].mxu0
      %v699 = vpop.f32.mrb[0].mxu0
      %v700 = vadd.f32 0.0, %v699
      %v701 = vpop.f32.mrb[0].mxu0
      %702 = vmatprep.mubr.bf16.mxu0 0
      %703 = vmatmul.mubr.bf16.gmra.mrb[0].mxu0 %v452
      %v704 = vpop.f32.mrb[0].mxu0
      %v705 = vadd.f32 0.0, %v704
      %v706 = vpop.f32.mrb[0].mxu0
      %v707 = vpop.f32.mrb[0].mxu0
      %v708 = vadd.f32 0.0, %v707
      %v709 = vpop.f32.mrb[0].mxu0
      %710 = vdwg.mxu0
      %v711 = vpack.c.bf16 %v492, %v489
      %v712 = vpack.c.bf16 %v500, %v497
      %v713 = vpack.c.bf16 %v508, %v505
      %v714 = vpack.c.bf16 %v516, %v513
      %v715 = vpack.c.bf16 %v524, %v521
      %v716 = vpack.c.bf16 %v532, %v529
      %v717 = vpack.c.bf16 %v540, %v537
      %v718 = vpack.c.bf16 %v548, %v545
      %v719 = vpack.c.bf16 %v556, %v553
      %v720 = vpack.c.bf16 %v564, %v561
      %v721 = vpack.c.bf16 %v572, %v569
      %v722 = vpack.c.bf16 %v580, %v577
      %v723 = vpack.c.bf16 %v588, %v585
      %v724 = vpack.c.bf16 %v596, %v593
      %v725 = vpack.c.bf16 %v604, %v601
      %v726 = vpack.c.bf16 %v612, %v609
      %v727 = vpack.c.bf16 %v620, %v617
      %v728 = vpack.c.bf16 %v628, %v625
      %v729 = vpack.c.bf16 %v636, %v633
      %v730 = vpack.c.bf16 %v644, %v641
      %v731 = vpack.c.bf16 %v652, %v649
      %v732 = vpack.c.bf16 %v660, %v657
      %v733 = vpack.c.bf16 %v668, %v665
      %v734 = vpack.c.bf16 %v676, %v673
      %v735 = vpack.c.bf16 %v684, %v681
      %v736 = vpack.c.bf16 %v692, %v689
      %v737 = vpack.c.bf16 %v700, %v697
      %v738 = vpack.c.bf16 %v708, %v705
      %v767 = vunpack.c.l.b16 %v711
      %v768 = vunpack.c.h.b16 %v711
      %v769 = vunpack.c.l.b16 %v712
      %v770 = vunpack.c.h.b16 %v712
      %v771 = vunpack.c.l.b16 %v713
      %v772 = vunpack.c.h.b16 %v713
      %v773 = vunpack.c.l.b16 %v714
      %v774 = vunpack.c.h.b16 %v714
      %v775 = vunpack.c.l.b16 %v715
      %v776 = vunpack.c.h.b16 %v715
      %v777 = vunpack.c.l.b16 %v716
      %v778 = vunpack.c.h.b16 %v716
      %v779 = vunpack.c.l.b16 %v717
      %v780 = vunpack.c.h.b16 %v717
      %v781 = vunpack.c.l.b16 %v718
      %v782 = vunpack.c.h.b16 %v718
      %v783 = vunpack.c.l.b16 %v719
      %v784 = vunpack.c.h.b16 %v719
      %v785 = vunpack.c.l.b16 %v720
      %v786 = vunpack.c.h.b16 %v720
      %v787 = vunpack.c.l.b16 %v721
      %v788 = vunpack.c.h.b16 %v721
      %v789 = vunpack.c.l.b16 %v722
      %v790 = vunpack.c.h.b16 %v722
      %v791 = vunpack.c.l.b16 %v723
      %v792 = vunpack.c.h.b16 %v723
      %v793 = vunpack.c.l.b16 %v724
      %v794 = vunpack.c.h.b16 %v724
      %v795 = vunpack.c.l.b16 %v725
      %v796 = vunpack.c.h.b16 %v725
      %v797 = vunpack.c.l.b16 %v726
      %v798 = vunpack.c.h.b16 %v726
      %v799 = vunpack.c.l.b16 %v727
      %v800 = vunpack.c.h.b16 %v727
      %v801 = vunpack.c.l.b16 %v728
      %v802 = vunpack.c.h.b16 %v728
      %v803 = vunpack.c.l.b16 %v729
      %v804 = vunpack.c.h.b16 %v729
      %v805 = vunpack.c.l.b16 %v730
      %v806 = vunpack.c.h.b16 %v730
      %v807 = vunpack.c.l.b16 %v731
      %v808 = vunpack.c.h.b16 %v731
      %v809 = vunpack.c.l.b16 %v732
      %v810 = vunpack.c.h.b16 %v732
      %v811 = vunpack.c.l.b16 %v733
      %v812 = vunpack.c.h.b16 %v733
      %v813 = vunpack.c.l.b16 %v734
      %v814 = vunpack.c.h.b16 %v734
      %v815 = vunpack.c.l.b16 %v735
      %v816 = vunpack.c.h.b16 %v735
      %v817 = vunpack.c.l.b16 %v736
      %v818 = vunpack.c.h.b16 %v736
      %v819 = vunpack.c.l.b16 %v737
      %v820 = vunpack.c.h.b16 %v737
      %v821 = vunpack.c.l.b16 %v738
      %v822 = vunpack.c.h.b16 %v738
      %v823 = vpack.c.b16 %v767, %v767
      %v824 = vpack.c.b16 %v768, %v768
      %v825 = vpack.c.b16 %v769, %v769
      %v826 = vpack.c.b16 %v770, %v770
      %v827 = vpack.c.b16 %v771, %v771
      %v828 = vpack.c.b16 %v772, %v772
      %v829 = vpack.c.b16 %v773, %v773
      %v830 = vpack.c.b16 %v774, %v774
      %v831 = vpack.c.b16 %v775, %v775
      %v832 = vpack.c.b16 %v776, %v776
      %v833 = vpack.c.b16 %v777, %v777
      %v834 = vpack.c.b16 %v778, %v778
      %v835 = vpack.c.b16 %v779, %v779
      %v836 = vpack.c.b16 %v780, %v780
      %v837 = vpack.c.b16 %v781, %v781
      %v838 = vpack.c.b16 %v782, %v782
      %v839 = vpack.c.b16 %v783, %v783
      %v840 = vpack.c.b16 %v784, %v784
      %v841 = vpack.c.b16 %v785, %v785
      %v842 = vpack.c.b16 %v786, %v786
      %v843 = vpack.c.b16 %v787, %v787
      %v844 = vpack.c.b16 %v788, %v788
      %v845 = vpack.c.b16 %v789, %v789
      %v846 = vpack.c.b16 %v790, %v790
      %v847 = vpack.c.b16 %v791, %v791
      %v848 = vpack.c.b16 %v792, %v792
      %v849 = vpack.c.b16 %v793, %v793
      %v850 = vpack.c.b16 %v794, %v794
      %v851 = vpack.c.b16 %v795, %v795
      %v852 = vpack.c.b16 %v796, %v796
      %v853 = vpack.c.b16 %v797, %v797
      %v854 = vpack.c.b16 %v798, %v798
      %v855 = vpack.c.b16 %v799, %v799
      %v856 = vpack.c.b16 %v800, %v800
      %v857 = vpack.c.b16 %v801, %v801
      %v858 = vpack.c.b16 %v802, %v802
      %v859 = vpack.c.b16 %v803, %v803
      %v860 = vpack.c.b16 %v804, %v804
      %v861 = vpack.c.b16 %v805, %v805
      %v862 = vpack.c.b16 %v806, %v806
      %v863 = vpack.c.b16 %v807, %v807
      %v864 = vpack.c.b16 %v808, %v808
      %v865 = vpack.c.b16 %v809, %v809
      %v866 = vpack.c.b16 %v810, %v810
      %v867 = vpack.c.b16 %v811, %v811
      %v868 = vpack.c.b16 %v812, %v812
      %v869 = vpack.c.b16 %v813, %v813
      %v870 = vpack.c.b16 %v814, %v814
      %v871 = vpack.c.b16 %v815, %v815
      %v872 = vpack.c.b16 %v816, %v816
      %v873 = vpack.c.b16 %v817, %v817
      %v874 = vpack.c.b16 %v818, %v818
      %v875 = vpack.c.b16 %v819, %v819
      %v876 = vpack.c.b16 %v820, %v820
      %v877 = vpack.c.b16 %v821, %v821
      %v878 = vpack.c.b16 %v822, %v822
      %935 = vst [vmem:[%s163] sm:$0xf] %v823
      %936 = vst [vmem:[%s163 + $0x4] sm:$0xf] %v824
      %937 = vst [vmem:[%s163 + $0x8] sm:$0xf] %v825
      %938 = vst [vmem:[%s163 + $0xc] sm:$0xf] %v826
      %939 = vst [vmem:[%s163 + $0x10] sm:$0xf] %v827
      %940 = vst [vmem:[%s163 + $0x14] sm:$0xf] %v828
      %941 = vst [vmem:[%s163 + $0x18] sm:$0xf] %v829
      %942 = vst [vmem:[%s163 + $0x1c] sm:$0xf] %v830
      %943 = vst [vmem:[%s163 + $0x20] sm:$0xf] %v831
      %944 = vst [vmem:[%s163 + $0x24] sm:$0xf] %v832
      %945 = vst [vmem:[%s163 + $0x28] sm:$0xf] %v833
      %946 = vst [vmem:[%s163 + $0x2c] sm:$0xf] %v834
      %947 = vst [vmem:[%s163 + $0x30] sm:$0xf] %v835
      %948 = vst [vmem:[%s163 + $0x34] sm:$0xf] %v836
      %949 = vst [vmem:[%s163 + $0x38] sm:$0xf] %v837
      %950 = vst [vmem:[%s163 + $0x3c] sm:$0xf] %v838
      %951 = vst [vmem:[%s163 + $0x40] sm:$0xf] %v839
      %952 = vst [vmem:[%s163 + $0x44] sm:$0xf] %v840
      %953 = vst [vmem:[%s163 + $0x48] sm:$0xf] %v841
      %954 = vst [vmem:[%s163 + $0x4c] sm:$0xf] %v842
      %955 = vst [vmem:[%s163 + $0x50] sm:$0xf] %v843
      %956 = vst [vmem:[%s163 + $0x54] sm:$0xf] %v844
      %957 = vst [vmem:[%s163 + $0x58] sm:$0xf] %v845
      %958 = vst [vmem:[%s163 + $0x5c] sm:$0xf] %v846
      %959 = vst [vmem:[%s163 + $0x60] sm:$0xf] %v847
      %960 = vst [vmem:[%s163 + $0x64] sm:$0xf] %v848
      %961 = vst [vmem:[%s163 + $0x68] sm:$0xf] %v849
      %962 = vst [vmem:[%s163 + $0x6c] sm:$0xf] %v850
      %963 = vst [vmem:[%s163 + $0x70] sm:$0xf] %v851
      %964 = vst [vmem:[%s163 + $0x74] sm:$0xf] %v852
      %965 = vst [vmem:[%s163 + $0x78] sm:$0xf] %v853
      %966 = vst [vmem:[%s163 + $0x7c] sm:$0xf] %v854
      %967 = vst [vmem:[%s163 + $0x80] sm:$0xf] %v855
      %968 = vst [vmem:[%s163 + $0x84] sm:$0xf] %v856
      %969 = vst [vmem:[%s163 + $0x88] sm:$0xf] %v857
      %970 = vst [vmem:[%s163 + $0x8c] sm:$0xf] %v858
      %971 = vst [vmem:[%s163 + $0x90] sm:$0xf] %v859
      %972 = vst [vmem:[%s163 + $0x94] sm:$0xf] %v860
      %973 = vst [vmem:[%s163 + $0x98] sm:$0xf] %v861
      %974 = vst [vmem:[%s163 + $0x9c] sm:$0xf] %v862
      %975 = vst [vmem:[%s163 + $0xa0] sm:$0xf] %v863
      %976 = vst [vmem:[%s163 + $0xa4] sm:$0xf] %v864
      %977 = vst [vmem:[%s163 + $0xa8] sm:$0xf] %v865
      %978 = vst [vmem:[%s163 + $0xac] sm:$0xf] %v866
      %979 = vst [vmem:[%s163 + $0xb0] sm:$0xf] %v867
      %980 = vst [vmem:[%s163 + $0xb4] sm:$0xf] %v868
      %981 = vst [vmem:[%s163 + $0xb8] sm:$0xf] %v869
      %982 = vst [vmem:[%s163 + $0xbc] sm:$0xf] %v870
      %983 = vst [vmem:[%s163 + $0xc0] sm:$0xf] %v871
      %984 = vst [vmem:[%s163 + $0xc4] sm:$0xf] %v872
      %985 = vst [vmem:[%s163 + $0xc8] sm:$0xf] %v873
      %986 = vst [vmem:[%s163 + $0xcc] sm:$0xf] %v874
      %987 = vst [vmem:[%s163 + $0xd0] sm:$0xf] %v875
      %988 = vst [vmem:[%s163 + $0xd4] sm:$0xf] %v876
      %989 = vst [vmem:[%s163 + $0xd8] sm:$0xf] %v877
      %990 = vst [vmem:[%s163 + $0xdc] sm:$0xf] %v878
      %p991 = scmp.lt.s32.totalorder %s13, 1
      %s992 = scalar_select %p991, %s13, 1
      %s993 = smul.addr %s992, 56
      %s994 = smul.addr %s993, 4
      %s995 = scalar_lea.vmem %s2, %s994
      // Predicated region
      $region29: #{faster_rcnn_forward.8} parent=27 // pred_check
        %p996 = pneg %p83
      $region30: #{faster_rcnn_forward.8} parent=27 // pred_check_branch
        %998 = sbr.rel (%p996) target = $region32
      $region31: #{faster_rcnn_forward.8} parent=27 // pred_region
        _
      $region32: #{faster_rcnn_forward.8} parent=27 // pred_fallthru
        _
    $region28: #{faster_rcnn_forward.8} parent=5 // pred_fallthru
      _
    %p999 = scmp.le.s32.totalorder 2, %s8
    // Predicated region
    $region33: #{faster_rcnn_forward.8} parent=5 // pred_check
      %p1000 = pneg %p999
    $region34: #{faster_rcnn_forward.8} parent=5 // pred_check_branch
      %1002 = sbr.rel (%p1000) target = $region36
    $region35: #{faster_rcnn_forward.8} parent=5 // pred_region
      %s1003 = ssub.s32 %s8, 2
      // Predicated region
      $region37: #{faster_rcnn_forward.8} parent=35 // pred_check
        %p1004 = pneg %p89
      $region38: #{faster_rcnn_forward.8} parent=35 // pred_check_branch
        %1006 = sbr.rel (%p1004) target = $region40
      $region39: #{faster_rcnn_forward.8} parent=35 // pred_region
        %p1007 = scmp.lt.s32.totalorder %s14, 1
        %s1008 = scalar_select %p1007, %s14, 1
        %s1009 = smul.addr %s1008, 56
        %s1010 = smul.addr %s1009, 4
        %s1011 = scalar_lea.vmem %s2, %s1010
      $region40: #{faster_rcnn_forward.8} parent=35 // pred_fallthru
        _
    $region36: #{faster_rcnn_forward.8} parent=5 // pred_fallthru
      _
  $region6: #{faster_rcnn_forward.8} parent=0 // loop_footer
    %s12 = sadd.s32 1, %s8
  $region7: #{faster_rcnn_forward.8} parent=0 // loop_footer_branch
    %7 = sbr.rel target = $region3
  $region8: #{faster_rcnn_forward.8} parent=0 // loop_exit
    _

// kernel: faster_rcnn_forward.10
$region0: #{faster_rcnn_forward.10}
  #allocation0 [shape = 'u32[]', space=smem, size = 0x4, offset = 0x4, fixed_abs, tag = 'smem constant byte address 0x4 - core index']
  #allocation1 [shape = 'u32[144,128]{1,0:T(1,128)}', space=vmem, size = 0x12000, scoped, tag = 'internal scratch']
  #allocation2 [shape = 'f32[8,128]{1,0:T(8,128)}', space=vmem, size = 0x1000, scoped, tag = 'scratch operand']
  %s0 = inlined_call_operand.vmem [shape: bf16[8,128], index: 0, kind: input, shape index: {}]
  %s1 = inlined_call_operand.vmem [shape: bf16[128,128], index: 1, kind: input, shape index: {}]
  %s2 = inlined_call_operand.vmem [shape: f32[1,128], index: 2, kind: input, shape index: {}]
  %s3 = inlined_call_operand.vmem [shape: f32[8,128], index: 3, kind: output, shape index: {}]
  %s4 = sld [smem:[#allocation0]]
  $region30: #{faster_rcnn_forward.10} parent=0
    _
  %s6 = ssub.s32 1, %s4
  %s7 = scalar_select 0, %s6, %s4
  // Predicated region
  $region2: #{faster_rcnn_forward.10} parent=0 // pred_check
    _
  $region3: #{faster_rcnn_forward.10} parent=0 // pred_check_branch
    %9 = sbr.rel (0) target = $region5
  $region4: #{faster_rcnn_forward.10} parent=0 // pred_region
    _
  $region5: #{faster_rcnn_forward.10} parent=0 // pred_fallthru
    _
  // Predicated region
  $region6: #{faster_rcnn_forward.10} parent=0 // pred_check
    _
  $region7: #{faster_rcnn_forward.10} parent=0 // pred_check_branch
    %11 = sbr.rel (0) target = $region9
  $region8: #{faster_rcnn_forward.10} parent=0 // pred_region
    _
  $region9: #{faster_rcnn_forward.10} parent=0 // pred_fallthru
    _
  // Predicated region
  $region10: #{faster_rcnn_forward.10} parent=0 // pred_check
    _
  $region11: #{faster_rcnn_forward.10} parent=0 // pred_check_branch
    %13 = sbr.rel (0) target = $region13
  $region12: #{faster_rcnn_forward.10} parent=0 // pred_region
    _
  $region13: #{faster_rcnn_forward.10} parent=0 // pred_fallthru
    _
  %p15 = scmp.eq.s32.totalorder 0, 0
  // Predicated region
  $region14: #{faster_rcnn_forward.10} parent=0 // pred_check
    %p16 = pneg %p15
  $region15: #{faster_rcnn_forward.10} parent=0 // pred_check_branch
    %18 = sbr.rel (%p16) target = $region17
  $region16: #{faster_rcnn_forward.10} parent=0 // pred_region
    %19 = vst [vmem:[#allocation2] sm:$0xff] 0.0
  $region17: #{faster_rcnn_forward.10} parent=0 // pred_fallthru
    _
  %v20 = vld [vmem:[#allocation2] sm:$0xff]
  %v21 = vld [vmem:[%s0] sm:$0xf]
  %v22 = vld [vmem:[%s1] sm:$0xf]
  %v23 = vld [vmem:[%s1 + $0x4] sm:$0xf]
  %v24 = vld [vmem:[%s1 + $0x8] sm:$0xf]
  %v25 = vld [vmem:[%s1 + $0xc] sm:$0xf]
  %v26 = vld [vmem:[%s1 + $0x10] sm:$0xf]
  %v27 = vld [vmem:[%s1 + $0x14] sm:$0xf]
  %v28 = vld [vmem:[%s1 + $0x18] sm:$0xf]
  %v29 = vld [vmem:[%s1 + $0x1c] sm:$0xf]
  %v30 = vld [vmem:[%s1 + $0x20] sm:$0xf]
  %v31 = vld [vmem:[%s1 + $0x24] sm:$0xf]
  %v32 = vld [vmem:[%s1 + $0x28] sm:$0xf]
  %v33 = vld [vmem:[%s1 + $0x2c] sm:$0xf]
  %v34 = vld [vmem:[%s1 + $0x30] sm:$0xf]
  %v35 = vld [vmem:[%s1 + $0x34] sm:$0xf]
  %v36 = vld [vmem:[%s1 + $0x38] sm:$0xf]
  %v37 = vld [vmem:[%s1 + $0x3c] sm:$0xf]
  %v54 = vunpack.c.l.b16 %v22
  %v55 = vunpack.c.l.b16 %v23
  %v56 = vunpack.c.l.b16 %v24
  %v57 = vunpack.c.l.b16 %v25
  %v58 = vunpack.c.l.b16 %v26
  %v59 = vunpack.c.l.b16 %v27
  %v60 = vunpack.c.l.b16 %v28
  %v61 = vunpack.c.l.b16 %v29
  %v62 = vunpack.c.l.b16 %v30
  %v63 = vunpack.c.l.b16 %v31
  %v64 = vunpack.c.l.b16 %v32
  %v65 = vunpack.c.l.b16 %v33
  %v66 = vunpack.c.l.b16 %v34
  %v67 = vunpack.c.l.b16 %v35
  %v68 = vunpack.c.l.b16 %v36
  %v69 = vunpack.c.l.b16 %v37
  %v70 = vpack.c.b16 %v55, %v54
  %v71 = vpack.c.b16 %v57, %v56
  %v72 = vpack.c.b16 %v59, %v58
  %v73 = vpack.c.b16 %v61, %v60
  %v74 = vpack.c.b16 %v63, %v62
  %v75 = vpack.c.b16 %v65, %v64
  %v76 = vpack.c.b16 %v67, %v66
  %v77 = vpack.c.b16 %v69, %v68
  %86 = vmatprep.subr.bf16.mxu0 0
  %87 = vmatpush1.bf16.msra.mxu0 %v70
  %88 = vmatprep.subr.bf16.mxu0 0
  %89 = vmatpush1.bf16.msra.mxu0 %v71
  %90 = vmatprep.subr.bf16.mxu0 0
  %91 = vmatpush1.bf16.msra.mxu0 %v72
  %92 = vmatprep.subr.bf16.mxu0 0
  %93 = vmatpush1.bf16.msra.mxu0 %v73
  %94 = vmatprep.subr.bf16.mxu0 0
  %95 = vmatpush1.bf16.msra.mxu0 %v74
  %96 = vmatprep.subr.bf16.mxu0 0
  %97 = vmatpush1.bf16.msra.mxu0 %v75
  %98 = vmatprep.subr.bf16.mxu0 0
  %99 = vmatpush1.bf16.msra.mxu0 %v76
  %100 = vmatprep.subr.bf16.mxu0 0
  %101 = vmatpush1.bf16.msra.mxu0 %v77
  %102 = vmatprep.subr.bf16.mxu0 0
  %103 = vmatpush1.bf16.msra.mxu0 0
  %104 = vmatprep.subr.bf16.mxu0 0
  %105 = vmatpush1.bf16.msra.mxu0 0
  %106 = vmatprep.subr.bf16.mxu0 0
  %107 = vmatpush1.bf16.msra.mxu0 0
  %108 = vmatprep.subr.bf16.mxu0 0
  %109 = vmatpush1.bf16.msra.mxu0 0
  %110 = vmatprep.subr.bf16.mxu0 0
  %111 = vmatpush1.bf16.msra.mxu0 0
  %112 = vmatprep.subr.bf16.mxu0 0
  %113 = vmatpush1.bf16.msra.mxu0 0
  %114 = vmatprep.subr.bf16.mxu0 0
  %115 = vmatpush1.bf16.msra.mxu0 0
  %116 = vmatprep.subr.bf16.mxu0 0
  %117 = vmatpush1.bf16.msra.mxu0 0
  %118 = vmatprep.mubr.bf16.mxu0 0
  %119 = vmatmul.mubr.bf16.gmra.mrb[0].mxu0 %v21
  %v120 = vpop.f32.mrb[0].mxu0
  %v121 = vadd.f32 0.0, %v120
  %v122 = vpop.f32.mrb[0].mxu0
  %v123 = vpop.f32.mrb[0].mxu0
  %v124 = vpop.f32.mrb[0].mxu0
  %125 = vdwg.mxu0
  %v126 = vadd.f32 %v20, %v121
  %127 = vst [vmem:[#allocation2] sm:$0xff] %v126
  // Predicated region
  $region18: #{faster_rcnn_forward.10} parent=0 // pred_check
    %p128 = pneg %p15
  $region19: #{faster_rcnn_forward.10} parent=0 // pred_check_branch
    %130 = sbr.rel (%p128) target = $region21
  $region20: #{faster_rcnn_forward.10} parent=0 // pred_region
    %v131 = vld [vmem:[#allocation2] sm:$0xff]
    %v132 = vld [vmem:[%s2] sm:$0x1]
    %v134 = vlaneseq
    %v135 = vshrl.u32 %v134, 7
    %v136 = vsub.s32 0, %v135
    %v137 = vrot.slane %v132, %v136
    %v139 = vadd.f32 %v131, %v137
    %140 = vst [vmem:[%s3] sm:$0xff] %v139
  $region21: #{faster_rcnn_forward.10} parent=0 // pred_fallthru
    _
  // Predicated region
  $region22: #{faster_rcnn_forward.10} parent=0 // pred_check
    _
  $region23: #{faster_rcnn_forward.10} parent=0 // pred_check_branch
    %142 = sbr.rel (0) target = $region25
  $region24: #{faster_rcnn_forward.10} parent=0 // pred_region
    _
  $region25: #{faster_rcnn_forward.10} parent=0 // pred_fallthru
    _
  // Predicated region
  $region26: #{faster_rcnn_forward.10} parent=0 // pred_check
    _
  $region27: #{faster_rcnn_forward.10} parent=0 // pred_check_branch
    %144 = sbr.rel (0) target = $region29
  $region28: #{faster_rcnn_forward.10} parent=0 // pred_region
    _
  $region29: #{faster_rcnn_forward.10} parent=0 // pred_fallthru
    _

// kernel: faster_rcnn_forward.9
$region0: #{faster_rcnn_forward.9}
  #allocation0 [shape = 'u32[]', space=smem, size = 0x4, offset = 0x4, fixed_abs, tag = 'smem constant byte address 0x4 - core index']
  #allocation1 [shape = 'u32[144,128]{1,0:T(1,128)}', space=vmem, size = 0x12000, scoped, tag = 'internal scratch']
  #allocation2 [shape = 'f32[24,128]{1,0:T(8,128)}', space=vmem, size = 0x3000, scoped, tag = 'scratch operand']
  %s0 = inlined_call_operand.vmem [shape: bf16[24,8192], index: 0, kind: input, shape index: {}]
  %s1 = inlined_call_operand.vmem [shape: bf16[8192,128], index: 1, kind: input, shape index: {}]
  %s2 = inlined_call_operand.vmem [shape: f32[1,128], index: 2, kind: input, shape index: {}]
  %s3 = inlined_call_operand.vmem [shape: bf16[24,128], index: 3, kind: output, shape index: {}]
  %s4 = sld [smem:[#allocation0]]
  $region76: #{faster_rcnn_forward.9} parent=0
    _
  %s6 = ssub.s32 1, %s4
  %s7 = scalar_select 0, %s6, %s4
  $region1: #{faster_rcnn_forward.9} parent=0
    #allocation3 [shape = 'u8[196608]{0}', space=vmem, size = 0x30000, scoped, tag = 'input window, operand 0']
    loop: start=0, step=1, limit=6
    $region2: #{faster_rcnn_forward.9} parent=1 // loop_pre_header
      _
    $region3: #{faster_rcnn_forward.9} parent=1 // loop_header
      %s9 = sphi 0, %s13
      %p10 = scmp.ge.s32.totalorder %s9, 6
      %s16 = sphi 0, %s35
      %s17 = sphi 0, %s31
      %s18 = sphi 0, %s27
      %s19 = sphi 0, %s16
      %s20 = sphi 0, %s17
      %s21 = sphi 0, %s18
      %s22 = sphi 0, %s19
      %s23 = sphi 0, %s20
      %s24 = sphi 0, %s21
      %s40 = sphi 0, %s42
      %s43 = sphi 0, %s40
      %s44 = sphi 0, %s43
      %s60 = sphi 0, %s44
      %s68 = sphi 0, %s70
      %s71 = sphi 0, %s68
      %s72 = sphi 0, %s71
      %s88 = sphi 0, %s72
      %s94 = sphi 0, %s96
      %s97 = sphi 0, %s94
      %s98 = sphi 0, %s97
      %s114 = sphi 0, %s98
      %s122 = sphi 0, %s124
      %s125 = sphi 0, %s122
      %s126 = sphi 0, %s125
      %s142 = sphi 0, %s126
    $region4: #{faster_rcnn_forward.9} parent=1 // loop_header_branch
      %12 = sbr.rel (%p10) target = $region8
    $region5: #{faster_rcnn_forward.9} parent=1 // loop_body
      %s14 = ssub.s32 %s9, 1
      %s15 = ssub.s32 %s9, 2
      %s25 = sadd.s32 1, %s18
      %p26 = scmp.ge.s32.totalorder %s25, 4
      %s27 = scalar_select %p26, 0, %s25
      %s28 = sadd.s32 1, %s17
      %s29 = scalar_select %p26, %s28, %s17
      %p30 = scmp.ge.s32.totalorder %s29, 1
      %s31 = scalar_select %p30, 0, %s29
      %s32 = sadd.s32 1, %s16
      %s33 = scalar_select %p30, %s32, %s16
      %p34 = scmp.ge.s32.totalorder %s33, 1
      %s35 = scalar_select %p34, 0, %s33
      %s36 = ssub.s32 %s16, %s35
      %s37 = ssub.s32 %s18, %s27
      %s38 = sor.u32 %s36, %s37
      %p39 = scmp.eq.s32.totalorder %s38, 0
      %s41 = sadd.s32 %s40, 1
      %s42 = scalar_select %p39, %s40, %s41
      %p45 = pneg %p39
      %p46 = scmp.eq.s32.totalorder %s9, 3
      %p47 = por %p45, %p46
      %p48 = scmp.ne.s32.totalorder %s40, %s43
      %p49 = scmp.eq.s32.totalorder %s9, 0
      %p50 = por %p48, %p49
      %p51 = scmp.ne.s32.totalorder %s40, %s43
      %p52 = scmp.eq.s32.totalorder %s14, 3
      %p53 = por %p51, %p52
      %p54 = scmp.ne.s32.totalorder %s43, %s44
      %p55 = scmp.eq.s32.totalorder %s14, 0
      %p56 = por %p54, %p55
      %p57 = scmp.ne.s32.totalorder %s43, %s44
      %p58 = scmp.eq.s32.totalorder %s15, 3
      %p59 = por %p57, %p58
      %p61 = scmp.ne.s32.totalorder %s44, %s60
      %p62 = scmp.eq.s32.totalorder %s15, 0
      %p63 = por %p61, %p62
      %s64 = ssub.s32 %s18, %s27
      %s65 = ssub.s32 %s17, %s31
      %s66 = sor.u32 %s64, %s65
      %p67 = scmp.eq.s32.totalorder %s66, 0
      %s69 = sadd.s32 %s68, 1
      %s70 = scalar_select %p67, %s68, %s69
      %p73 = pneg %p67
      %p74 = scmp.eq.s32.totalorder %s9, 3
      %p75 = por %p73, %p74
      %p76 = scmp.ne.s32.totalorder %s68, %s71
      %p77 = scmp.eq.s32.totalorder %s9, 0
      %p78 = por %p76, %p77
      %p79 = scmp.ne.s32.totalorder %s68, %s71
      %p80 = scmp.eq.s32.totalorder %s14, 3
      %p81 = por %p79, %p80
      %p82 = scmp.ne.s32.totalorder %s71, %s72
      %p83 = scmp.eq.s32.totalorder %s14, 0
      %p84 = por %p82, %p83
      %p85 = scmp.ne.s32.totalorder %s71, %s72
      %p86 = scmp.eq.s32.totalorder %s15, 3
      %p87 = por %p85, %p86
      %p89 = scmp.ne.s32.totalorder %s72, %s88
      %p90 = scmp.eq.s32.totalorder %s15, 0
      %p91 = por %p89, %p90
      %s92 = ssub.s32 %s17, %s31
      %p93 = scmp.eq.s32.totalorder %s92, 0
      %s95 = sadd.s32 %s94, 1
      %s96 = scalar_select %p93, %s94, %s95
      %p99 = pneg %p93
      %p100 = scmp.eq.s32.totalorder %s9, 3
      %p101 = por %p99, %p100
      %p102 = scmp.ne.s32.totalorder %s94, %s97
      %p103 = scmp.eq.s32.totalorder %s9, 0
      %p104 = por %p102, %p103
      %p105 = scmp.ne.s32.totalorder %s94, %s97
      %p106 = scmp.eq.s32.totalorder %s14, 3
      %p107 = por %p105, %p106
      %p108 = scmp.ne.s32.totalorder %s97, %s98
      %p109 = scmp.eq.s32.totalorder %s14, 0
      %p110 = por %p108, %p109
      %p111 = scmp.ne.s32.totalorder %s97, %s98
      %p112 = scmp.eq.s32.totalorder %s15, 3
      %p113 = por %p111, %p112
      %p115 = scmp.ne.s32.totalorder %s98, %s114
      %p116 = scmp.eq.s32.totalorder %s15, 0
      %p117 = por %p115, %p116
      %s118 = ssub.s32 %s16, %s35
      %s119 = ssub.s32 %s17, %s31
      %s120 = sor.u32 %s118, %s119
      %p121 = scmp.eq.s32.totalorder %s120, 0
      %s123 = sadd.s32 %s122, 1
      %s124 = scalar_select %p121, %s122, %s123
      %p127 = pneg %p121
      %p128 = scmp.eq.s32.totalorder %s9, 3
      %p129 = por %p127, %p128
      %p130 = scmp.ne.s32.totalorder %s122, %s125
      %p131 = scmp.eq.s32.totalorder %s9, 0
      %p132 = por %p130, %p131
      %p133 = scmp.ne.s32.totalorder %s122, %s125
      %p134 = scmp.eq.s32.totalorder %s14, 3
      %p135 = por %p133, %p134
      %p136 = scmp.ne.s32.totalorder %s125, %s126
      %p137 = scmp.eq.s32.totalorder %s14, 0
      %p138 = por %p136, %p137
      %p139 = scmp.ne.s32.totalorder %s125, %s126
      %p140 = scmp.eq.s32.totalorder %s15, 3
      %p141 = por %p139, %p140
      %p143 = scmp.ne.s32.totalorder %s126, %s142
      %p144 = scmp.eq.s32.totalorder %s15, 0
      %p145 = por %p143, %p144
      %p146 = scmp.le.s32.totalorder 1, %s9
      %p147 = scmp.lt.s32.totalorder %s9, 5
      %p148 = pnand %p146, %p147
      %p149 = pneg %p148
      // Predicated region
      $region9: #{faster_rcnn_forward.9} parent=5 // pred_check
        _
      $region10: #{faster_rcnn_forward.9} parent=5 // pred_check_branch
        %151 = sbr.rel (%p148) target = $region12
      $region11: #{faster_rcnn_forward.9} parent=5 // pred_region
        %s152 = ssub.s32 %s9, 1
        // Predicated region
        $region13: #{faster_rcnn_forward.9} parent=11 // pred_check
          %p153 = pneg %p110
        $region14: #{faster_rcnn_forward.9} parent=11 // pred_check_branch
          %155 = sbr.rel (%p153) target = $region16
        $region15: #{faster_rcnn_forward.9} parent=11 // pred_region
          %p156 = scmp.lt.s32.totalorder %s20, 0
          %s157 = scalar_select %p156, %s20, 0
          %s158 = scalar_lea.vmem %s2, %s157
        $region16: #{faster_rcnn_forward.9} parent=11 // pred_fallthru
          _
      $region12: #{faster_rcnn_forward.9} parent=5 // pred_fallthru
        _
      %p159 = scmp.lt.s32.totalorder %s9, 4
      // Predicated region
      $region17: #{faster_rcnn_forward.9} parent=5 // pred_check
        %p160 = pneg %p159
      $region18: #{faster_rcnn_forward.9} parent=5 // pred_check_branch
        %162 = sbr.rel (%p160) target = $region20
      $region19: #{faster_rcnn_forward.9} parent=5 // pred_region
        // Predicated region
        $region21: #{faster_rcnn_forward.9} parent=19 // pred_check
          %p163 = pneg %p50
        $region22: #{faster_rcnn_forward.9} parent=19 // pred_check_branch
          %165 = sbr.rel (%p163) target = $region24
        $region23: #{faster_rcnn_forward.9} parent=19 // pred_region
          %s166 = sand.u32 %s40, 1
          %s167 = sand.u32 %s40, 1
          %s168 = smul.addr %s167, 192
          %s169 = scalar_lea.vmem [#allocation3], %s168
          %s170 = smul.u32 3, %s16
          %s171 = smul.u32 16, %s18
          %s172 = smul.addr %s170, 64
          %s173 = sadd.s32 %s171, %s172
          %s174 = smul.addr %s173, 4
          %s175 = scalar_lea.vmem %s0, %s174
          // Predicated region
          $region25: #{faster_rcnn_forward.9} parent=23 // pred_check
            _
          $region26: #{faster_rcnn_forward.9} parent=23 // pred_check_branch
            %177 = sbr.rel (0) target = $region28
          $region27: #{faster_rcnn_forward.9} parent=23 // pred_region
            // Predicated region
            $region29: #{faster_rcnn_forward.9} parent=27 // pred_check
              _
            $region30: #{faster_rcnn_forward.9} parent=27 // pred_check_branch
              %179 = sbr.rel (0) target = $region32
            $region31: #{faster_rcnn_forward.9} parent=27 // pred_region
              loop: start=0, step=1, limit=1
              $region33: #{faster_rcnn_forward.9} parent=31 // loop_pre_header
                _
              $region34: #{faster_rcnn_forward.9} parent=31 // loop_header
                %s181 = sphi 0, %s185
                %p182 = scmp.ge.s32.totalorder %s181, 1
                %s186 = sphi %s175, %s175
                %s187 = sphi %s169, %s169
              $region35: #{faster_rcnn_forward.9} parent=31 // loop_header_branch
                %184 = sbr.rel (%p182) target = $region39
              $region36: #{faster_rcnn_forward.9} parent=31 // loop_body
                %v188 = vld [vmem:[%s186] sm:$0xff]
                %189 = vst [vmem:[%s187] sm:$0xff] %v188
                %v190 = vld [vmem:[%s186 + $0x8] sm:$0xff]
                %191 = vst [vmem:[%s187 + $0x8] sm:$0xff] %v190
                %v192 = vld [vmem:[%s186 + $0x10] sm:$0xff]
                %193 = vst [vmem:[%s187 + $0x10] sm:$0xff] %v192
                %v194 = vld [vmem:[%s186 + $0x18] sm:$0xff]
                %195 = vst [vmem:[%s187 + $0x18] sm:$0xff] %v194
                %v196 = vld [vmem:[%s186 + $0x20] sm:$0xff]
                %197 = vst [vmem:[%s187 + $0x20] sm:$0xff] %v196
                %v198 = vld [vmem:[%s186 + $0x28] sm:$0xff]
                %199 = vst [vmem:[%s187 + $0x28] sm:$0xff] %v198
                %v200 = vld [vmem:[%s186 + $0x30] sm:$0xff]
                %201 = vst [vmem:[%s187 + $0x30] sm:$0xff] %v200
                %v202 = vld [vmem:[%s186 + $0x38] sm:$0xff]
                %203 = vst [vmem:[%s187 + $0x38] sm:$0xff] %v202
                %v204 = vld [vmem:[%s186 + $0x100] sm:$0xff]
                %205 = vst [vmem:[%s187 + $0x40] sm:$0xff] %v204
                %v206 = vld [vmem:[%s186 + $0x108] sm:$0xff]
                %207 = vst [vmem:[%s187 + $0x48] sm:$0xff] %v206
                %v208 = vld [vmem:[%s186 + $0x110] sm:$0xff]
                %209 = vst [vmem:[%s187 + $0x50] sm:$0xff] %v208
                %v210 = vld [vmem:[%s186 + $0x118] sm:$0xff]
                %211 = vst [vmem:[%s187 + $0x58] sm:$0xff] %v210
                %v212 = vld [vmem:[%s186 + $0x120] sm:$0xff]
                %213 = vst [vmem:[%s187 + $0x60] sm:$0xff] %v212
                %v214 = vld [vmem:[%s186 + $0x128] sm:$0xff]
                %215 = vst [vmem:[%s187 + $0x68] sm:$0xff] %v214
                %v216 = vld [vmem:[%s186 + $0x130] sm:$0xff]
                %217 = vst [vmem:[%s187 + $0x70] sm:$0xff] %v216
                %v218 = vld [vmem:[%s186 + $0x138] sm:$0xff]
                %219 = vst [vmem:[%s187 + $0x78] sm:$0xff] %v218
                %v220 = vld [vmem:[%s186 + $0x200] sm:$0xff]
                %221 = vst [vmem:[%s187 + $0x80] sm:$0xff] %v220
                %v222 = vld [vmem:[%s186 + $0x208] sm:$0xff]
                %223 = vst [vmem:[%s187 + $0x88] sm:$0xff] %v222
                %v224 = vld [vmem:[%s186 + $0x210] sm:$0xff]
                %225 = vst [vmem:[%s187 + $0x90] sm:$0xff] %v224
                %v226 = vld [vmem:[%s186 + $0x218] sm:$0xff]
                %227 = vst [vmem:[%s187 + $0x98] sm:$0xff] %v226
                %v228 = vld [vmem:[%s186 + $0x220] sm:$0xff]
                %229 = vst [vmem:[%s187 + $0xa0] sm:$0xff] %v228
                %v230 = vld [vmem:[%s186 + $0x228] sm:$0xff]
                %231 = vst [vmem:[%s187 + $0xa8] sm:$0xff] %v230
                %v232 = vld [vmem:[%s186 + $0x230] sm:$0xff]
                %233 = vst [vmem:[%s187 + $0xb0] sm:$0xff] %v232
                %v234 = vld [vmem:[%s186 + $0x238] sm:$0xff]
                %235 = vst [vmem:[%s187 + $0xb8] sm:$0xff] %v234
              $region37: #{faster_rcnn_forward.9} parent=31 // loop_footer
                %s185 = sadd.s32 1, %s181
              $region38: #{faster_rcnn_forward.9} parent=31 // loop_footer_branch
                %180 = sbr.rel target = $region34
              $region39: #{faster_rcnn_forward.9} parent=31 // loop_exit
                _
            $region32: #{faster_rcnn_forward.9} parent=27 // pred_fallthru
              _
            // Predicated region
            $region40: #{faster_rcnn_forward.9} parent=27 // pred_check
              _
            $region41: #{faster_rcnn_forward.9} parent=27 // pred_check_branch
              %237 = sbr.rel target = $region43
            $region42: #{faster_rcnn_forward.9} parent=27 // pred_region
              _
            $region43: #{faster_rcnn_forward.9} parent=27 // pred_fallthru
              _
          $region28: #{faster_rcnn_forward.9} parent=23 // pred_fallthru
            _
          %238 = vnop
        $region24: #{faster_rcnn_forward.9} parent=19 // pred_fallthru
          _
        // Predicated region
        $region44: #{faster_rcnn_forward.9} parent=19 // pred_check
          %p239 = pneg %p78
        $region45: #{faster_rcnn_forward.9} parent=19 // pred_check_branch
          %241 = sbr.rel (%p239) target = $region47
        $region46: #{faster_rcnn_forward.9} parent=19 // pred_region
          %s242 = smul.u32 256, %s18
          %p243 = scmp.lt.s32.totalorder %s242, 1023
          %s244 = scalar_select %p243, %s242, 1023
          %p245 = scmp.lt.s32.totalorder %s17, 0
          %s246 = scalar_select %p245, %s17, 0
          %s247 = sadd.s32 %s246, %s244
          %s248 = smul.addr %s247, 4
          %s249 = scalar_lea.vmem %s1, %s248
          %s250 = smul.u32 256, %s18
        $region47: #{faster_rcnn_forward.9} parent=19 // pred_fallthru
          _
      $region20: #{faster_rcnn_forward.9} parent=5 // pred_fallthru
        _
      %p251 = scmp.le.s32.totalorder 1, %s9
      %p252 = scmp.lt.s32.totalorder %s9, 5
      %p253 = pnand %p251, %p252
      %p254 = pneg %p253
      // Predicated region
      $region48: #{faster_rcnn_forward.9} parent=5 // pred_check
        _
      $region49: #{faster_rcnn_forward.9} parent=5 // pred_check_branch
        %256 = sbr.rel (%p253) target = $region51
      $region50: #{faster_rcnn_forward.9} parent=5 // pred_region
        %s257 = ssub.s32 %s9, 1
        %s258 = sand.u32 %s43, 1
        %s259 = sand.u32 %s43, 1
        %s260 = smul.addr %s259, 192
        %s261 = scalar_lea.vmem [#allocation3], %s260
        // Predicated region
        $region52: #{faster_rcnn_forward.9} parent=50 // pred_check
          %p262 = pneg %p56
        $region53: #{faster_rcnn_forward.9} parent=50 // pred_check_branch
          %264 = sbr.rel (%p262) target = $region55
        $region54: #{faster_rcnn_forward.9} parent=50 // pred_region
          _
        $region55: #{faster_rcnn_forward.9} parent=50 // pred_fallthru
          _
        %s265 = sand.u32 %s43, 1
        %s266 = sand.u32 %s43, 1
        %s267 = smul.addr %s266, 192
        %s268 = scalar_lea.vmem [#allocation3], %s267
        %p269 = pneg %p56
        %p270 = pneg %p53
        %s271 = smul.u32 256, %s21
        %p272 = scmp.lt.s32.totalorder %s271, 1023
        %s273 = scalar_select %p272, %s271, 1023
        %p274 = scmp.lt.s32.totalorder %s20, 0
        %s275 = scalar_select %p274, %s20, 0
        %s276 = sadd.s32 %s275, %s273
        %s277 = smul.addr %s276, 4
        %s278 = scalar_lea.vmem %s1, %s277
        %p279 = pneg %p84
        %p280 = pneg %p81
        %p281 = scmp.lt.s32.totalorder %s20, 0
        %s282 = scalar_select %p281, %s20, 0
        %s283 = scalar_lea.vmem %s2, %s282
        %p284 = pneg %p110
        %p285 = pneg %p107
        %p286 = pneg %p138
        %p287 = pneg %p135
        %s288 = smul.u32 3, %s19
        %p289 = scmp.lt.s32.totalorder %s288, 2
        %s290 = scalar_select %p289, %s288, 2
        %p291 = scmp.lt.s32.totalorder %s20, 0
        %s292 = scalar_select %p291, %s20, 0
        %s293 = sadd.s32 %s292, %s290
        %s294 = smul.addr %s293, 4
        %s295 = scalar_lea.vmem %s3, %s294
        %s296 = smul.u32 3, %s19
        %s297 = smul.u32 16, %s21
        %s298 = smul.u32 256, %s21
        %p299 = scmp.lt.s32.totalorder %s298, 1023
        %s300 = scalar_select %p299, %s298, 1023
        %p301 = scmp.lt.s32.totalorder %s20, 0
        %s302 = scalar_select %p301, %s20, 0
        %s303 = sadd.s32 %s302, %s300
        %s304 = smul.addr %s303, 4
        %s305 = scalar_lea.vmem %s1, %s304
        %s306 = smul.u32 256, %s21
        %p307 = scmp.lt.s32.totalorder %s20, 0
        %s308 = scalar_select %p307, %s20, 0
        %s309 = scalar_lea.vmem %s2, %s308
        %s310 = smul.u32 3, %s19
        %p311 = scmp.lt.s32.totalorder %s310, 2
        %s312 = scalar_select %p311, %s310, 2
        %p313 = scmp.lt.s32.totalorder %s20, 0
        %s314 = scalar_select %p313, %s20, 0
        %s315 = sadd.s32 %s314, %s312
        %s316 = smul.addr %s315, 4
        %s317 = scalar_lea.vmem %s3, %s316
        %s318 = smul.u32 3, %s19
        %p320 = scmp.eq.s32.totalorder %s21, 0
        // Predicated region
        $region56: #{faster_rcnn_forward.9} parent=50 // pred_check
          %p321 = pneg %p320
        $region57: #{faster_rcnn_forward.9} parent=50 // pred_check_branch
          %323 = sbr.rel (%p321) target = $region59
        $region58: #{faster_rcnn_forward.9} parent=50 // pred_region
          %324 = vst [vmem:[#allocation2] sm:$0xff] 0.0
          %325 = vst [vmem:[#allocation2 + $0x8] sm:$0xff] 0.0
          %326 = vst [vmem:[#allocation2 + $0x10] sm:$0xff] 0.0
        $region59: #{faster_rcnn_forward.9} parent=50 // pred_fallthru
          _
        %v327 = vld [vmem:[#allocation2] sm:$0xff]
        %v328 = vld [vmem:[#allocation2 + $0x8] sm:$0xff]
        %v329 = vld [vmem:[#allocation2 + $0x10] sm:$0xff]
        %v330 = vld [vmem:[%s261] sm:$0xff]
        %v331 = vld [vmem:[%s261 + $0x8] sm:$0xff]
        %v332 = vld [vmem:[%s261 + $0x10] sm:$0xff]
        %v333 = vld [vmem:[%s261 + $0x18] sm:$0xff]
        %v334 = vld [vmem:[%s261 + $0x20] sm:$0xff]
        %v335 = vld [vmem:[%s261 + $0x28] sm:$0xff]
        %v336 = vld [vmem:[%s261 + $0x30] sm:$0xff]
        %v337 = vld [vmem:[%s261 + $0x38] sm:$0xff]
        %v338 = vld [vmem:[%s261 + $0x40] sm:$0xff]
        %v339 = vld [vmem:[%s261 + $0x48] sm:$0xff]
        %v340 = vld [vmem:[%s261 + $0x50] sm:$0xff]
        %v341 = vld [vmem:[%s261 + $0x58] sm:$0xff]
        %v342 = vld [vmem:[%s261 + $0x60] sm:$0xff]
        %v343 = vld [vmem:[%s261 + $0x68] sm:$0xff]
        %v344 = vld [vmem:[%s261 + $0x70] sm:$0xff]
        %v345 = vld [vmem:[%s261 + $0x78] sm:$0xff]
        %v346 = vld [vmem:[%s261 + $0x80] sm:$0xff]
        %v347 = vld [vmem:[%s261 + $0x88] sm:$0xff]
        %v348 = vld [vmem:[%s261 + $0x90] sm:$0xff]
        %v349 = vld [vmem:[%s261 + $0x98] sm:$0xff]
        %v350 = vld [vmem:[%s261 + $0xa0] sm:$0xff]
        %v351 = vld [vmem:[%s261 + $0xa8] sm:$0xff]
        %v352 = vld [vmem:[%s261 + $0xb0] sm:$0xff]
        %v353 = vld [vmem:[%s261 + $0xb8] sm:$0xff]
        %v354 = vld [vmem:[%s305] sm:$0xf]
        %v355 = vld [vmem:[%s305 + $0x4] sm:$0xf]
        %v356 = vld [vmem:[%s305 + $0x8] sm:$0xf]
        %v357 = vld [vmem:[%s305 + $0xc] sm:$0xf]
        %v358 = vld [vmem:[%s305 + $0x10] sm:$0xf]
        %v359 = vld [vmem:[%s305 + $0x14] sm:$0xf]
        %v360 = vld [vmem:[%s305 + $0x18] sm:$0xf]
        %v361 = vld [vmem:[%s305 + $0x1c] sm:$0xf]
        %v362 = vld [vmem:[%s305 + $0x20] sm:$0xf]
        %v363 = vld [vmem:[%s305 + $0x24] sm:$0xf]
        %v364 = vld [vmem:[%s305 + $0x28] sm:$0xf]
        %v365 = vld [vmem:[%s305 + $0x2c] sm:$0xf]
        %v366 = vld [vmem:[%s305 + $0x30] sm:$0xf]
        %v367 = vld [vmem:[%s305 + $0x34] sm:$0xf]
        %v368 = vld [vmem:[%s305 + $0x38] sm:$0xf]
        %v369 = vld [vmem:[%s305 + $0x3c] sm:$0xf]
        %v370 = vld [vmem:[%s305 + $0x40] sm:$0xf]
        %v371 = vld [vmem:[%s305 + $0x44] sm:$0xf]
        %v372 = vld [vmem:[%s305 + $0x48] sm:$0xf]
        %v373 = vld [vmem:[%s305 + $0x4c] sm:$0xf]
        %v374 = vld [vmem:[%s305 + $0x50] sm:$0xf]
        %v375 = vld [vmem:[%s305 + $0x54] sm:$0xf]
        %v376 = vld [vmem:[%s305 + $0x58] sm:$0xf]
        %v377 = vld [vmem:[%s305 + $0x5c] sm:$0xf]
        %v378 = vld [vmem:[%s305 + $0x60] sm:$0xf]
        %v379 = vld [vmem:[%s305 + $0x64] sm:$0xf]
        %v380 = vld [vmem:[%s305 + $0x68] sm:$0xf]
        %v381 = vld [vmem:[%s305 + $0x6c] sm:$0xf]
        %v382 = vld [vmem:[%s305 + $0x70] sm:$0xf]
        %v383 = vld [vmem:[%s305 + $0x74] sm:$0xf]
        %v384 = vld [vmem:[%s305 + $0x78] sm:$0xf]
        %v385 = vld [vmem:[%s305 + $0x7c] sm:$0xf]
        %v386 = vld [vmem:[%s305 + $0x80] sm:$0xf]
        %v387 = vld [vmem:[%s305 + $0x84] sm:$0xf]
        %v388 = vld [vmem:[%s305 + $0x88] sm:$0xf]
        %v389 = vld [vmem:[%s305 + $0x8c] sm:$0xf]
        %v390 = vld [vmem:[%s305 + $0x90] sm:$0xf]
        %v391 = vld [vmem:[%s305 + $0x94] sm:$0xf]
        %v392 = vld [vmem:[%s305 + $0x98] sm:$0xf]
        %v393 = vld [vmem:[%s305 + $0x9c] sm:$0xf]
        %v394 = vld [vmem:[%s305 + $0xa0] sm:$0xf]
        %v395 = vld [vmem:[%s305 + $0xa4] sm:$0xf]
        %v396 = vld [vmem:[%s305 + $0xa8] sm:$0xf]
        %v397 = vld [vmem:[%s305 + $0xac] sm:$0xf]
        %v398 = vld [vmem:[%s305 + $0xb0] sm:$0xf]
        %v399 = vld [vmem:[%s305 + $0xb4] sm:$0xf]
        %v400 = vld [vmem:[%s305 + $0xb8] sm:$0xf]
        %v401 = vld [vmem:[%s305 + $0xbc] sm:$0xf]
        %v402 = vld [vmem:[%s305 + $0xc0] sm:$0xf]
        %v403 = vld [vmem:[%s305 + $0xc4] sm:$0xf]
        %v404 = vld [vmem:[%s305 + $0xc8] sm:$0xf]
        %v405 = vld [vmem:[%s305 + $0xcc] sm:$0xf]
        %v406 = vld [vmem:[%s305 + $0xd0] sm:$0xf]
        %v407 = vld [vmem:[%s305 + $0xd4] sm:$0xf]
        %v408 = vld [vmem:[%s305 + $0xd8] sm:$0xf]
        %v409 = vld [vmem:[%s305 + $0xdc] sm:$0xf]
        %v410 = vld [vmem:[%s305 + $0xe0] sm:$0xf]
        %v411 = vld [vmem:[%s305 + $0xe4] sm:$0xf]
        %v412 = vld [vmem:[%s305 + $0xe8] sm:$0xf]
        %v413 = vld [vmem:[%s305 + $0xec] sm:$0xf]
        %v414 = vld [vmem:[%s305 + $0xf0] sm:$0xf]
        %v415 = vld [vmem:[%s305 + $0xf4] sm:$0xf]
        %v416 = vld [vmem:[%s305 + $0xf8] sm:$0xf]
        %v417 = vld [vmem:[%s305 + $0xfc] sm:$0xf]
        %v418 = vld [vmem:[%s305 + $0x100] sm:$0xf]
        %v419 = vld [vmem:[%s305 + $0x104] sm:$0xf]
        %v420 = vld [vmem:[%s305 + $0x108] sm:$0xf]
        %v421 = vld [vmem:[%s305 + $0x10c] sm:$0xf]
        %v422 = vld [vmem:[%s305 + $0x110] sm:$0xf]
        %v423 = vld [vmem:[%s305 + $0x114] sm:$0xf]
        %v424 = vld [vmem:[%s305 + $0x118] sm:$0xf]
        %v425 = vld [vmem:[%s305 + $0x11c] sm:$0xf]
        %v426 = vld [vmem:[%s305 + $0x120] sm:$0xf]
        %v427 = vld [vmem:[%s305 + $0x124] sm:$0xf]
        %v428 = vld [vmem:[%s305 + $0x128] sm:$0xf]
        %v429 = vld [vmem:[%s305 + $0x12c] sm:$0xf]
        %v430 = vld [vmem:[%s305 + $0x130] sm:$0xf]
        %v431 = vld [vmem:[%s305 + $0x134] sm:$0xf]
        %v432 = vld [vmem:[%s305 + $0x138] sm:$0xf]
        %v433 = vld [vmem:[%s305 + $0x13c] sm:$0xf]
        %v434 = vld [vmem:[%s305 + $0x140] sm:$0xf]
        %v435 = vld [vmem:[%s305 + $0x144] sm:$0xf]
        %v436 = vld [vmem:[%s305 + $0x148] sm:$0xf]
        %v437 = vld [vmem:[%s305 + $0x14c] sm:$0xf]
        %v438 = vld [vmem:[%s305 + $0x150] sm:$0xf]
        %v439 = vld [vmem:[%s305 + $0x154] sm:$0xf]
        %v440 = vld [vmem:[%s305 + $0x158] sm:$0xf]
        %v441 = vld [vmem:[%s305 + $0x15c] sm:$0xf]
        %v442 = vld [vmem:[%s305 + $0x160] sm:$0xf]
        %v443 = vld [vmem:[%s305 + $0x164] sm:$0xf]
        %v444 = vld [vmem:[%s305 + $0x168] sm:$0xf]
        %v445 = vld [vmem:[%s305 + $0x16c] sm:$0xf]
        %v446 = vld [vmem:[%s305 + $0x170] sm:$0xf]
        %v447 = vld [vmem:[%s305 + $0x174] sm:$0xf]
        %v448 = vld [vmem:[%s305 + $0x178] sm:$0xf]
        %v449 = vld [vmem:[%s305 + $0x17c] sm:$0xf]
        %v450 = vld [vmem:[%s305 + $0x180] sm:$0xf]
        %v451 = vld [vmem:[%s305 + $0x184] sm:$0xf]
        %v452 = vld [vmem:[%s305 + $0x188] sm:$0xf]
        %v453 = vld [vmem:[%s305 + $0x18c] sm:$0xf]
        %v454 = vld [vmem:[%s305 + $0x190] sm:$0xf]
        %v455 = vld [vmem:[%s305 + $0x194] sm:$0xf]
        %v456 = vld [vmem:[%s305 + $0x198] sm:$0xf]
        %v457 = vld [vmem:[%s305 + $0x19c] sm:$0xf]
        %v458 = vld [vmem:[%s305 + $0x1a0] sm:$0xf]
        %v459 = vld [vmem:[%s305 + $0x1a4] sm:$0xf]
        %v460 = vld [vmem:[%s305 + $0x1a8] sm:$0xf]
        %v461 = vld [vmem:[%s305 + $0x1ac] sm:$0xf]
        %v462 = vld [vmem:[%s305 + $0x1b0] sm:$0xf]
        %v463 = vld [vmem:[%s305 + $0x1b4] sm:$0xf]
        %v464 = vld [vmem:[%s305 + $0x1b8] sm:$0xf]
        %v465 = vld [vmem:[%s305 + $0x1bc] sm:$0xf]
        %v466 = vld [vmem:[%s305 + $0x1c0] sm:$0xf]
        %v467 = vld [vmem:[%s305 + $0x1c4] sm:$0xf]
        %v468 = vld [vmem:[%s305 + $0x1c8] sm:$0xf]
        %v469 = vld [vmem:[%s305 + $0x1cc] sm:$0xf]
        %v470 = vld [vmem:[%s305 + $0x1d0] sm:$0xf]
        %v471 = vld [vmem:[%s305 + $0x1d4] sm:$0xf]
        %v472 = vld [vmem:[%s305 + $0x1d8] sm:$0xf]
        %v473 = vld [vmem:[%s305 + $0x1dc] sm:$0xf]
        %v474 = vld [vmem:[%s305 + $0x1e0] sm:$0xf]
        %v475 = vld [vmem:[%s305 + $0x1e4] sm:$0xf]
        %v476 = vld [vmem:[%s305 + $0x1e8] sm:$0xf]
        %v477 = vld [vmem:[%s305 + $0x1ec] sm:$0xf]
        %v478 = vld [vmem:[%s305 + $0x1f0] sm:$0xf]
        %v479 = vld [vmem:[%s305 + $0x1f4] sm:$0xf]
        %v480 = vld [vmem:[%s305 + $0x1f8] sm:$0xf]
        %v481 = vld [vmem:[%s305 + $0x1fc] sm:$0xf]
        %v482 = vld [vmem:[%s305 + $0x200] sm:$0xf]
        %v483 = vld [vmem:[%s305 + $0x204] sm:$0xf]
        %v484 = vld [vmem:[%s305 + $0x208] sm:$0xf]
        %v485 = vld [vmem:[%s305 + $0x20c] sm:$0xf]
        %v486 = vld [vmem:[%s305 + $0x210] sm:$0xf]
        %v487 = vld [vmem:[%s305 + $0x214] sm:$0xf]
        %v488 = vld [vmem:[%s305 + $0x218] sm:$0xf]
        %v489 = vld [vmem:[%s305 + $0x21c] sm:$0xf]
        %v490 = vld [vmem:[%s305 + $0x220] sm:$0xf]
        %v491 = vld [vmem:[%s305 + $0x224] sm:$0xf]
        %v492 = vld [vmem:[%s305 + $0x228] sm:$0xf]
        %v493 = vld [vmem:[%s305 + $0x22c] sm:$0xf]
        %v494 = vld [vmem:[%s305 + $0x230] sm:$0xf]
        %v495 = vld [vmem:[%s305 + $0x234] sm:$0xf]
        %v496 = vld [vmem:[%s305 + $0x238] sm:$0xf]
        %v497 = vld [vmem:[%s305 + $0x23c] sm:$0xf]
        %v498 = vld [vmem:[%s305 + $0x240] sm:$0xf]
        %v499 = vld [vmem:[%s305 + $0x244] sm:$0xf]
        %v500 = vld [vmem:[%s305 + $0x248] sm:$0xf]
        %v501 = vld [vmem:[%s305 + $0x24c] sm:$0xf]
        %v502 = vld [vmem:[%s305 + $0x250] sm:$0xf]
        %v503 = vld [vmem:[%s305 + $0x254] sm:$0xf]
        %v504 = vld [vmem:[%s305 + $0x258] sm:$0xf]
        %v505 = vld [vmem:[%s305 + $0x25c] sm:$0xf]
        %v506 = vld [vmem:[%s305 + $0x260] sm:$0xf]
        %v507 = vld [vmem:[%s305 + $0x264] sm:$0xf]
        %v508 = vld [vmem:[%s305 + $0x268] sm:$0xf]
        %v509 = vld [vmem:[%s305 + $0x26c] sm:$0xf]
        %v510 = vld [vmem:[%s305 + $0x270] sm:$0xf]
        %v511 = vld [vmem:[%s305 + $0x274] sm:$0xf]
        %v512 = vld [vmem:[%s305 + $0x278] sm:$0xf]
        %v513 = vld [vmem:[%s305 + $0x27c] sm:$0xf]
        %v514 = vld [vmem:[%s305 + $0x280] sm:$0xf]
        %v515 = vld [vmem:[%s305 + $0x284] sm:$0xf]
        %v516 = vld [vmem:[%s305 + $0x288] sm:$0xf]
        %v517 = vld [vmem:[%s305 + $0x28c] sm:$0xf]
        %v518 = vld [vmem:[%s305 + $0x290] sm:$0xf]
        %v519 = vld [vmem:[%s305 + $0x294] sm:$0xf]
        %v520 = vld [vmem:[%s305 + $0x298] sm:$0xf]
        %v521 = vld [vmem:[%s305 + $0x29c] sm:$0xf]
        %v522 = vld [vmem:[%s305 + $0x2a0] sm:$0xf]
        %v523 = vld [vmem:[%s305 + $0x2a4] sm:$0xf]
        %v524 = vld [vmem:[%s305 + $0x2a8] sm:$0xf]
        %v525 = vld [vmem:[%s305 + $0x2ac] sm:$0xf]
        %v526 = vld [vmem:[%s305 + $0x2b0] sm:$0xf]
        %v527 = vld [vmem:[%s305 + $0x2b4] sm:$0xf]
        %v528 = vld [vmem:[%s305 + $0x2b8] sm:$0xf]
        %v529 = vld [vmem:[%s305 + $0x2bc] sm:$0xf]
        %v530 = vld [vmem:[%s305 + $0x2c0] sm:$0xf]
        %v531 = vld [vmem:[%s305 + $0x2c4] sm:$0xf]
        %v532 = vld [vmem:[%s305 + $0x2c8] sm:$0xf]
        %v533 = vld [vmem:[%s305 + $0x2cc] sm:$0xf]
        %v534 = vld [vmem:[%s305 + $0x2d0] sm:$0xf]
        %v535 = vld [vmem:[%s305 + $0x2d4] sm:$0xf]
        %v536 = vld [vmem:[%s305 + $0x2d8] sm:$0xf]
        %v537 = vld [vmem:[%s305 + $0x2dc] sm:$0xf]
        %v538 = vld [vmem:[%s305 + $0x2e0] sm:$0xf]
        %v539 = vld [vmem:[%s305 + $0x2e4] sm:$0xf]
        %v540 = vld [vmem:[%s305 + $0x2e8] sm:$0xf]
        %v541 = vld [vmem:[%s305 + $0x2ec] sm:$0xf]
        %v542 = vld [vmem:[%s305 + $0x2f0] sm:$0xf]
        %v543 = vld [vmem:[%s305 + $0x2f4] sm:$0xf]
        %v544 = vld [vmem:[%s305 + $0x2f8] sm:$0xf]
        %v545 = vld [vmem:[%s305 + $0x2fc] sm:$0xf]
        %v546 = vld [vmem:[%s305 + $0x300] sm:$0xf]
        %v547 = vld [vmem:[%s305 + $0x304] sm:$0xf]
        %v548 = vld [vmem:[%s305 + $0x308] sm:$0xf]
        %v549 = vld [vmem:[%s305 + $0x30c] sm:$0xf]
        %v550 = vld [vmem:[%s305 + $0x310] sm:$0xf]
        %v551 = vld [vmem:[%s305 + $0x314] sm:$0xf]
        %v552 = vld [vmem:[%s305 + $0x318] sm:$0xf]
        %v553 = vld [vmem:[%s305 + $0x31c] sm:$0xf]
        %v554 = vld [vmem:[%s305 + $0x320] sm:$0xf]
        %v555 = vld [vmem:[%s305 + $0x324] sm:$0xf]
        %v556 = vld [vmem:[%s305 + $0x328] sm:$0xf]
        %v557 = vld [vmem:[%s305 + $0x32c] sm:$0xf]
        %v558 = vld [vmem:[%s305 + $0x330] sm:$0xf]
        %v559 = vld [vmem:[%s305 + $0x334] sm:$0xf]
        %v560 = vld [vmem:[%s305 + $0x338] sm:$0xf]
        %v561 = vld [vmem:[%s305 + $0x33c] sm:$0xf]
        %v562 = vld [vmem:[%s305 + $0x340] sm:$0xf]
        %v563 = vld [vmem:[%s305 + $0x344] sm:$0xf]
        %v564 = vld [vmem:[%s305 + $0x348] sm:$0xf]
        %v565 = vld [vmem:[%s305 + $0x34c] sm:$0xf]
        %v566 = vld [vmem:[%s305 + $0x350] sm:$0xf]
        %v567 = vld [vmem:[%s305 + $0x354] sm:$0xf]
        %v568 = vld [vmem:[%s305 + $0x358] sm:$0xf]
        %v569 = vld [vmem:[%s305 + $0x35c] sm:$0xf]
        %v570 = vld [vmem:[%s305 + $0x360] sm:$0xf]
        %v571 = vld [vmem:[%s305 + $0x364] sm:$0xf]
        %v572 = vld [vmem:[%s305 + $0x368] sm:$0xf]
        %v573 = vld [vmem:[%s305 + $0x36c] sm:$0xf]
        %v574 = vld [vmem:[%s305 + $0x370] sm:$0xf]
        %v575 = vld [vmem:[%s305 + $0x374] sm:$0xf]
        %v576 = vld [vmem:[%s305 + $0x378] sm:$0xf]
        %v577 = vld [vmem:[%s305 + $0x37c] sm:$0xf]
        %v578 = vld [vmem:[%s305 + $0x380] sm:$0xf]
        %v579 = vld [vmem:[%s305 + $0x384] sm:$0xf]
        %v580 = vld [vmem:[%s305 + $0x388] sm:$0xf]
        %v581 = vld [vmem:[%s305 + $0x38c] sm:$0xf]
        %v582 = vld [vmem:[%s305 + $0x390] sm:$0xf]
        %v583 = vld [vmem:[%s305 + $0x394] sm:$0xf]
        %v584 = vld [vmem:[%s305 + $0x398] sm:$0xf]
        %v585 = vld [vmem:[%s305 + $0x39c] sm:$0xf]
        %v586 = vld [vmem:[%s305 + $0x3a0] sm:$0xf]
        %v587 = vld [vmem:[%s305 + $0x3a4] sm:$0xf]
        %v588 = vld [vmem:[%s305 + $0x3a8] sm:$0xf]
        %v589 = vld [vmem:[%s305 + $0x3ac] sm:$0xf]
        %v590 = vld [vmem:[%s305 + $0x3b0] sm:$0xf]
        %v591 = vld [vmem:[%s305 + $0x3b4] sm:$0xf]
        %v592 = vld [vmem:[%s305 + $0x3b8] sm:$0xf]
        %v593 = vld [vmem:[%s305 + $0x3bc] sm:$0xf]
        %v594 = vld [vmem:[%s305 + $0x3c0] sm:$0xf]
        %v595 = vld [vmem:[%s305 + $0x3c4] sm:$0xf]
        %v596 = vld [vmem:[%s305 + $0x3c8] sm:$0xf]
        %v597 = vld [vmem:[%s305 + $0x3cc] sm:$0xf]
        %v598 = vld [vmem:[%s305 + $0x3d0] sm:$0xf]
        %v599 = vld [vmem:[%s305 + $0x3d4] sm:$0xf]
        %v600 = vld [vmem:[%s305 + $0x3d8] sm:$0xf]
        %v601 = vld [vmem:[%s305 + $0x3dc] sm:$0xf]
        %v602 = vld [vmem:[%s305 + $0x3e0] sm:$0xf]
        %v603 = vld [vmem:[%s305 + $0x3e4] sm:$0xf]
        %v604 = vld [vmem:[%s305 + $0x3e8] sm:$0xf]
        %v605 = vld [vmem:[%s305 + $0x3ec] sm:$0xf]
        %v606 = vld [vmem:[%s305 + $0x3f0] sm:$0xf]
        %v607 = vld [vmem:[%s305 + $0x3f4] sm:$0xf]
        %v608 = vld [vmem:[%s305 + $0x3f8] sm:$0xf]
        %v609 = vld [vmem:[%s305 + $0x3fc] sm:$0xf]
        %v634 = vunpack.c.l.b16 %v330
        %v635 = vunpack.c.h.b16 %v330
        %v636 = vunpack.c.l.b16 %v331
        %v637 = vunpack.c.h.b16 %v331
        %v638 = vunpack.c.l.b16 %v332
        %v639 = vunpack.c.h.b16 %v332
        %v640 = vunpack.c.l.b16 %v333
        %v641 = vunpack.c.h.b16 %v333
        %v642 = vunpack.c.l.b16 %v334
        %v643 = vunpack.c.h.b16 %v334
        %v644 = vunpack.c.l.b16 %v335
        %v645 = vunpack.c.h.b16 %v335
        %v646 = vunpack.c.l.b16 %v336
        %v647 = vunpack.c.h.b16 %v336
        %v648 = vunpack.c.l.b16 %v337
        %v649 = vunpack.c.h.b16 %v337
        %v650 = vunpack.c.l.b16 %v338
        %v651 = vunpack.c.h.b16 %v338
        %v652 = vunpack.c.l.b16 %v339
        %v653 = vunpack.c.h.b16 %v339
        %v654 = vunpack.c.l.b16 %v340
        %v655 = vunpack.c.h.b16 %v340
        %v656 = vunpack.c.l.b16 %v341
        %v657 = vunpack.c.h.b16 %v341
        %v658 = vunpack.c.l.b16 %v342
        %v659 = vunpack.c.h.b16 %v342
        %v660 = vunpack.c.l.b16 %v343
        %v661 = vunpack.c.h.b16 %v343
        %v662 = vunpack.c.l.b16 %v344
        %v663 = vunpack.c.h.b16 %v344
        %v664 = vunpack.c.l.b16 %v345
        %v665 = vunpack.c.h.b16 %v345
        %v666 = vunpack.c.l.b16 %v346
        %v667 = vunpack.c.h.b16 %v346
        %v668 = vunpack.c.l.b16 %v347
        %v669 = vunpack.c.h.b16 %v347
        %v670 = vunpack.c.l.b16 %v348
        %v671 = vunpack.c.h.b16 %v348
        %v672 = vunpack.c.l.b16 %v349
        %v673 = vunpack.c.h.b16 %v349
        %v674 = vunpack.c.l.b16 %v350
        %v675 = vunpack.c.h.b16 %v350
        %v676 = vunpack.c.l.b16 %v351
        %v677 = vunpack.c.h.b16 %v351
        %v678 = vunpack.c.l.b16 %v352
        %v679 = vunpack.c.h.b16 %v352
        %v680 = vunpack.c.l.b16 %v353
        %v681 = vunpack.c.h.b16 %v353
        %v682 = vpack.c.b16 %v650, %v634
        %v683 = vpack.c.b16 %v651, %v635
        %v684 = vpack.c.b16 %v652, %v636
        %v685 = vpack.c.b16 %v653, %v637
        %v686 = vpack.c.b16 %v654, %v638
        %v687 = vpack.c.b16 %v655, %v639
        %v688 = vpack.c.b16 %v656, %v640
        %v689 = vpack.c.b16 %v657, %v641
        %v690 = vpack.c.b16 %v658, %v642
        %v691 = vpack.c.b16 %v659, %v643
        %v692 = vpack.c.b16 %v660, %v644
        %v693 = vpack.c.b16 %v661, %v645
        %v694 = vpack.c.b16 %v662, %v646
        %v695 = vpack.c.b16 %v663, %v647
        %v696 = vpack.c.b16 %v664, %v648
        %v697 = vpack.c.b16 %v665, %v649
        %v698 = vpack.c.b16 %v666, %v666
        %v699 = vpack.c.b16 %v667, %v667
        %v700 = vpack.c.b16 %v668, %v668
        %v701 = vpack.c.b16 %v669, %v669
        %v702 = vpack.c.b16 %v670, %v670
        %v703 = vpack.c.b16 %v671, %v671
        %v704 = vpack.c.b16 %v672, %v672
        %v705 = vpack.c.b16 %v673, %v673
        %v706 = vpack.c.b16 %v674, %v674
        %v707 = vpack.c.b16 %v675, %v675
        %v708 = vpack.c.b16 %v676, %v676
        %v709 = vpack.c.b16 %v677, %v677
        %v710 = vpack.c.b16 %v678, %v678
        %v711 = vpack.c.b16 %v679, %v679
        %v712 = vpack.c.b16 %v680, %v680
        %v713 = vpack.c.b16 %v681, %v681
        %v1002 = vunpack.c.l.b16 %v354
        %v1003 = vunpack.c.l.b16 %v355
        %v1004 = vunpack.c.l.b16 %v356
        %v1005 = vunpack.c.l.b16 %v357
        %v1006 = vunpack.c.l.b16 %v358
        %v1007 = vunpack.c.l.b16 %v359
        %v1008 = vunpack.c.l.b16 %v360
        %v1009 = vunpack.c.l.b16 %v361
        %v1010 = vunpack.c.l.b16 %v362
        %v1011 = vunpack.c.l.b16 %v363
        %v1012 = vunpack.c.l.b16 %v364
        %v1013 = vunpack.c.l.b16 %v365
        %v1014 = vunpack.c.l.b16 %v366
        %v1015 = vunpack.c.l.b16 %v367
        %v1016 = vunpack.c.l.b16 %v368
        %v1017 = vunpack.c.l.b16 %v369
        %v1018 = vunpack.c.l.b16 %v370
        %v1019 = vunpack.c.l.b16 %v371
        %v1020 = vunpack.c.l.b16 %v372
        %v1021 = vunpack.c.l.b16 %v373
        %v1022 = vunpack.c.l.b16 %v374
        %v1023 = vunpack.c.l.b16 %v375
        %v1024 = vunpack.c.l.b16 %v376
        %v1025 = vunpack.c.l.b16 %v377
        %v1026 = vunpack.c.l.b16 %v378
        %v1027 = vunpack.c.l.b16 %v379
        %v1028 = vunpack.c.l.b16 %v380
        %v1029 = vunpack.c.l.b16 %v381
        %v1030 = vunpack.c.l.b16 %v382
        %v1031 = vunpack.c.l.b16 %v383
        %v1032 = vunpack.c.l.b16 %v384
        %v1033 = vunpack.c.l.b16 %v385
        %v1034 = vunpack.c.l.b16 %v386
        %v1035 = vunpack.c.l.b16 %v387
        %v1036 = vunpack.c.l.b16 %v388
        %v1037 = vunpack.c.l.b16 %v389
        %v1038 = vunpack.c.l.b16 %v390
        %v1039 = vunpack.c.l.b16 %v391
        %v1040 = vunpack.c.l.b16 %v392
        %v1041 = vunpack.c.l.b16 %v393
        %v1042 = vunpack.c.l.b16 %v394
        %v1043 = vunpack.c.l.b16 %v395
        %v1044 = vunpack.c.l.b16 %v396
        %v1045 = vunpack.c.l.b16 %v397
        %v1046 = vunpack.c.l.b16 %v398
        %v1047 = vunpack.c.l.b16 %v399
        %v1048 = vunpack.c.l.b16 %v400
        %v1049 = vunpack.c.l.b16 %v401
        %v1050 = vunpack.c.l.b16 %v402
        %v1051 = vunpack.c.l.b16 %v403
        %v1052 = vunpack.c.l.b16 %v404
        %v1053 = vunpack.c.l.b16 %v405
        %v1054 = vunpack.c.l.b16 %v406
        %v1055 = vunpack.c.l.b16 %v407
        %v1056 = vunpack.c.l.b16 %v408
        %v1057 = vunpack.c.l.b16 %v409
        %v1058 = vunpack.c.l.b16 %v410
        %v1059 = vunpack.c.l.b16 %v411
        %v1060 = vunpack.c.l.b16 %v412
        %v1061 = vunpack.c.l.b16 %v413
        %v1062 = vunpack.c.l.b16 %v414
        %v1063 = vunpack.c.l.b16 %v415
        %v1064 = vunpack.c.l.b16 %v416
        %v1065 = vunpack.c.l.b16 %v417
        %v1066 = vunpack.c.l.b16 %v418
        %v1067 = vunpack.c.l.b16 %v419
        %v1068 = vunpack.c.l.b16 %v420
        %v1069 = vunpack.c.l.b16 %v421
        %v1070 = vunpack.c.l.b16 %v422
        %v1071 = vunpack.c.l.b16 %v423
        %v1072 = vunpack.c.l.b16 %v424
        %v1073 = vunpack.c.l.b16 %v425
        %v1074 = vunpack.c.l.b16 %v426
        %v1075 = vunpack.c.l.b16 %v427
        %v1076 = vunpack.c.l.b16 %v428
        %v1077 = vunpack.c.l.b16 %v429
        %v1078 = vunpack.c.l.b16 %v430
        %v1079 = vunpack.c.l.b16 %v431
        %v1080 = vunpack.c.l.b16 %v432
        %v1081 = vunpack.c.l.b16 %v433
        %v1082 = vunpack.c.l.b16 %v434
        %v1083 = vunpack.c.l.b16 %v435
        %v1084 = vunpack.c.l.b16 %v436
        %v1085 = vunpack.c.l.b16 %v437
        %v1086 = vunpack.c.l.b16 %v438
        %v1087 = vunpack.c.l.b16 %v439
        %v1088 = vunpack.c.l.b16 %v440
        %v1089 = vunpack.c.l.b16 %v441
        %v1090 = vunpack.c.l.b16 %v442
        %v1091 = vunpack.c.l.b16 %v443
        %v1092 = vunpack.c.l.b16 %v444
        %v1093 = vunpack.c.l.b16 %v445
        %v1094 = vunpack.c.l.b16 %v446
        %v1095 = vunpack.c.l.b16 %v447
        %v1096 = vunpack.c.l.b16 %v448
        %v1097 = vunpack.c.l.b16 %v449
        %v1098 = vunpack.c.l.b16 %v450
        %v1099 = vunpack.c.l.b16 %v451
        %v1100 = vunpack.c.l.b16 %v452
        %v1101 = vunpack.c.l.b16 %v453
        %v1102 = vunpack.c.l.b16 %v454
        %v1103 = vunpack.c.l.b16 %v455
        %v1104 = vunpack.c.l.b16 %v456
        %v1105 = vunpack.c.l.b16 %v457
        %v1106 = vunpack.c.l.b16 %v458
        %v1107 = vunpack.c.l.b16 %v459
        %v1108 = vunpack.c.l.b16 %v460
        %v1109 = vunpack.c.l.b16 %v461
        %v1110 = vunpack.c.l.b16 %v462
        %v1111 = vunpack.c.l.b16 %v463
        %v1112 = vunpack.c.l.b16 %v464
        %v1113 = vunpack.c.l.b16 %v465
        %v1114 = vunpack.c.l.b16 %v466
        %v1115 = vunpack.c.l.b16 %v467
        %v1116 = vunpack.c.l.b16 %v468
        %v1117 = vunpack.c.l.b16 %v469
        %v1118 = vunpack.c.l.b16 %v470
        %v1119 = vunpack.c.l.b16 %v471
        %v1120 = vunpack.c.l.b16 %v472
        %v1121 = vunpack.c.l.b16 %v473
        %v1122 = vunpack.c.l.b16 %v474
        %v1123 = vunpack.c.l.b16 %v475
        %v1124 = vunpack.c.l.b16 %v476
        %v1125 = vunpack.c.l.b16 %v477
        %v1126 = vunpack.c.l.b16 %v478
        %v1127 = vunpack.c.l.b16 %v479
        %v1128 = vunpack.c.l.b16 %v480
        %v1129 = vunpack.c.l.b16 %v481
        %v1130 = vunpack.c.l.b16 %v482
        %v1131 = vunpack.c.l.b16 %v483
        %v1132 = vunpack.c.l.b16 %v484
        %v1133 = vunpack.c.l.b16 %v485
        %v1134 = vunpack.c.l.b16 %v486
        %v1135 = vunpack.c.l.b16 %v487
        %v1136 = vunpack.c.l.b16 %v488
        %v1137 = vunpack.c.l.b16 %v489
        %v1138 = vunpack.c.l.b16 %v490
        %v1139 = vunpack.c.l.b16 %v491
        %v1140 = vunpack.c.l.b16 %v492
        %v1141 = vunpack.c.l.b16 %v493
        %v1142 = vunpack.c.l.b16 %v494
        %v1143 = vunpack.c.l.b16 %v495
        %v1144 = vunpack.c.l.b16 %v496
        %v1145 = vunpack.c.l.b16 %v497
        %v1146 = vunpack.c.l.b16 %v498
        %v1147 = vunpack.c.l.b16 %v499
        %v1148 = vunpack.c.l.b16 %v500
        %v1149 = vunpack.c.l.b16 %v501
        %v1150 = vunpack.c.l.b16 %v502
        %v1151 = vunpack.c.l.b16 %v503
        %v1152 = vunpack.c.l.b16 %v504
        %v1153 = vunpack.c.l.b16 %v505
        %v1154 = vunpack.c.l.b16 %v506
        %v1155 = vunpack.c.l.b16 %v507
        %v1156 = vunpack.c.l.b16 %v508
        %v1157 = vunpack.c.l.b16 %v509
        %v1158 = vunpack.c.l.b16 %v510
        %v1159 = vunpack.c.l.b16 %v511
        %v1160 = vunpack.c.l.b16 %v512
        %v1161 = vunpack.c.l.b16 %v513
        %v1162 = vunpack.c.l.b16 %v514
        %v1163 = vunpack.c.l.b16 %v515
        %v1164 = vunpack.c.l.b16 %v516
        %v1165 = vunpack.c.l.b16 %v517
        %v1166 = vunpack.c.l.b16 %v518
        %v1167 = vunpack.c.l.b16 %v519
        %v1168 = vunpack.c.l.b16 %v520
        %v1169 = vunpack.c.l.b16 %v521
        %v1170 = vunpack.c.l.b16 %v522
        %v1171 = vunpack.c.l.b16 %v523
        %v1172 = vunpack.c.l.b16 %v524
        %v1173 = vunpack.c.l.b16 %v525
        %v1174 = vunpack.c.l.b16 %v526
        %v1175 = vunpack.c.l.b16 %v527
        %v1176 = vunpack.c.l.b16 %v528
        %v1177 = vunpack.c.l.b16 %v529
        %v1178 = vunpack.c.l.b16 %v530
        %v1179 = vunpack.c.l.b16 %v531
        %v1180 = vunpack.c.l.b16 %v532
        %v1181 = vunpack.c.l.b16 %v533
        %v1182 = vunpack.c.l.b16 %v534
        %v1183 = vunpack.c.l.b16 %v535
        %v1184 = vunpack.c.l.b16 %v536
        %v1185 = vunpack.c.l.b16 %v537
        %v1186 = vunpack.c.l.b16 %v538
        %v1187 = vunpack.c.l.b16 %v539
        %v1188 = vunpack.c.l.b16 %v540
        %v1189 = vunpack.c.l.b16 %v541
        %v1190 = vunpack.c.l.b16 %v542
        %v1191 = vunpack.c.l.b16 %v543
        %v1192 = vunpack.c.l.b16 %v544
        %v1193 = vunpack.c.l.b16 %v545
        %v1194 = vunpack.c.l.b16 %v546
        %v1195 = vunpack.c.l.b16 %v547
        %v1196 = vunpack.c.l.b16 %v548
        %v1197 = vunpack.c.l.b16 %v549
        %v1198 = vunpack.c.l.b16 %v550
        %v1199 = vunpack.c.l.b16 %v551
        %v1200 = vunpack.c.l.b16 %v552
        %v1201 = vunpack.c.l.b16 %v553
        %v1202 = vunpack.c.l.b16 %v554
        %v1203 = vunpack.c.l.b16 %v555
        %v1204 = vunpack.c.l.b16 %v556
        %v1205 = vunpack.c.l.b16 %v557
        %v1206 = vunpack.c.l.b16 %v558
        %v1207 = vunpack.c.l.b16 %v559
        %v1208 = vunpack.c.l.b16 %v560
        %v1209 = vunpack.c.l.b16 %v561
        %v1210 = vunpack.c.l.b16 %v562
        %v1211 = vunpack.c.l.b16 %v563
        %v1212 = vunpack.c.l.b16 %v564
        %v1213 = vunpack.c.l.b16 %v565
        %v1214 = vunpack.c.l.b16 %v566
        %v1215 = vunpack.c.l.b16 %v567
        %v1216 = vunpack.c.l.b16 %v568
        %v1217 = vunpack.c.l.b16 %v569
        %v1218 = vunpack.c.l.b16 %v570
        %v1219 = vunpack.c.l.b16 %v571
        %v1220 = vunpack.c.l.b16 %v572
        %v1221 = vunpack.c.l.b16 %v573
        %v1222 = vunpack.c.l.b16 %v574
        %v1223 = vunpack.c.l.b16 %v575
        %v1224 = vunpack.c.l.b16 %v576
        %v1225 = vunpack.c.l.b16 %v577
        %v1226 = vunpack.c.l.b16 %v578
        %v1227 = vunpack.c.l.b16 %v579
        %v1228 = vunpack.c.l.b16 %v580
        %v1229 = vunpack.c.l.b16 %v581
        %v1230 = vunpack.c.l.b16 %v582
        %v1231 = vunpack.c.l.b16 %v583
        %v1232 = vunpack.c.l.b16 %v584
        %v1233 = vunpack.c.l.b16 %v585
        %v1234 = vunpack.c.l.b16 %v586
        %v1235 = vunpack.c.l.b16 %v587
        %v1236 = vunpack.c.l.b16 %v588
        %v1237 = vunpack.c.l.b16 %v589
        %v1238 = vunpack.c.l.b16 %v590
        %v1239 = vunpack.c.l.b16 %v591
        %v1240 = vunpack.c.l.b16 %v592
        %v1241 = vunpack.c.l.b16 %v593
        %v1242 = vunpack.c.l.b16 %v594
        %v1243 = vunpack.c.l.b16 %v595
        %v1244 = vunpack.c.l.b16 %v596
        %v1245 = vunpack.c.l.b16 %v597
        %v1246 = vunpack.c.l.b16 %v598
        %v1247 = vunpack.c.l.b16 %v599
        %v1248 = vunpack.c.l.b16 %v600
        %v1249 = vunpack.c.l.b16 %v601
        %v1250 = vunpack.c.l.b16 %v602
        %v1251 = vunpack.c.l.b16 %v603
        %v1252 = vunpack.c.l.b16 %v604
        %v1253 = vunpack.c.l.b16 %v605
        %v1254 = vunpack.c.l.b16 %v606
        %v1255 = vunpack.c.l.b16 %v607
        %v1256 = vunpack.c.l.b16 %v608
        %v1257 = vunpack.c.l.b16 %v609
        %v1258 = vpack.c.b16 %v1003, %v1002
        %v1259 = vpack.c.b16 %v1005, %v1004
        %v1260 = vpack.c.b16 %v1007, %v1006
        %v1261 = vpack.c.b16 %v1009, %v1008
        %v1262 = vpack.c.b16 %v1011, %v1010
        %v1263 = vpack.c.b16 %v1013, %v1012
        %v1264 = vpack.c.b16 %v1015, %v1014
        %v1265 = vpack.c.b16 %v1017, %v1016
        %v1266 = vpack.c.b16 %v1019, %v1018
        %v1267 = vpack.c.b16 %v1021, %v1020
        %v1268 = vpack.c.b16 %v1023, %v1022
        %v1269 = vpack.c.b16 %v1025, %v1024
        %v1270 = vpack.c.b16 %v1027, %v1026
        %v1271 = vpack.c.b16 %v1029, %v1028
        %v1272 = vpack.c.b16 %v1031, %v1030
        %v1273 = vpack.c.b16 %v1033, %v1032
        %v1274 = vpack.c.b16 %v1035, %v1034
        %v1275 = vpack.c.b16 %v1037, %v1036
        %v1276 = vpack.c.b16 %v1039, %v1038
        %v1277 = vpack.c.b16 %v1041, %v1040
        %v1278 = vpack.c.b16 %v1043, %v1042
        %v1279 = vpack.c.b16 %v1045, %v1044
        %v1280 = vpack.c.b16 %v1047, %v1046
        %v1281 = vpack.c.b16 %v1049, %v1048
        %v1282 = vpack.c.b16 %v1051, %v1050
        %v1283 = vpack.c.b16 %v1053, %v1052
        %v1284 = vpack.c.b16 %v1055, %v1054
        %v1285 = vpack.c.b16 %v1057, %v1056
        %v1286 = vpack.c.b16 %v1059, %v1058
        %v1287 = vpack.c.b16 %v1061, %v1060
        %v1288 = vpack.c.b16 %v1063, %v1062
        %v1289 = vpack.c.b16 %v1065, %v1064
        %v1290 = vpack.c.b16 %v1067, %v1066
        %v1291 = vpack.c.b16 %v1069, %v1068
        %v1292 = vpack.c.b16 %v1071, %v1070
        %v1293 = vpack.c.b16 %v1073, %v1072
        %v1294 = vpack.c.b16 %v1075, %v1074
        %v1295 = vpack.c.b16 %v1077, %v1076
        %v1296 = vpack.c.b16 %v1079, %v1078
        %v1297 = vpack.c.b16 %v1081, %v1080
        %v1298 = vpack.c.b16 %v1083, %v1082
        %v1299 = vpack.c.b16 %v1085, %v1084
        %v1300 = vpack.c.b16 %v1087, %v1086
        %v1301 = vpack.c.b16 %v1089, %v1088
        %v1302 = vpack.c.b16 %v1091, %v1090
        %v1303 = vpack.c.b16 %v1093, %v1092
        %v1304 = vpack.c.b16 %v1095, %v1094
        %v1305 = vpack.c.b16 %v1097, %v1096
        %v1306 = vpack.c.b16 %v1099, %v1098
        %v1307 = vpack.c.b16 %v1101, %v1100
        %v1308 = vpack.c.b16 %v1103, %v1102
        %v1309 = vpack.c.b16 %v1105, %v1104
        %v1310 = vpack.c.b16 %v1107, %v1106
        %v1311 = vpack.c.b16 %v1109, %v1108
        %v1312 = vpack.c.b16 %v1111, %v1110
        %v1313 = vpack.c.b16 %v1113, %v1112
        %v1314 = vpack.c.b16 %v1115, %v1114
        %v1315 = vpack.c.b16 %v1117, %v1116
        %v1316 = vpack.c.b16 %v1119, %v1118
        %v1317 = vpack.c.b16 %v1121, %v1120
        %v1318 = vpack.c.b16 %v1123, %v1122
        %v1319 = vpack.c.b16 %v1125, %v1124
        %v1320 = vpack.c.b16 %v1127, %v1126
        %v1321 = vpack.c.b16 %v1129, %v1128
        %v1322 = vpack.c.b16 %v1131, %v1130
        %v1323 = vpack.c.b16 %v1133, %v1132
        %v1324 = vpack.c.b16 %v1135, %v1134
        %v1325 = vpack.c.b16 %v1137, %v1136
        %v1326 = vpack.c.b16 %v1139, %v1138
        %v1327 = vpack.c.b16 %v1141, %v1140
        %v1328 = vpack.c.b16 %v1143, %v1142
        %v1329 = vpack.c.b16 %v1145, %v1144
        %v1330 = vpack.c.b16 %v1147, %v1146
        %v1331 = vpack.c.b16 %v1149, %v1148
        %v1332 = vpack.c.b16 %v1151, %v1150
        %v1333 = vpack.c.b16 %v1153, %v1152
        %v1334 = vpack.c.b16 %v1155, %v1154
        %v1335 = vpack.c.b16 %v1157, %v1156
        %v1336 = vpack.c.b16 %v1159, %v1158
        %v1337 = vpack.c.b16 %v1161, %v1160
        %v1338 = vpack.c.b16 %v1163, %v1162
        %v1339 = vpack.c.b16 %v1165, %v1164
        %v1340 = vpack.c.b16 %v1167, %v1166
        %v1341 = vpack.c.b16 %v1169, %v1168
        %v1342 = vpack.c.b16 %v1171, %v1170
        %v1343 = vpack.c.b16 %v1173, %v1172
        %v1344 = vpack.c.b16 %v1175, %v1174
        %v1345 = vpack.c.b16 %v1177, %v1176
        %v1346 = vpack.c.b16 %v1179, %v1178
        %v1347 = vpack.c.b16 %v1181, %v1180
        %v1348 = vpack.c.b16 %v1183, %v1182
        %v1349 = vpack.c.b16 %v1185, %v1184
        %v1350 = vpack.c.b16 %v1187, %v1186
        %v1351 = vpack.c.b16 %v1189, %v1188
        %v1352 = vpack.c.b16 %v1191, %v1190
        %v1353 = vpack.c.b16 %v1193, %v1192
        %v1354 = vpack.c.b16 %v1195, %v1194
        %v1355 = vpack.c.b16 %v1197, %v1196
        %v1356 = vpack.c.b16 %v1199, %v1198
        %v1357 = vpack.c.b16 %v1201, %v1200
        %v1358 = vpack.c.b16 %v1203, %v1202
        %v1359 = vpack.c.b16 %v1205, %v1204
        %v1360 = vpack.c.b16 %v1207, %v1206
        %v1361 = vpack.c.b16 %v1209, %v1208
        %v1362 = vpack.c.b16 %v1211, %v1210
        %v1363 = vpack.c.b16 %v1213, %v1212
        %v1364 = vpack.c.b16 %v1215, %v1214
        %v1365 = vpack.c.b16 %v1217, %v1216
        %v1366 = vpack.c.b16 %v1219, %v1218
        %v1367 = vpack.c.b16 %v1221, %v1220
        %v1368 = vpack.c.b16 %v1223, %v1222
        %v1369 = vpack.c.b16 %v1225, %v1224
        %v1370 = vpack.c.b16 %v1227, %v1226
        %v1371 = vpack.c.b16 %v1229, %v1228
        %v1372 = vpack.c.b16 %v1231, %v1230
        %v1373 = vpack.c.b16 %v1233, %v1232
        %v1374 = vpack.c.b16 %v1235, %v1234
        %v1375 = vpack.c.b16 %v1237, %v1236
        %v1376 = vpack.c.b16 %v1239, %v1238
        %v1377 = vpack.c.b16 %v1241, %v1240
        %v1378 = vpack.c.b16 %v1243, %v1242
        %v1379 = vpack.c.b16 %v1245, %v1244
        %v1380 = vpack.c.b16 %v1247, %v1246
        %v1381 = vpack.c.b16 %v1249, %v1248
        %v1382 = vpack.c.b16 %v1251, %v1250
        %v1383 = vpack.c.b16 %v1253, %v1252
        %v1384 = vpack.c.b16 %v1255, %v1254
        %v1385 = vpack.c.b16 %v1257, %v1256
        %1514 = vmatprep.subr.bf16.mxu0 0
        %1515 = vmatpush1.bf16.msra.mxu0 %v1258
        %1516 = vmatprep.subr.bf16.mxu0 0
        %1517 = vmatpush1.bf16.msra.mxu0 %v1259
        %1518 = vmatprep.subr.bf16.mxu0 0
        %1519 = vmatpush1.bf16.msra.mxu0 %v1260
        %1520 = vmatprep.subr.bf16.mxu0 0
        %1521 = vmatpush1.bf16.msra.mxu0 %v1261
        %1522 = vmatprep.subr.bf16.mxu0 0
        %1523 = vmatpush1.bf16.msra.mxu0 %v1262
        %1524 = vmatprep.subr.bf16.mxu0 0
        %1525 = vmatpush1.bf16.msra.mxu0 %v1263
        %1526 = vmatprep.subr.bf16.mxu0 0
        %1527 = vmatpush1.bf16.msra.mxu0 %v1264
        %1528 = vmatprep.subr.bf16.mxu0 0
        %1529 = vmatpush1.bf16.msra.mxu0 %v1265
        %1530 = vmatprep.subr.bf16.mxu0 0
        %1531 = vmatpush1.bf16.msra.mxu0 %v1266
        %1532 = vmatprep.subr.bf16.mxu0 0
        %1533 = vmatpush1.bf16.msra.mxu0 %v1267
        %1534 = vmatprep.subr.bf16.mxu0 0
        %1535 = vmatpush1.bf16.msra.mxu0 %v1268
        %1536 = vmatprep.subr.bf16.mxu0 0
        %1537 = vmatpush1.bf16.msra.mxu0 %v1269
        %1538 = vmatprep.subr.bf16.mxu0 0
        %1539 = vmatpush1.bf16.msra.mxu0 %v1270
        %1540 = vmatprep.subr.bf16.mxu0 0
        %1541 = vmatpush1.bf16.msra.mxu0 %v1271
        %1542 = vmatprep.subr.bf16.mxu0 0
        %1543 = vmatpush1.bf16.msra.mxu0 %v1272
        %1544 = vmatprep.subr.bf16.mxu0 0
        %1545 = vmatpush1.bf16.msra.mxu0 %v1273
        %1546 = vmatprep.mubr.bf16.mxu0 %v683
        %1547 = vmatmul.mubr.bf16.gmra.mrb[0].mxu0 %v682
        %v1548 = vpop.f32.mrb[0].mxu0
        %v1549 = vadd.f32 0.0, %v1548
        %v1550 = vpop.f32.mrb[0].mxu0
        %v1551 = vpop.f32.mrb[0].mxu0
        %v1552 = vadd.f32 0.0, %v1551
        %v1553 = vpop.f32.mrb[0].mxu0
        %1554 = vmatprep.mubr.bf16.mxu0 %v699
        %1555 = vmatmul.mubr.bf16.gmra.mrb[0].mxu0 %v698
        %v1556 = vpop.f32.mrb[0].mxu0
        %v1557 = vadd.f32 0.0, %v1556
        %v1558 = vpop.f32.mrb[0].mxu0
        %v1559 = vpop.f32.mrb[0].mxu0
        %v1560 = vpop.f32.mrb[0].mxu0
        %1561 = vdwg.mxu0
        %1562 = vmatprep.subr.bf16.mxu0 0
        %1563 = vmatpush1.bf16.msra.mxu0 %v1274
        %1564 = vmatprep.subr.bf16.mxu0 0
        %1565 = vmatpush1.bf16.msra.mxu0 %v1275
        %1566 = vmatprep.subr.bf16.mxu0 0
        %1567 = vmatpush1.bf16.msra.mxu0 %v1276
        %1568 = vmatprep.subr.bf16.mxu0 0
        %1569 = vmatpush1.bf16.msra.mxu0 %v1277
        %1570 = vmatprep.subr.bf16.mxu0 0
        %1571 = vmatpush1.bf16.msra.mxu0 %v1278
        %1572 = vmatprep.subr.bf16.mxu0 0
        %1573 = vmatpush1.bf16.msra.mxu0 %v1279
        %1574 = vmatprep.subr.bf16.mxu0 0
        %1575 = vmatpush1.bf16.msra.mxu0 %v1280
        %1576 = vmatprep.subr.bf16.mxu0 0
        %1577 = vmatpush1.bf16.msra.mxu0 %v1281
        %1578 = vmatprep.subr.bf16.mxu0 0
        %1579 = vmatpush1.bf16.msra.mxu0 %v1282
        %1580 = vmatprep.subr.bf16.mxu0 0
        %1581 = vmatpush1.bf16.msra.mxu0 %v1283
        %1582 = vmatprep.subr.bf16.mxu0 0
        %1583 = vmatpush1.bf16.msra.mxu0 %v1284
        %1584 = vmatprep.subr.bf16.mxu0 0
        %1585 = vmatpush1.bf16.msra.mxu0 %v1285
        %1586 = vmatprep.subr.bf16.mxu0 0
        %1587 = vmatpush1.bf16.msra.mxu0 %v1286
        %1588 = vmatprep.subr.bf16.mxu0 0
        %1589 = vmatpush1.bf16.msra.mxu0 %v1287
        %1590 = vmatprep.subr.bf16.mxu0 0
        %1591 = vmatpush1.bf16.msra.mxu0 %v1288
        %1592 = vmatprep.subr.bf16.mxu0 0
        %1593 = vmatpush1.bf16.msra.mxu0 %v1289
        %1594 = vmatprep.mubr.bf16.mxu0 %v685
        %1595 = vmatmul.mubr.bf16.gmra.mrb[0].mxu0 %v684
        %v1596 = vpop.f32.mrb[0].mxu0
        %v1597 = vadd.f32 %v1549, %v1596
        %v1598 = vpop.f32.mrb[0].mxu0
        %v1599 = vpop.f32.mrb[0].mxu0
        %v1600 = vadd.f32 %v1552, %v1599
        %v1601 = vpop.f32.mrb[0].mxu0
        %1602 = vmatprep.mubr.bf16.mxu0 %v701
        %1603 = vmatmul.mubr.bf16.gmra.mrb[0].mxu0 %v700
        %v1604 = vpop.f32.mrb[0].mxu0
        %v1605 = vadd.f32 %v1557, %v1604
        %v1606 = vpop.f32.mrb[0].mxu0
        %v1607 = vpop.f32.mrb[0].mxu0
        %v1608 = vpop.f32.mrb[0].mxu0
        %1609 = vdwg.mxu0
        %1610 = vmatprep.subr.bf16.mxu0 0
        %1611 = vmatpush1.bf16.msra.mxu0 %v1290
        %1612 = vmatprep.subr.bf16.mxu0 0
        %1613 = vmatpush1.bf16.msra.mxu0 %v1291
        %1614 = vmatprep.subr.bf16.mxu0 0
        %1615 = vmatpush1.bf16.msra.mxu0 %v1292
        %1616 = vmatprep.subr.bf16.mxu0 0
        %1617 = vmatpush1.bf16.msra.mxu0 %v1293
        %1618 = vmatprep.subr.bf16.mxu0 0
        %1619 = vmatpush1.bf16.msra.mxu0 %v1294
        %1620 = vmatprep.subr.bf16.mxu0 0
        %1621 = vmatpush1.bf16.msra.mxu0 %v1295
        %1622 = vmatprep.subr.bf16.mxu0 0
        %1623 = vmatpush1.bf16.msra.mxu0 %v1296
        %1624 = vmatprep.subr.bf16.mxu0 0
        %1625 = vmatpush1.bf16.msra.mxu0 %v1297
        %1626 = vmatprep.subr.bf16.mxu0 0
        %1627 = vmatpush1.bf16.msra.mxu0 %v1298
        %1628 = vmatprep.subr.bf16.mxu0 0
        %1629 = vmatpush1.bf16.msra.mxu0 %v1299
        %1630 = vmatprep.subr.bf16.mxu0 0
        %1631 = vmatpush1.bf16.msra.mxu0 %v1300
        %1632 = vmatprep.subr.bf16.mxu0 0
        %1633 = vmatpush1.bf16.msra.mxu0 %v1301
        %1634 = vmatprep.subr.bf16.mxu0 0
        %1635 = vmatpush1.bf16.msra.mxu0 %v1302
        %1636 = vmatprep.subr.bf16.mxu0 0
        %1637 = vmatpush1.bf16.msra.mxu0 %v1303
        %1638 = vmatprep.subr.bf16.mxu0 0
        %1639 = vmatpush1.bf16.msra.mxu0 %v1304
        %1640 = vmatprep.subr.bf16.mxu0 0
        %1641 = vmatpush1.bf16.msra.mxu0 %v1305
        %1642 = vmatprep.mubr.bf16.mxu0 %v687
        %1643 = vmatmul.mubr.bf16.gmra.mrb[0].mxu0 %v686
        %v1644 = vpop.f32.mrb[0].mxu0
        %v1645 = vadd.f32 %v1597, %v1644
        %v1646 = vpop.f32.mrb[0].mxu0
        %v1647 = vpop.f32.mrb[0].mxu0
        %v1648 = vadd.f32 %v1600, %v1647
        %v1649 = vpop.f32.mrb[0].mxu0
        %1650 = vmatprep.mubr.bf16.mxu0 %v703
        %1651 = vmatmul.mubr.bf16.gmra.mrb[0].mxu0 %v702
        %v1652 = vpop.f32.mrb[0].mxu0
        %v1653 = vadd.f32 %v1605, %v1652
        %v1654 = vpop.f32.mrb[0].mxu0
        %v1655 = vpop.f32.mrb[0].mxu0
        %v1656 = vpop.f32.mrb[0].mxu0
        %1657 = vdwg.mxu0
        %1658 = vmatprep.subr.bf16.mxu0 0
        %1659 = vmatpush1.bf16.msra.mxu0 %v1306
        %1660 = vmatprep.subr.bf16.mxu0 0
        %1661 = vmatpush1.bf16.msra.mxu0 %v1307
        %1662 = vmatprep.subr.bf16.mxu0 0
        %1663 = vmatpush1.bf16.msra.mxu0 %v1308
        %1664 = vmatprep.subr.bf16.mxu0 0
        %1665 = vmatpush1.bf16.msra.mxu0 %v1309
        %1666 = vmatprep.subr.bf16.mxu0 0
        %1667 = vmatpush1.bf16.msra.mxu0 %v1310
        %1668 = vmatprep.subr.bf16.mxu0 0
        %1669 = vmatpush1.bf16.msra.mxu0 %v1311
        %1670 = vmatprep.subr.bf16.mxu0 0
        %1671 = vmatpush1.bf16.msra.mxu0 %v1312
        %1672 = vmatprep.subr.bf16.mxu0 0
        %1673 = vmatpush1.bf16.msra.mxu0 %v1313
        %1674 = vmatprep.subr.bf16.mxu0 0
        %1675 = vmatpush1.bf16.msra.mxu0 %v1314
        %1676 = vmatprep.subr.bf16.mxu0 0
        %1677 = vmatpush1.bf16.msra.mxu0 %v1315
        %1678 = vmatprep.subr.bf16.mxu0 0
        %1679 = vmatpush1.bf16.msra.mxu0 %v1316
        %1680 = vmatprep.subr.bf16.mxu0 0
        %1681 = vmatpush1.bf16.msra.mxu0 %v1317
        %1682 = vmatprep.subr.bf16.mxu0 0
        %1683 = vmatpush1.bf16.msra.mxu0 %v1318
        %1684 = vmatprep.subr.bf16.mxu0 0
        %1685 = vmatpush1.bf16.msra.mxu0 %v1319
        %1686 = vmatprep.subr.bf16.mxu0 0
        %1687 = vmatpush1.bf16.msra.mxu0 %v1320
        %1688 = vmatprep.subr.bf16.mxu0 0
        %1689 = vmatpush1.bf16.msra.mxu0 %v1321
        %1690 = vmatprep.mubr.bf16.mxu0 %v689
        %1691 = vmatmul.mubr.bf16.gmra.mrb[0].mxu0 %v688
        %v1692 = vpop.f32.mrb[0].mxu0
        %v1693 = vadd.f32 %v1645, %v1692
        %v1694 = vpop.f32.mrb[0].mxu0
        %v1695 = vpop.f32.mrb[0].mxu0
        %v1696 = vadd.f32 %v1648, %v1695
        %v1697 = vpop.f32.mrb[0].mxu0
        %1698 = vmatprep.mubr.bf16.mxu0 %v705
        %1699 = vmatmul.mubr.bf16.gmra.mrb[0].mxu0 %v704
        %v1700 = vpop.f32.mrb[0].mxu0
        %v1701 = vadd.f32 %v1653, %v1700
        %v1702 = vpop.f32.mrb[0].mxu0
        %v1703 = vpop.f32.mrb[0].mxu0
        %v1704 = vpop.f32.mrb[0].mxu0
        %1705 = vdwg.mxu0
        %1706 = vmatprep.subr.bf16.mxu0 0
        %1707 = vmatpush1.bf16.msra.mxu0 %v1322
        %1708 = vmatprep.subr.bf16.mxu0 0
        %1709 = vmatpush1.bf16.msra.mxu0 %v1323
        %1710 = vmatprep.subr.bf16.mxu0 0
        %1711 = vmatpush1.bf16.msra.mxu0 %v1324
        %1712 = vmatprep.subr.bf16.mxu0 0
        %1713 = vmatpush1.bf16.msra.mxu0 %v1325
        %1714 = vmatprep.subr.bf16.mxu0 0
        %1715 = vmatpush1.bf16.msra.mxu0 %v1326
        %1716 = vmatprep.subr.bf16.mxu0 0
        %1717 = vmatpush1.bf16.msra.mxu0 %v1327
        %1718 = vmatprep.subr.bf16.mxu0 0
        %1719 = vmatpush1.bf16.msra.mxu0 %v1328
        %1720 = vmatprep.subr.bf16.mxu0 0
        %1721 = vmatpush1.bf16.msra.mxu0 %v1329
        %1722 = vmatprep.subr.bf16.mxu0 0
        %1723 = vmatpush1.bf16.msra.mxu0 %v1330
        %1724 = vmatprep.subr.bf16.mxu0 0
        %1725 = vmatpush1.bf16.msra.mxu0 %v1331
        %1726 = vmatprep.subr.bf16.mxu0 0
        %1727 = vmatpush1.bf16.msra.mxu0 %v1332
        %1728 = vmatprep.subr.bf16.mxu0 0
        %1729 = vmatpush1.bf16.msra.mxu0 %v1333
        %1730 = vmatprep.subr.bf16.mxu0 0
        %1731 = vmatpush1.bf16.msra.mxu0 %v1334
        %1732 = vmatprep.subr.bf16.mxu0 0
        %1733 = vmatpush1.bf16.msra.mxu0 %v1335
        %1734 = vmatprep.subr.bf16.mxu0 0
        %1735 = vmatpush1.bf16.msra.mxu0 %v1336
        %1736 = vmatprep.subr.bf16.mxu0 0
        %1737 = vmatpush1.bf16.msra.mxu0 %v1337
        %1738 = vmatprep.mubr.bf16.mxu0 %v691
        %1739 = vmatmul.mubr.bf16.gmra.mrb[0].mxu0 %v690
        %v1740 = vpop.f32.mrb[0].mxu0
        %v1741 = vadd.f32 %v1693, %v1740
        %v1742 = vpop.f32.mrb[0].mxu0
        %v1743 = vpop.f32.mrb[0].mxu0
        %v1744 = vadd.f32 %v1696, %v1743
        %v1745 = vpop.f32.mrb[0].mxu0
        %1746 = vmatprep.mubr.bf16.mxu0 %v707
        %1747 = vmatmul.mubr.bf16.gmra.mrb[0].mxu0 %v706
        %v1748 = vpop.f32.mrb[0].mxu0
        %v1749 = vadd.f32 %v1701, %v1748
        %v1750 = vpop.f32.mrb[0].mxu0
        %v1751 = vpop.f32.mrb[0].mxu0
        %v1752 = vpop.f32.mrb[0].mxu0
        %1753 = vdwg.mxu0
        %1754 = vmatprep.subr.bf16.mxu0 0
        %1755 = vmatpush1.bf16.msra.mxu0 %v1338
        %1756 = vmatprep.subr.bf16.mxu0 0
        %1757 = vmatpush1.bf16.msra.mxu0 %v1339
        %1758 = vmatprep.subr.bf16.mxu0 0
        %1759 = vmatpush1.bf16.msra.mxu0 %v1340
        %1760 = vmatprep.subr.bf16.mxu0 0
        %1761 = vmatpush1.bf16.msra.mxu0 %v1341
        %1762 = vmatprep.subr.bf16.mxu0 0
        %1763 = vmatpush1.bf16.msra.mxu0 %v1342
        %1764 = vmatprep.subr.bf16.mxu0 0
        %1765 = vmatpush1.bf16.msra.mxu0 %v1343
        %1766 = vmatprep.subr.bf16.mxu0 0
        %1767 = vmatpush1.bf16.msra.mxu0 %v1344
        %1768 = vmatprep.subr.bf16.mxu0 0
        %1769 = vmatpush1.bf16.msra.mxu0 %v1345
        %1770 = vmatprep.subr.bf16.mxu0 0
        %1771 = vmatpush1.bf16.msra.mxu0 %v1346
        %1772 = vmatprep.subr.bf16.mxu0 0
        %1773 = vmatpush1.bf16.msra.mxu0 %v1347
        %1774 = vmatprep.subr.bf16.mxu0 0
        %1775 = vmatpush1.bf16.msra.mxu0 %v1348
        %1776 = vmatprep.subr.bf16.mxu0 0
        %1777 = vmatpush1.bf16.msra.mxu0 %v1349
        %1778 = vmatprep.subr.bf16.mxu0 0
        %1779 = vmatpush1.bf16.msra.mxu0 %v1350
        %1780 = vmatprep.subr.bf16.mxu0 0
        %1781 = vmatpush1.bf16.msra.mxu0 %v1351
        %1782 = vmatprep.subr.bf16.mxu0 0
        %1783 = vmatpush1.bf16.msra.mxu0 %v1352
        %1784 = vmatprep.subr.bf16.mxu0 0
        %1785 = vmatpush1.bf16.msra.mxu0 %v1353
        %1786 = vmatprep.mubr.bf16.mxu0 %v693
        %1787 = vmatmul.mubr.bf16.gmra.mrb[0].mxu0 %v692
        %v1788 = vpop.f32.mrb[0].mxu0
        %v1789 = vadd.f32 %v1741, %v1788
        %v1790 = vpop.f32.mrb[0].mxu0
        %v1791 = vpop.f32.mrb[0].mxu0
        %v1792 = vadd.f32 %v1744, %v1791
        %v1793 = vpop.f32.mrb[0].mxu0
        %1794 = vmatprep.mubr.bf16.mxu0 %v709
        %1795 = vmatmul.mubr.bf16.gmra.mrb[0].mxu0 %v708
        %v1796 = vpop.f32.mrb[0].mxu0
        %v1797 = vadd.f32 %v1749, %v1796
        %v1798 = vpop.f32.mrb[0].mxu0
        %v1799 = vpop.f32.mrb[0].mxu0
        %v1800 = vpop.f32.mrb[0].mxu0
        %1801 = vdwg.mxu0
        %1802 = vmatprep.subr.bf16.mxu0 0
        %1803 = vmatpush1.bf16.msra.mxu0 %v1354
        %1804 = vmatprep.subr.bf16.mxu0 0
        %1805 = vmatpush1.bf16.msra.mxu0 %v1355
        %1806 = vmatprep.subr.bf16.mxu0 0
        %1807 = vmatpush1.bf16.msra.mxu0 %v1356
        %1808 = vmatprep.subr.bf16.mxu0 0
        %1809 = vmatpush1.bf16.msra.mxu0 %v1357
        %1810 = vmatprep.subr.bf16.mxu0 0
        %1811 = vmatpush1.bf16.msra.mxu0 %v1358
        %1812 = vmatprep.subr.bf16.mxu0 0
        %1813 = vmatpush1.bf16.msra.mxu0 %v1359
        %1814 = vmatprep.subr.bf16.mxu0 0
        %1815 = vmatpush1.bf16.msra.mxu0 %v1360
        %1816 = vmatprep.subr.bf16.mxu0 0
        %1817 = vmatpush1.bf16.msra.mxu0 %v1361
        %1818 = vmatprep.subr.bf16.mxu0 0
        %1819 = vmatpush1.bf16.msra.mxu0 %v1362
        %1820 = vmatprep.subr.bf16.mxu0 0
        %1821 = vmatpush1.bf16.msra.mxu0 %v1363
        %1822 = vmatprep.subr.bf16.mxu0 0
        %1823 = vmatpush1.bf16.msra.mxu0 %v1364
        %1824 = vmatprep.subr.bf16.mxu0 0
        %1825 = vmatpush1.bf16.msra.mxu0 %v1365
        %1826 = vmatprep.subr.bf16.mxu0 0
        %1827 = vmatpush1.bf16.msra.mxu0 %v1366
        %1828 = vmatprep.subr.bf16.mxu0 0
        %1829 = vmatpush1.bf16.msra.mxu0 %v1367
        %1830 = vmatprep.subr.bf16.mxu0 0
        %1831 = vmatpush1.bf16.msra.mxu0 %v1368
        %1832 = vmatprep.subr.bf16.mxu0 0
        %1833 = vmatpush1.bf16.msra.mxu0 %v1369
        %1834 = vmatprep.mubr.bf16.mxu0 %v695
        %1835 = vmatmul.mubr.bf16.gmra.mrb[0].mxu0 %v694
        %v1836 = vpop.f32.mrb[0].mxu0
        %v1837 = vadd.f32 %v1789, %v1836
        %v1838 = vpop.f32.mrb[0].mxu0
        %v1839 = vpop.f32.mrb[0].mxu0
        %v1840 = vadd.f32 %v1792, %v1839
        %v1841 = vpop.f32.mrb[0].mxu0
        %1842 = vmatprep.mubr.bf16.mxu0 %v711
        %1843 = vmatmul.mubr.bf16.gmra.mrb[0].mxu0 %v710
        %v1844 = vpop.f32.mrb[0].mxu0
        %v1845 = vadd.f32 %v1797, %v1844
        %v1846 = vpop.f32.mrb[0].mxu0
        %v1847 = vpop.f32.mrb[0].mxu0
        %v1848 = vpop.f32.mrb[0].mxu0
        %1849 = vdwg.mxu0
        %1850 = vmatprep.subr.bf16.mxu0 0
        %1851 = vmatpush1.bf16.msra.mxu0 %v1370
        %1852 = vmatprep.subr.bf16.mxu0 0
        %1853 = vmatpush1.bf16.msra.mxu0 %v1371
        %1854 = vmatprep.subr.bf16.mxu0 0
        %1855 = vmatpush1.bf16.msra.mxu0 %v1372
        %1856 = vmatprep.subr.bf16.mxu0 0
        %1857 = vmatpush1.bf16.msra.mxu0 %v1373
        %1858 = vmatprep.subr.bf16.mxu0 0
        %1859 = vmatpush1.bf16.msra.mxu0 %v1374
        %1860 = vmatprep.subr.bf16.mxu0 0
        %1861 = vmatpush1.bf16.msra.mxu0 %v1375
        %1862 = vmatprep.subr.bf16.mxu0 0
        %1863 = vmatpush1.bf16.msra.mxu0 %v1376
        %1864 = vmatprep.subr.bf16.mxu0 0
        %1865 = vmatpush1.bf16.msra.mxu0 %v1377
        %1866 = vmatprep.subr.bf16.mxu0 0
        %1867 = vmatpush1.bf16.msra.mxu0 %v1378
        %1868 = vmatprep.subr.bf16.mxu0 0
        %1869 = vmatpush1.bf16.msra.mxu0 %v1379
        %1870 = vmatprep.subr.bf16.mxu0 0
        %1871 = vmatpush1.bf16.msra.mxu0 %v1380
        %1872 = vmatprep.subr.bf16.mxu0 0
        %1873 = vmatpush1.bf16.msra.mxu0 %v1381
        %1874 = vmatprep.subr.bf16.mxu0 0
        %1875 = vmatpush1.bf16.msra.mxu0 %v1382
        %1876 = vmatprep.subr.bf16.mxu0 0
        %1877 = vmatpush1.bf16.msra.mxu0 %v1383
        %1878 = vmatprep.subr.bf16.mxu0 0
        %1879 = vmatpush1.bf16.msra.mxu0 %v1384
        %1880 = vmatprep.subr.bf16.mxu0 0
        %1881 = vmatpush1.bf16.msra.mxu0 %v1385
        %1882 = vmatprep.mubr.bf16.mxu0 %v697
        %1883 = vmatmul.mubr.bf16.gmra.mrb[0].mxu0 %v696
        %v1884 = vpop.f32.mrb[0].mxu0
        %v1885 = vadd.f32 %v1837, %v1884
        %v1886 = vpop.f32.mrb[0].mxu0
        %v1887 = vpop.f32.mrb[0].mxu0
        %v1888 = vadd.f32 %v1840, %v1887
        %v1889 = vpop.f32.mrb[0].mxu0
        %1890 = vmatprep.mubr.bf16.mxu0 %v713
        %1891 = vmatmul.mubr.bf16.gmra.mrb[0].mxu0 %v712
        %v1892 = vpop.f32.mrb[0].mxu0
        %v1893 = vadd.f32 %v1845, %v1892
        %v1894 = vpop.f32.mrb[0].mxu0
        %v1895 = vpop.f32.mrb[0].mxu0
        %v1896 = vpop.f32.mrb[0].mxu0
        %1897 = vdwg.mxu0
        %v1898 = vadd.f32 %v327, %v1885
        %v1899 = vadd.f32 %v328, %v1888
        %v1900 = vadd.f32 %v329, %v1893
        %1901 = vst [vmem:[#allocation2] sm:$0xff] %v1898
        %1902 = vst [vmem:[#allocation2 + $0x8] sm:$0xff] %v1899
        %1903 = vst [vmem:[#allocation2 + $0x10] sm:$0xff] %v1900
        %p1904 = scmp.eq.s32.totalorder %s21, 3
        // Predicated region
        $region60: #{faster_rcnn_forward.9} parent=50 // pred_check
          %p1905 = pneg %p1904
        $region61: #{faster_rcnn_forward.9} parent=50 // pred_check_branch
          %1907 = sbr.rel (%p1905) target = $region63
        $region62: #{faster_rcnn_forward.9} parent=50 // pred_region
          %v1908 = vld [vmem:[#allocation2] sm:$0xff]
          %v1909 = vld [vmem:[#allocation2 + $0x8] sm:$0xff]
          %v1910 = vld [vmem:[#allocation2 + $0x10] sm:$0xff]
          %v1911 = vld [vmem:[%s309] sm:$0x1]
          %v1913 = vlaneseq
          %v1914 = vshrl.u32 %v1913, 7
          %v1915 = vsub.s32 0, %v1914
          %v1916 = vrot.slane %v1911, %v1915
          %v1918 = vadd.f32 %v1908, %v1916
          %v1919 = vadd.f32 %v1909, %v1916
          %v1920 = vadd.f32 %v1910, %v1916
          %v1921 = vmax.f32 %v1918, 0.0
          %v1922 = vmax.f32 %v1919, 0.0
          %v1923 = vmax.f32 %v1920, 0.0
          %v1924 = vpack.c.bf16 %v1922, %v1921
          %v1925 = vpack.c.bf16 %v1923, %v1923
          %v1928 = vunpack.c.l.b16 %v1924
          %v1929 = vunpack.c.h.b16 %v1924
          %v1930 = vunpack.c.l.b16 %v1925
          %v1931 = vpack.c.b16 %v1928, %v1928
          %v1932 = vpack.c.b16 %v1929, %v1929
          %v1933 = vpack.c.b16 %v1930, %v1930
          %1937 = vst [vmem:[%s317] sm:$0xf] %v1931
          %1938 = vst [vmem:[%s317 + $0x4] sm:$0xf] %v1932
          %1939 = vst [vmem:[%s317 + $0x8] sm:$0xf] %v1933
        $region63: #{faster_rcnn_forward.9} parent=50 // pred_fallthru
          _
        %s1940 = smul.u32 3, %s19
        %p1941 = scmp.lt.s32.totalorder %s1940, 2
        %s1942 = scalar_select %p1941, %s1940, 2
        %p1943 = scmp.lt.s32.totalorder %s20, 0
        %s1944 = scalar_select %p1943, %s20, 0
        %s1945 = sadd.s32 %s1944, %s1942
        %s1946 = smul.addr %s1945, 4
        %s1947 = scalar_lea.vmem %s3, %s1946
        // Predicated region
        $region64: #{faster_rcnn_forward.9} parent=50 // pred_check
          %p1948 = pneg %p135
        $region65: #{faster_rcnn_forward.9} parent=50 // pred_check_branch
          %1950 = sbr.rel (%p1948) target = $region67
        $region66: #{faster_rcnn_forward.9} parent=50 // pred_region
          %s1951 = smul.u32 3, %s19
        $region67: #{faster_rcnn_forward.9} parent=50 // pred_fallthru
          _
        // Predicated region
        $region68: #{faster_rcnn_forward.9} parent=50 // pred_check
          %p1952 = pneg %p135
        $region69: #{faster_rcnn_forward.9} parent=50 // pred_check_branch
          %1954 = sbr.rel (%p1952) target = $region71
        $region70: #{faster_rcnn_forward.9} parent=50 // pred_region
          %s1955 = smul.u32 3, %s19
          %p1956 = scmp.lt.s32.totalorder %s1955, 2
          %s1957 = scalar_select %p1956, %s1955, 2
          %p1958 = scmp.lt.s32.totalorder %s20, 0
          %s1959 = scalar_select %p1958, %s20, 0
          %s1960 = sadd.s32 %s1959, %s1957
          %s1961 = smul.addr %s1960, 4
          %s1962 = scalar_lea.vmem %s3, %s1961
        $region71: #{faster_rcnn_forward.9} parent=50 // pred_fallthru
          _
      $region51: #{faster_rcnn_forward.9} parent=5 // pred_fallthru
        _
      %p1963 = scmp.le.s32.totalorder 2, %s9
      // Predicated region
      $region72: #{faster_rcnn_forward.9} parent=5 // pred_check
        %p1964 = pneg %p1963
      $region73: #{faster_rcnn_forward.9} parent=5 // pred_check_branch
        %1966 = sbr.rel (%p1964) target = $region75
      $region74: #{faster_rcnn_forward.9} parent=5 // pred_region
        %s1967 = ssub.s32 %s9, 2
      $region75: #{faster_rcnn_forward.9} parent=5 // pred_fallthru
        _
    $region6: #{faster_rcnn_forward.9} parent=1 // loop_footer
      %s13 = sadd.s32 1, %s9
    $region7: #{faster_rcnn_forward.9} parent=1 // loop_footer_branch
      %8 = sbr.rel target = $region3
    $region8: #{faster_rcnn_forward.9} parent=1 // loop_exit
      _

// kernel: faster_rcnn_forward.11
$region0: #{faster_rcnn_forward.11}
  #allocation0 [shape = 'u32[]', space=smem, size = 0x4, offset = 0x4, fixed_abs, tag = 'smem constant byte address 0x4 - core index']
  #allocation1 [shape = 'u32[144,128]{1,0:T(1,128)}', space=vmem, size = 0x12000, scoped, tag = 'internal scratch']
  %s0 = inlined_call_operand.vmem [shape: bf16[2,8,128], index: 0, kind: input, shape index: {}]
  %s1 = inlined_call_operand.vmem [shape: f32[2,8,8], index: 1, kind: input, shape index: {}]
  %s2 = inlined_call_operand.vmem [shape: f32[2,1,128], index: 2, kind: input, shape index: {}]
  %s3 = inlined_call_operand.vmem [shape: bf16[128,128], index: 3, kind: input, shape index: {}]
  %s4 = inlined_call_operand.vmem [shape: bf16[128,128], index: 4, kind: input, shape index: {}]
  %s5 = inlined_call_operand.vmem [shape: bf16[128,128], index: 5, kind: input, shape index: {}]
  %s6 = inlined_call_operand.vmem [shape: bf16[128,128], index: 6, kind: input, shape index: {}]
  %s7 = inlined_call_operand.vmem [shape: f32[1,128], index: 7, kind: input, shape index: {}]
  %s8 = inlined_call_operand.vmem [shape: f32[2,8,128], index: 8, kind: output, shape index: {}]
  %s9 = sld [smem:[#allocation0]]
  $region65: #{faster_rcnn_forward.11} parent=0
    _
  %s11 = ssub.s32 1, %s9
  %s12 = scalar_select 0, %s11, %s9
  loop: start=0, step=1, limit=4
  $region2: #{faster_rcnn_forward.11} parent=0 // loop_pre_header
    _
  $region3: #{faster_rcnn_forward.11} parent=0 // loop_header
    %s14 = sphi 0, %s18
    %p15 = scmp.ge.s32.totalorder %s14, 4
    %s24 = sphi 0, %s26
    %s27 = sphi 0, %s24
    %s28 = sphi 0, %s27
    %s44 = sphi 0, %s28
    %s50 = sphi 0, %s52
    %s53 = sphi 0, %s50
    %s54 = sphi 0, %s53
    %s70 = sphi 0, %s54
    %s76 = sphi 0, %s78
    %s79 = sphi 0, %s76
    %s80 = sphi 0, %s79
    %s96 = sphi 0, %s80
    %s100 = sphi 0, %s100
    %s102 = sphi 0, %s100
    %s103 = sphi 0, %s102
    %s117 = sphi 0, %s103
    %s121 = sphi 0, %s121
    %s123 = sphi 0, %s121
    %s124 = sphi 0, %s123
    %s138 = sphi 0, %s124
    %s142 = sphi 0, %s142
    %s144 = sphi 0, %s142
    %s145 = sphi 0, %s144
    %s159 = sphi 0, %s145
    %s163 = sphi 0, %s163
    %s165 = sphi 0, %s163
    %s166 = sphi 0, %s165
    %s180 = sphi 0, %s166
    %s184 = sphi 0, %s184
    %s186 = sphi 0, %s184
    %s187 = sphi 0, %s186
    %s201 = sphi 0, %s187
    %s207 = sphi 0, %s209
    %s210 = sphi 0, %s207
    %s211 = sphi 0, %s210
    %s227 = sphi 0, %s211
  $region4: #{faster_rcnn_forward.11} parent=0 // loop_header_branch
    %17 = sbr.rel (%p15) target = $region8
  $region5: #{faster_rcnn_forward.11} parent=0 // loop_body
    %s19 = ssub.s32 %s14, 1
    %s20 = ssub.s32 %s14, 2
    %s21 = sadd.s32 %s14, 1
    %s22 = ssub.s32 %s14, %s21
    %p23 = scmp.eq.s32.totalorder %s22, 0
    %s25 = sadd.s32 %s24, 1
    %s26 = scalar_select %p23, %s24, %s25
    %p29 = pneg %p23
    %p30 = scmp.eq.s32.totalorder %s14, 1
    %p31 = por %p29, %p30
    %p32 = scmp.ne.s32.totalorder %s24, %s27
    %p33 = scmp.eq.s32.totalorder %s14, 0
    %p34 = por %p32, %p33
    %p35 = scmp.ne.s32.totalorder %s24, %s27
    %p36 = scmp.eq.s32.totalorder %s19, 1
    %p37 = por %p35, %p36
    %p38 = scmp.ne.s32.totalorder %s27, %s28
    %p39 = scmp.eq.s32.totalorder %s19, 0
    %p40 = por %p38, %p39
    %p41 = scmp.ne.s32.totalorder %s27, %s28
    %p42 = scmp.eq.s32.totalorder %s20, 1
    %p43 = por %p41, %p42
    %p45 = scmp.ne.s32.totalorder %s28, %s44
    %p46 = scmp.eq.s32.totalorder %s20, 0
    %p47 = por %p45, %p46
    %s48 = ssub.s32 %s14, %s21
    %p49 = scmp.eq.s32.totalorder %s48, 0
    %s51 = sadd.s32 %s50, 1
    %s52 = scalar_select %p49, %s50, %s51
    %p55 = pneg %p49
    %p56 = scmp.eq.s32.totalorder %s14, 1
    %p57 = por %p55, %p56
    %p58 = scmp.ne.s32.totalorder %s50, %s53
    %p59 = scmp.eq.s32.totalorder %s14, 0
    %p60 = por %p58, %p59
    %p61 = scmp.ne.s32.totalorder %s50, %s53
    %p62 = scmp.eq.s32.totalorder %s19, 1
    %p63 = por %p61, %p62
    %p64 = scmp.ne.s32.totalorder %s53, %s54
    %p65 = scmp.eq.s32.totalorder %s19, 0
    %p66 = por %p64, %p65
    %p67 = scmp.ne.s32.totalorder %s53, %s54
    %p68 = scmp.eq.s32.totalorder %s20, 1
    %p69 = por %p67, %p68
    %p71 = scmp.ne.s32.totalorder %s54, %s70
    %p72 = scmp.eq.s32.totalorder %s20, 0
    %p73 = por %p71, %p72
    %s74 = ssub.s32 %s14, %s21
    %p75 = scmp.eq.s32.totalorder %s74, 0
    %s77 = sadd.s32 %s76, 1
    %s78 = scalar_select %p75, %s76, %s77
    %p81 = pneg %p75
    %p82 = scmp.eq.s32.totalorder %s14, 1
    %p83 = por %p81, %p82
    %p84 = scmp.ne.s32.totalorder %s76, %s79
    %p85 = scmp.eq.s32.totalorder %s14, 0
    %p86 = por %p84, %p85
    %p87 = scmp.ne.s32.totalorder %s76, %s79
    %p88 = scmp.eq.s32.totalorder %s19, 1
    %p89 = por %p87, %p88
    %p90 = scmp.ne.s32.totalorder %s79, %s80
    %p91 = scmp.eq.s32.totalorder %s19, 0
    %p92 = por %p90, %p91
    %p93 = scmp.ne.s32.totalorder %s79, %s80
    %p94 = scmp.eq.s32.totalorder %s20, 1
    %p95 = por %p93, %p94
    %p97 = scmp.ne.s32.totalorder %s80, %s96
    %p98 = scmp.eq.s32.totalorder %s20, 0
    %p99 = por %p97, %p98
    %s101 = sadd.s32 %s100, 1
    %p104 = scmp.eq.s32.totalorder %s14, 1
    %p105 = scmp.ne.s32.totalorder %s100, %s102
    %p106 = scmp.eq.s32.totalorder %s14, 0
    %p107 = por %p105, %p106
    %p108 = scmp.ne.s32.totalorder %s100, %s102
    %p109 = scmp.eq.s32.totalorder %s19, 1
    %p110 = por %p108, %p109
    %p111 = scmp.ne.s32.totalorder %s102, %s103
    %p112 = scmp.eq.s32.totalorder %s19, 0
    %p113 = por %p111, %p112
    %p114 = scmp.ne.s32.totalorder %s102, %s103
    %p115 = scmp.eq.s32.totalorder %s20, 1
    %p116 = por %p114, %p115
    %p118 = scmp.ne.s32.totalorder %s103, %s117
    %p119 = scmp.eq.s32.totalorder %s20, 0
    %p120 = por %p118, %p119
    %s122 = sadd.s32 %s121, 1
    %p125 = scmp.eq.s32.totalorder %s14, 1
    %p126 = scmp.ne.s32.totalorder %s121, %s123
    %p127 = scmp.eq.s32.totalorder %s14, 0
    %p128 = por %p126, %p127
    %p129 = scmp.ne.s32.totalorder %s121, %s123
    %p130 = scmp.eq.s32.totalorder %s19, 1
    %p131 = por %p129, %p130
    %p132 = scmp.ne.s32.totalorder %s123, %s124
    %p133 = scmp.eq.s32.totalorder %s19, 0
    %p134 = por %p132, %p133
    %p135 = scmp.ne.s32.totalorder %s123, %s124
    %p136 = scmp.eq.s32.totalorder %s20, 1
    %p137 = por %p135, %p136
    %p139 = scmp.ne.s32.totalorder %s124, %s138
    %p140 = scmp.eq.s32.totalorder %s20, 0
    %p141 = por %p139, %p140
    %s143 = sadd.s32 %s142, 1
    %p146 = scmp.eq.s32.totalorder %s14, 1
    %p147 = scmp.ne.s32.totalorder %s142, %s144
    %p148 = scmp.eq.s32.totalorder %s14, 0
    %p149 = por %p147, %p148
    %p150 = scmp.ne.s32.totalorder %s142, %s144
    %p151 = scmp.eq.s32.totalorder %s19, 1
    %p152 = por %p150, %p151
    %p153 = scmp.ne.s32.totalorder %s144, %s145
    %p154 = scmp.eq.s32.totalorder %s19, 0
    %p155 = por %p153, %p154
    %p156 = scmp.ne.s32.totalorder %s144, %s145
    %p157 = scmp.eq.s32.totalorder %s20, 1
    %p158 = por %p156, %p157
    %p160 = scmp.ne.s32.totalorder %s145, %s159
    %p161 = scmp.eq.s32.totalorder %s20, 0
    %p162 = por %p160, %p161
    %s164 = sadd.s32 %s163, 1
    %p167 = scmp.eq.s32.totalorder %s14, 1
    %p168 = scmp.ne.s32.totalorder %s163, %s165
    %p169 = scmp.eq.s32.totalorder %s14, 0
    %p170 = por %p168, %p169
    %p171 = scmp.ne.s32.totalorder %s163, %s165
    %p172 = scmp.eq.s32.totalorder %s19, 1
    %p173 = por %p171, %p172
    %p174 = scmp.ne.s32.totalorder %s165, %s166
    %p175 = scmp.eq.s32.totalorder %s19, 0
    %p176 = por %p174, %p175
    %p177 = scmp.ne.s32.totalorder %s165, %s166
    %p178 = scmp.eq.s32.totalorder %s20, 1
    %p179 = por %p177, %p178
    %p181 = scmp.ne.s32.totalorder %s166, %s180
    %p182 = scmp.eq.s32.totalorder %s20, 0
    %p183 = por %p181, %p182
    %s185 = sadd.s32 %s184, 1
    %p188 = scmp.eq.s32.totalorder %s14, 1
    %p189 = scmp.ne.s32.totalorder %s184, %s186
    %p190 = scmp.eq.s32.totalorder %s14, 0
    %p191 = por %p189, %p190
    %p192 = scmp.ne.s32.totalorder %s184, %s186
    %p193 = scmp.eq.s32.totalorder %s19, 1
    %p194 = por %p192, %p193
    %p195 = scmp.ne.s32.totalorder %s186, %s187
    %p196 = scmp.eq.s32.totalorder %s19, 0
    %p197 = por %p195, %p196
    %p198 = scmp.ne.s32.totalorder %s186, %s187
    %p199 = scmp.eq.s32.totalorder %s20, 1
    %p200 = por %p198, %p199
    %p202 = scmp.ne.s32.totalorder %s187, %s201
    %p203 = scmp.eq.s32.totalorder %s20, 0
    %p204 = por %p202, %p203
    %s205 = ssub.s32 %s14, %s21
    %p206 = scmp.eq.s32.totalorder %s205, 0
    %s208 = sadd.s32 %s207, 1
    %s209 = scalar_select %p206, %s207, %s208
    %p212 = pneg %p206
    %p213 = scmp.eq.s32.totalorder %s14, 1
    %p214 = por %p212, %p213
    %p215 = scmp.ne.s32.totalorder %s207, %s210
    %p216 = scmp.eq.s32.totalorder %s14, 0
    %p217 = por %p215, %p216
    %p218 = scmp.ne.s32.totalorder %s207, %s210
    %p219 = scmp.eq.s32.totalorder %s19, 1
    %p220 = por %p218, %p219
    %p221 = scmp.ne.s32.totalorder %s210, %s211
    %p222 = scmp.eq.s32.totalorder %s19, 0
    %p223 = por %p221, %p222
    %p224 = scmp.ne.s32.totalorder %s210, %s211
    %p225 = scmp.eq.s32.totalorder %s20, 1
    %p226 = por %p224, %p225
    %p228 = scmp.ne.s32.totalorder %s211, %s227
    %p229 = scmp.eq.s32.totalorder %s20, 0
    %p230 = por %p228, %p229
    %p231 = scmp.le.s32.totalorder 1, %s14
    %p232 = scmp.lt.s32.totalorder %s14, 3
    %p233 = pnand %p231, %p232
    %p234 = pneg %p233
    // Predicated region
    $region9: #{faster_rcnn_forward.11} parent=5 // pred_check
      _
    $region10: #{faster_rcnn_forward.11} parent=5 // pred_check_branch
      %236 = sbr.rel (%p233) target = $region12
    $region11: #{faster_rcnn_forward.11} parent=5 // pred_region
      %s237 = ssub.s32 %s14, 1
      // Predicated region
      $region13: #{faster_rcnn_forward.11} parent=11 // pred_check
        %p238 = pneg %p113
      $region14: #{faster_rcnn_forward.11} parent=11 // pred_check_branch
        %240 = sbr.rel (%p238) target = $region16
      $region15: #{faster_rcnn_forward.11} parent=11 // pred_region
        _
      $region16: #{faster_rcnn_forward.11} parent=11 // pred_fallthru
        _
      // Predicated region
      $region17: #{faster_rcnn_forward.11} parent=11 // pred_check
        %p241 = pneg %p134
      $region18: #{faster_rcnn_forward.11} parent=11 // pred_check_branch
        %243 = sbr.rel (%p241) target = $region20
      $region19: #{faster_rcnn_forward.11} parent=11 // pred_region
        _
      $region20: #{faster_rcnn_forward.11} parent=11 // pred_fallthru
        _
      // Predicated region
      $region21: #{faster_rcnn_forward.11} parent=11 // pred_check
        %p244 = pneg %p155
      $region22: #{faster_rcnn_forward.11} parent=11 // pred_check_branch
        %246 = sbr.rel (%p244) target = $region24
      $region23: #{faster_rcnn_forward.11} parent=11 // pred_region
        _
      $region24: #{faster_rcnn_forward.11} parent=11 // pred_fallthru
        _
      // Predicated region
      $region25: #{faster_rcnn_forward.11} parent=11 // pred_check
        %p247 = pneg %p176
      $region26: #{faster_rcnn_forward.11} parent=11 // pred_check_branch
        %249 = sbr.rel (%p247) target = $region28
      $region27: #{faster_rcnn_forward.11} parent=11 // pred_region
        _
      $region28: #{faster_rcnn_forward.11} parent=11 // pred_fallthru
        _
      // Predicated region
      $region29: #{faster_rcnn_forward.11} parent=11 // pred_check
        %p250 = pneg %p197
      $region30: #{faster_rcnn_forward.11} parent=11 // pred_check_branch
        %252 = sbr.rel (%p250) target = $region32
      $region31: #{faster_rcnn_forward.11} parent=11 // pred_region
        _
      $region32: #{faster_rcnn_forward.11} parent=11 // pred_fallthru
        _
    $region12: #{faster_rcnn_forward.11} parent=5 // pred_fallthru
      _
    %p253 = scmp.lt.s32.totalorder %s14, 2
    // Predicated region
    $region33: #{faster_rcnn_forward.11} parent=5 // pred_check
      %p254 = pneg %p253
    $region34: #{faster_rcnn_forward.11} parent=5 // pred_check_branch
      %256 = sbr.rel (%p254) target = $region36
    $region35: #{faster_rcnn_forward.11} parent=5 // pred_region
      // Predicated region
      $region37: #{faster_rcnn_forward.11} parent=35 // pred_check
        %p257 = pneg %p34
      $region38: #{faster_rcnn_forward.11} parent=35 // pred_check_branch
        %259 = sbr.rel (%p257) target = $region40
      $region39: #{faster_rcnn_forward.11} parent=35 // pred_region
        %p260 = scmp.lt.s32.totalorder %s14, 1
        %s261 = scalar_select %p260, %s14, 1
        %s262 = smul.addr %s261, 4
        %s263 = scalar_lea.vmem %s0, %s262
      $region40: #{faster_rcnn_forward.11} parent=35 // pred_fallthru
        _
      // Predicated region
      $region41: #{faster_rcnn_forward.11} parent=35 // pred_check
        %p264 = pneg %p60
      $region42: #{faster_rcnn_forward.11} parent=35 // pred_check_branch
        %266 = sbr.rel (%p264) target = $region44
      $region43: #{faster_rcnn_forward.11} parent=35 // pred_region
        %p267 = scmp.lt.s32.totalorder %s14, 1
        %s268 = scalar_select %p267, %s14, 1
        %s269 = smul.addr %s268, 8
        %s270 = scalar_lea.vmem %s1, %s269
      $region44: #{faster_rcnn_forward.11} parent=35 // pred_fallthru
        _
      // Predicated region
      $region45: #{faster_rcnn_forward.11} parent=35 // pred_check
        %p271 = pneg %p86
      $region46: #{faster_rcnn_forward.11} parent=35 // pred_check_branch
        %273 = sbr.rel (%p271) target = $region48
      $region47: #{faster_rcnn_forward.11} parent=35 // pred_region
        %p274 = scmp.lt.s32.totalorder %s14, 1
        %s275 = scalar_select %p274, %s14, 1
        %s276 = scalar_lea.vmem %s2, %s275
      $region48: #{faster_rcnn_forward.11} parent=35 // pred_fallthru
        _
    $region36: #{faster_rcnn_forward.11} parent=5 // pred_fallthru
      _
    %p277 = scmp.le.s32.totalorder 1, %s14
    %p278 = scmp.lt.s32.totalorder %s14, 3
    %p279 = pnand %p277, %p278
    %p280 = pneg %p279
    // Predicated region
    $region49: #{faster_rcnn_forward.11} parent=5 // pred_check
      _
    $region50: #{faster_rcnn_forward.11} parent=5 // pred_check_branch
      %282 = sbr.rel (%p279) target = $region52
    $region51: #{faster_rcnn_forward.11} parent=5 // pred_region
      %s283 = ssub.s32 %s14, 1
      %p284 = scmp.lt.s32.totalorder %s19, 1
      %s285 = scalar_select %p284, %s19, 1
      %s286 = smul.addr %s285, 4
      %s287 = scalar_lea.vmem %s0, %s286
      %p288 = pneg %p40
      %p289 = pneg %p37
      %p290 = scmp.lt.s32.totalorder %s19, 1
      %s291 = scalar_select %p290, %s19, 1
      %s292 = smul.addr %s291, 8
      %s293 = scalar_lea.vmem %s1, %s292
      %p294 = pneg %p66
      %p295 = pneg %p63
      %p296 = scmp.lt.s32.totalorder %s19, 1
      %s297 = scalar_select %p296, %s19, 1
      %s298 = scalar_lea.vmem %s2, %s297
      %p299 = pneg %p92
      %p300 = pneg %p89
      %p301 = pneg %p113
      %p302 = pneg %p110
      %p303 = pneg %p134
      %p304 = pneg %p131
      %p305 = pneg %p155
      %p306 = pneg %p152
      %p307 = pneg %p176
      %p308 = pneg %p173
      %p309 = pneg %p197
      %p310 = pneg %p194
      %p311 = pneg %p223
      %p312 = pneg %p220
      %p313 = scmp.lt.s32.totalorder %s19, 1
      %s314 = scalar_select %p313, %s19, 1
      %s315 = smul.addr %s314, 8
      %s316 = scalar_lea.vmem %s8, %s315
      %p317 = scmp.lt.s32.totalorder %s19, 1
      %s318 = scalar_select %p317, %s19, 1
      %s319 = smul.addr %s318, 4
      %s320 = scalar_lea.vmem %s0, %s319
      %p321 = scmp.lt.s32.totalorder %s19, 1
      %s322 = scalar_select %p321, %s19, 1
      %s323 = smul.addr %s322, 8
      %s324 = scalar_lea.vmem %s1, %s323
      %p325 = scmp.lt.s32.totalorder %s19, 1
      %s326 = scalar_select %p325, %s19, 1
      %s327 = scalar_lea.vmem %s2, %s326
      %p328 = scmp.lt.s32.totalorder %s19, 1
      %s329 = scalar_select %p328, %s19, 1
      %s330 = smul.addr %s329, 8
      %s331 = scalar_lea.vmem %s8, %s330
      %v333 = vld [vmem:[%s320] sm:$0xf]
      %v334 = vld [vmem:[%s324] sm:$0xff]
      %vm335 = vcmask 64512
      %v336 = vsel %vm335, %v334, -inf
      %337 = vmax.xlane.f32.xlu0 %v336
      %v338 = vpop.xlane.xlu0 %337
      %v339 = vsub.f32 %v334, %v338
      %v340 = vmul.f32 %v339, 1.442695
      %v341 = vpow.pop %v340
      %v342 = vsel %vm335, %v341, 0.0
      %343 = vadd.xlane.f32.xlu0 %v342
      %v344 = vpop.xlane.xlu0 %343
      %v345 = vrcp.pop %v344
      %v346 = vmul.f32 %v341, %v345
      %v347 = vld [vmem:[%s4] sm:$0xf]
      %v348 = vld [vmem:[%s4 + $0x4] sm:$0xf]
      %v349 = vld [vmem:[%s4 + $0x8] sm:$0xf]
      %v350 = vld [vmem:[%s4 + $0xc] sm:$0xf]
      %v351 = vld [vmem:[%s4 + $0x10] sm:$0xf]
      %v352 = vld [vmem:[%s4 + $0x14] sm:$0xf]
      %v353 = vld [vmem:[%s4 + $0x18] sm:$0xf]
      %v354 = vld [vmem:[%s4 + $0x1c] sm:$0xf]
      %v355 = vld [vmem:[%s4 + $0x20] sm:$0xf]
      %v356 = vld [vmem:[%s4 + $0x24] sm:$0xf]
      %v357 = vld [vmem:[%s4 + $0x28] sm:$0xf]
      %v358 = vld [vmem:[%s4 + $0x2c] sm:$0xf]
      %v359 = vld [vmem:[%s4 + $0x30] sm:$0xf]
      %v360 = vld [vmem:[%s4 + $0x34] sm:$0xf]
      %v361 = vld [vmem:[%s4 + $0x38] sm:$0xf]
      %v362 = vld [vmem:[%s4 + $0x3c] sm:$0xf]
      %v379 = vunpack.c.l.b16 %v347
      %v380 = vunpack.c.l.b16 %v348
      %v381 = vunpack.c.l.b16 %v349
      %v382 = vunpack.c.l.b16 %v350
      %v383 = vunpack.c.l.b16 %v351
      %v384 = vunpack.c.l.b16 %v352
      %v385 = vunpack.c.l.b16 %v353
      %v386 = vunpack.c.l.b16 %v354
      %v387 = vunpack.c.l.b16 %v355
      %v388 = vunpack.c.l.b16 %v356
      %v389 = vunpack.c.l.b16 %v357
      %v390 = vunpack.c.l.b16 %v358
      %v391 = vunpack.c.l.b16 %v359
      %v392 = vunpack.c.l.b16 %v360
      %v393 = vunpack.c.l.b16 %v361
      %v394 = vunpack.c.l.b16 %v362
      %v395 = vpack.c.b16 %v380, %v379
      %v396 = vpack.c.b16 %v382, %v381
      %v397 = vpack.c.b16 %v384, %v383
      %v398 = vpack.c.b16 %v386, %v385
      %v399 = vpack.c.b16 %v388, %v387
      %v400 = vpack.c.b16 %v390, %v389
      %v401 = vpack.c.b16 %v392, %v391
      %v402 = vpack.c.b16 %v394, %v393
      %411 = vmatprep.subr.bf16.mxu0 0
      %412 = vmatpush1.bf16.msra.mxu0 %v395
      %413 = vmatprep.subr.bf16.mxu0 0
      %414 = vmatpush1.bf16.msra.mxu0 %v396
      %415 = vmatprep.subr.bf16.mxu0 0
      %416 = vmatpush1.bf16.msra.mxu0 %v397
      %417 = vmatprep.subr.bf16.mxu0 0
      %418 = vmatpush1.bf16.msra.mxu0 %v398
      %419 = vmatprep.subr.bf16.mxu0 0
      %420 = vmatpush1.bf16.msra.mxu0 %v399
      %421 = vmatprep.subr.bf16.mxu0 0
      %422 = vmatpush1.bf16.msra.mxu0 %v400
      %423 = vmatprep.subr.bf16.mxu0 0
      %424 = vmatpush1.bf16.msra.mxu0 %v401
      %425 = vmatprep.subr.bf16.mxu0 0
      %426 = vmatpush1.bf16.msra.mxu0 %v402
      %427 = vmatprep.subr.bf16.mxu0 0
      %428 = vmatpush1.bf16.msra.mxu0 0
      %429 = vmatprep.subr.bf16.mxu0 0
      %430 = vmatpush1.bf16.msra.mxu0 0
      %431 = vmatprep.subr.bf16.mxu0 0
      %432 = vmatpush1.bf16.msra.mxu0 0
      %433 = vmatprep.subr.bf16.mxu0 0
      %434 = vmatpush1.bf16.msra.mxu0 0
      %435 = vmatprep.subr.bf16.mxu0 0
      %436 = vmatpush1.bf16.msra.mxu0 0
      %437 = vmatprep.subr.bf16.mxu0 0
      %438 = vmatpush1.bf16.msra.mxu0 0
      %439 = vmatprep.subr.bf16.mxu0 0
      %440 = vmatpush1.bf16.msra.mxu0 0
      %441 = vmatprep.subr.bf16.mxu0 0
      %442 = vmatpush1.bf16.msra.mxu0 0
      %443 = vmatprep.mubr.bf16.mxu0 0
      %444 = vmatmul.mubr.bf16.gmra.mrb[0].mxu0 %v333
      %v445 = vpop.f32.mrb[0].mxu0
      %v446 = vadd.f32 0.0, %v445
      %v447 = vpop.f32.mrb[0].mxu0
      %v448 = vpop.f32.mrb[0].mxu0
      %v449 = vpop.f32.mrb[0].mxu0
      %450 = vdwg.mxu0
      %v451 = vpack.c.bf16 %v346, %v346
      %v452 = vpack.c.bf16 %v446, %v446
      %v454 = vsel %vm335, %v451, 0
      %vm456 = vcmask 1043456
      %v458 = vsel %vm456, %v452, 0
      %460 = vmatprep.subr.bf16.mxu0 0
      %461 = vmatpush1.bf16.msra.mxu0 %v458
      %462 = vmatprep.subr.bf16.mxu0 0
      %463 = vmatpush1.bf16.msra.mxu0 0
      %464 = vmatprep.subr.bf16.mxu0 0
      %465 = vmatpush1.bf16.msra.mxu0 0
      %466 = vmatprep.subr.bf16.mxu0 0
      %467 = vmatpush1.bf16.msra.mxu0 0
      %468 = vmatprep.subr.bf16.mxu0 0
      %469 = vmatpush1.bf16.msra.mxu0 0
      %470 = vmatprep.subr.bf16.mxu0 0
      %471 = vmatpush1.bf16.msra.mxu0 0
      %472 = vmatprep.subr.bf16.mxu0 0
      %473 = vmatpush1.bf16.msra.mxu0 0
      %474 = vmatprep.subr.bf16.mxu0 0
      %475 = vmatpush1.bf16.msra.mxu0 0
      %476 = vmatprep.subr.bf16.mxu0 0
      %477 = vmatpush1.bf16.msra.mxu0 0
      %478 = vmatprep.subr.bf16.mxu0 0
      %479 = vmatpush1.bf16.msra.mxu0 0
      %480 = vmatprep.subr.bf16.mxu0 0
      %481 = vmatpush1.bf16.msra.mxu0 0
      %482 = vmatprep.subr.bf16.mxu0 0
      %483 = vmatpush1.bf16.msra.mxu0 0
      %484 = vmatprep.subr.bf16.mxu0 0
      %485 = vmatpush1.bf16.msra.mxu0 0
      %486 = vmatprep.subr.bf16.mxu0 0
      %487 = vmatpush1.bf16.msra.mxu0 0
      %488 = vmatprep.subr.bf16.mxu0 0
      %489 = vmatpush1.bf16.msra.mxu0 0
      %490 = vmatprep.subr.bf16.mxu0 0
      %491 = vmatpush1.bf16.msra.mxu0 0
      %492 = vmatprep.mubr.bf16.mxu0 0
      %493 = vmatmul.mubr.bf16.gmra.mrb[0].mxu0 %v454
      %v494 = vpop.f32.mrb[0].mxu0
      %v495 = vadd.f32 0.0, %v494
      %v496 = vpop.f32.mrb[0].mxu0
      %v497 = vpop.f32.mrb[0].mxu0
      %v498 = vpop.f32.mrb[0].mxu0
      %499 = vdwg.mxu0
      %v500 = vld [vmem:[%s3] sm:$0xf]
      %v501 = vld [vmem:[%s3 + $0x4] sm:$0xf]
      %v502 = vld [vmem:[%s3 + $0x8] sm:$0xf]
      %v503 = vld [vmem:[%s3 + $0xc] sm:$0xf]
      %v504 = vld [vmem:[%s3 + $0x10] sm:$0xf]
      %v505 = vld [vmem:[%s3 + $0x14] sm:$0xf]
      %v506 = vld [vmem:[%s3 + $0x18] sm:$0xf]
      %v507 = vld [vmem:[%s3 + $0x1c] sm:$0xf]
      %v508 = vld [vmem:[%s3 + $0x20] sm:$0xf]
      %v509 = vld [vmem:[%s3 + $0x24] sm:$0xf]
      %v510 = vld [vmem:[%s3 + $0x28] sm:$0xf]
      %v511 = vld [vmem:[%s3 + $0x2c] sm:$0xf]
      %v512 = vld [vmem:[%s3 + $0x30] sm:$0xf]
      %v513 = vld [vmem:[%s3 + $0x34] sm:$0xf]
      %v514 = vld [vmem:[%s3 + $0x38] sm:$0xf]
      %v515 = vld [vmem:[%s3 + $0x3c] sm:$0xf]
      %v516 = vld [vmem:[%s327] sm:$0x1]
      %v518 = vlaneseq
      %v519 = vshrl.u32 %v518, 7
      %v520 = vsub.s32 0, %v519
      %v521 = vrot.slane %v516, %v520
      %v539 = vunpack.c.l.b16 %v500
      %v540 = vunpack.c.l.b16 %v501
      %v541 = vunpack.c.l.b16 %v502
      %v542 = vunpack.c.l.b16 %v503
      %v543 = vunpack.c.l.b16 %v504
      %v544 = vunpack.c.l.b16 %v505
      %v545 = vunpack.c.l.b16 %v506
      %v546 = vunpack.c.l.b16 %v507
      %v547 = vunpack.c.l.b16 %v508
      %v548 = vunpack.c.l.b16 %v509
      %v549 = vunpack.c.l.b16 %v510
      %v550 = vunpack.c.l.b16 %v511
      %v551 = vunpack.c.l.b16 %v512
      %v552 = vunpack.c.l.b16 %v513
      %v553 = vunpack.c.l.b16 %v514
      %v554 = vunpack.c.l.b16 %v515
      %v555 = vpack.c.b16 %v540, %v539
      %v556 = vpack.c.b16 %v542, %v541
      %v557 = vpack.c.b16 %v544, %v543
      %v558 = vpack.c.b16 %v546, %v545
      %v559 = vpack.c.b16 %v548, %v547
      %v560 = vpack.c.b16 %v550, %v549
      %v561 = vpack.c.b16 %v552, %v551
      %v562 = vpack.c.b16 %v554, %v553
      %571 = vmatprep.subr.bf16.mxu0 0
      %572 = vmatpush1.bf16.msra.mxu0 %v555
      %573 = vmatprep.subr.bf16.mxu0 0
      %574 = vmatpush1.bf16.msra.mxu0 %v556
      %575 = vmatprep.subr.bf16.mxu0 0
      %576 = vmatpush1.bf16.msra.mxu0 %v557
      %577 = vmatprep.subr.bf16.mxu0 0
      %578 = vmatpush1.bf16.msra.mxu0 %v558
      %579 = vmatprep.subr.bf16.mxu0 0
      %580 = vmatpush1.bf16.msra.mxu0 %v559
      %581 = vmatprep.subr.bf16.mxu0 0
      %582 = vmatpush1.bf16.msra.mxu0 %v560
      %583 = vmatprep.subr.bf16.mxu0 0
      %584 = vmatpush1.bf16.msra.mxu0 %v561
      %585 = vmatprep.subr.bf16.mxu0 0
      %586 = vmatpush1.bf16.msra.mxu0 %v562
      %587 = vmatprep.subr.bf16.mxu0 0
      %588 = vmatpush1.bf16.msra.mxu0 0
      %589 = vmatprep.subr.bf16.mxu0 0
      %590 = vmatpush1.bf16.msra.mxu0 0
      %591 = vmatprep.subr.bf16.mxu0 0
      %592 = vmatpush1.bf16.msra.mxu0 0
      %593 = vmatprep.subr.bf16.mxu0 0
      %594 = vmatpush1.bf16.msra.mxu0 0
      %595 = vmatprep.subr.bf16.mxu0 0
      %596 = vmatpush1.bf16.msra.mxu0 0
      %597 = vmatprep.subr.bf16.mxu0 0
      %598 = vmatpush1.bf16.msra.mxu0 0
      %599 = vmatprep.subr.bf16.mxu0 0
      %600 = vmatpush1.bf16.msra.mxu0 0
      %601 = vmatprep.subr.bf16.mxu0 0
      %602 = vmatpush1.bf16.msra.mxu0 0
      %603 = vmatprep.mubr.bf16.mxu0 0
      %604 = vmatmul.mubr.bf16.gmra.mrb[0].mxu0 %v333
      %v605 = vpop.f32.mrb[0].mxu0
      %v606 = vadd.f32 %v521, %v605
      %v607 = vpop.f32.mrb[0].mxu0
      %v608 = vpop.f32.mrb[0].mxu0
      %v609 = vpop.f32.mrb[0].mxu0
      %610 = vdwg.mxu0
      %v611 = vpack.c.bf16 %v495, %v495
      %v612 = vld [vmem:[%s5] sm:$0xf]
      %v613 = vld [vmem:[%s5 + $0x4] sm:$0xf]
      %v614 = vld [vmem:[%s5 + $0x8] sm:$0xf]
      %v615 = vld [vmem:[%s5 + $0xc] sm:$0xf]
      %v616 = vld [vmem:[%s5 + $0x10] sm:$0xf]
      %v617 = vld [vmem:[%s5 + $0x14] sm:$0xf]
      %v618 = vld [vmem:[%s5 + $0x18] sm:$0xf]
      %v619 = vld [vmem:[%s5 + $0x1c] sm:$0xf]
      %v620 = vld [vmem:[%s5 + $0x20] sm:$0xf]
      %v621 = vld [vmem:[%s5 + $0x24] sm:$0xf]
      %v622 = vld [vmem:[%s5 + $0x28] sm:$0xf]
      %v623 = vld [vmem:[%s5 + $0x2c] sm:$0xf]
      %v624 = vld [vmem:[%s5 + $0x30] sm:$0xf]
      %v625 = vld [vmem:[%s5 + $0x34] sm:$0xf]
      %v626 = vld [vmem:[%s5 + $0x38] sm:$0xf]
      %v627 = vld [vmem:[%s5 + $0x3c] sm:$0xf]
      %v644 = vunpack.c.l.b16 %v612
      %v645 = vunpack.c.l.b16 %v613
      %v646 = vunpack.c.l.b16 %v614
      %v647 = vunpack.c.l.b16 %v615
      %v648 = vunpack.c.l.b16 %v616
      %v649 = vunpack.c.l.b16 %v617
      %v650 = vunpack.c.l.b16 %v618
      %v651 = vunpack.c.l.b16 %v619
      %v652 = vunpack.c.l.b16 %v620
      %v653 = vunpack.c.l.b16 %v621
      %v654 = vunpack.c.l.b16 %v622
      %v655 = vunpack.c.l.b16 %v623
      %v656 = vunpack.c.l.b16 %v624
      %v657 = vunpack.c.l.b16 %v625
      %v658 = vunpack.c.l.b16 %v626
      %v659 = vunpack.c.l.b16 %v627
      %v660 = vpack.c.b16 %v645, %v644
      %v661 = vpack.c.b16 %v647, %v646
      %v662 = vpack.c.b16 %v649, %v648
      %v663 = vpack.c.b16 %v651, %v650
      %v664 = vpack.c.b16 %v653, %v652
      %v665 = vpack.c.b16 %v655, %v654
      %v666 = vpack.c.b16 %v657, %v656
      %v667 = vpack.c.b16 %v659, %v658
      %676 = vmatprep.subr.bf16.mxu0 0
      %677 = vmatpush1.bf16.msra.mxu0 %v660
      %678 = vmatprep.subr.bf16.mxu0 0
      %679 = vmatpush1.bf16.msra.mxu0 %v661
      %680 = vmatprep.subr.bf16.mxu0 0
      %681 = vmatpush1.bf16.msra.mxu0 %v662
      %682 = vmatprep.subr.bf16.mxu0 0
      %683 = vmatpush1.bf16.msra.mxu0 %v663
      %684 = vmatprep.subr.bf16.mxu0 0
      %685 = vmatpush1.bf16.msra.mxu0 %v664
      %686 = vmatprep.subr.bf16.mxu0 0
      %687 = vmatpush1.bf16.msra.mxu0 %v665
      %688 = vmatprep.subr.bf16.mxu0 0
      %689 = vmatpush1.bf16.msra.mxu0 %v666
      %690 = vmatprep.subr.bf16.mxu0 0
      %691 = vmatpush1.bf16.msra.mxu0 %v667
      %692 = vmatprep.subr.bf16.mxu0 0
      %693 = vmatpush1.bf16.msra.mxu0 0
      %694 = vmatprep.subr.bf16.mxu0 0
      %695 = vmatpush1.bf16.msra.mxu0 0
      %696 = vmatprep.subr.bf16.mxu0 0
      %697 = vmatpush1.bf16.msra.mxu0 0
      %698 = vmatprep.subr.bf16.mxu0 0
      %699 = vmatpush1.bf16.msra.mxu0 0
      %700 = vmatprep.subr.bf16.mxu0 0
      %701 = vmatpush1.bf16.msra.mxu0 0
      %702 = vmatprep.subr.bf16.mxu0 0
      %703 = vmatpush1.bf16.msra.mxu0 0
      %704 = vmatprep.subr.bf16.mxu0 0
      %705 = vmatpush1.bf16.msra.mxu0 0
      %706 = vmatprep.subr.bf16.mxu0 0
      %707 = vmatpush1.bf16.msra.mxu0 0
      %708 = vmatprep.mubr.bf16.mxu0 0
      %709 = vmatmul.mubr.bf16.gmra.mrb[0].mxu0 %v611
      %v710 = vpop.f32.mrb[0].mxu0
      %v711 = vadd.f32 0.0, %v710
      %v712 = vpop.f32.mrb[0].mxu0
      %v713 = vpop.f32.mrb[0].mxu0
      %v714 = vpop.f32.mrb[0].mxu0
      %715 = vdwg.mxu0
      %v716 = vadd.f32 %v606, %v711
      %v717 = vmax.f32 %v716, 0.0
      %v718 = vpack.c.bf16 %v717, %v717
      %v719 = vld [vmem:[%s6] sm:$0xf]
      %v720 = vld [vmem:[%s6 + $0x4] sm:$0xf]
      %v721 = vld [vmem:[%s6 + $0x8] sm:$0xf]
      %v722 = vld [vmem:[%s6 + $0xc] sm:$0xf]
      %v723 = vld [vmem:[%s6 + $0x10] sm:$0xf]
      %v724 = vld [vmem:[%s6 + $0x14] sm:$0xf]
      %v725 = vld [vmem:[%s6 + $0x18] sm:$0xf]
      %v726 = vld [vmem:[%s6 + $0x1c] sm:$0xf]
      %v727 = vld [vmem:[%s6 + $0x20] sm:$0xf]
      %v728 = vld [vmem:[%s6 + $0x24] sm:$0xf]
      %v729 = vld [vmem:[%s6 + $0x28] sm:$0xf]
      %v730 = vld [vmem:[%s6 + $0x2c] sm:$0xf]
      %v731 = vld [vmem:[%s6 + $0x30] sm:$0xf]
      %v732 = vld [vmem:[%s6 + $0x34] sm:$0xf]
      %v733 = vld [vmem:[%s6 + $0x38] sm:$0xf]
      %v734 = vld [vmem:[%s6 + $0x3c] sm:$0xf]
      %v735 = vld [vmem:[%s7] sm:$0x1]
      %v737 = vlaneseq
      %v738 = vshrl.u32 %v737, 7
      %v739 = vsub.s32 0, %v738
      %v740 = vrot.slane %v735, %v739
      %v758 = vunpack.c.l.b16 %v719
      %v759 = vunpack.c.l.b16 %v720
      %v760 = vunpack.c.l.b16 %v721
      %v761 = vunpack.c.l.b16 %v722
      %v762 = vunpack.c.l.b16 %v723
      %v763 = vunpack.c.l.b16 %v724
      %v764 = vunpack.c.l.b16 %v725
      %v765 = vunpack.c.l.b16 %v726
      %v766 = vunpack.c.l.b16 %v727
      %v767 = vunpack.c.l.b16 %v728
      %v768 = vunpack.c.l.b16 %v729
      %v769 = vunpack.c.l.b16 %v730
      %v770 = vunpack.c.l.b16 %v731
      %v771 = vunpack.c.l.b16 %v732
      %v772 = vunpack.c.l.b16 %v733
      %v773 = vunpack.c.l.b16 %v734
      %v774 = vpack.c.b16 %v759, %v758
      %v775 = vpack.c.b16 %v761, %v760
      %v776 = vpack.c.b16 %v763, %v762
      %v777 = vpack.c.b16 %v765, %v764
      %v778 = vpack.c.b16 %v767, %v766
      %v779 = vpack.c.b16 %v769, %v768
      %v780 = vpack.c.b16 %v771, %v770
      %v781 = vpack.c.b16 %v773, %v772
      %790 = vmatprep.subr.bf16.mxu0 0
      %791 = vmatpush1.bf16.msra.mxu0 %v774
      %792 = vmatprep.subr.bf16.mxu0 0
      %793 = vmatpush1.bf16.msra.mxu0 %v775
      %794 = vmatprep.subr.bf16.mxu0 0
      %795 = vmatpush1.bf16.msra.mxu0 %v776
      %796 = vmatprep.subr.bf16.mxu0 0
      %797 = vmatpush1.bf16.msra.mxu0 %v777
      %798 = vmatprep.subr.bf16.mxu0 0
      %799 = vmatpush1.bf16.msra.mxu0 %v778
      %800 = vmatprep.subr.bf16.mxu0 0
      %801 = vmatpush1.bf16.msra.mxu0 %v779
      %802 = vmatprep.subr.bf16.mxu0 0
      %803 = vmatpush1.bf16.msra.mxu0 %v780
      %804 = vmatprep.subr.bf16.mxu0 0
      %805 = vmatpush1.bf16.msra.mxu0 %v781
      %806 = vmatprep.subr.bf16.mxu0 0
      %807 = vmatpush1.bf16.msra.mxu0 0
      %808 = vmatprep.subr.bf16.mxu0 0
      %809 = vmatpush1.bf16.msra.mxu0 0
      %810 = vmatprep.subr.bf16.mxu0 0
      %811 = vmatpush1.bf16.msra.mxu0 0
      %812 = vmatprep.subr.bf16.mxu0 0
      %813 = vmatpush1.bf16.msra.mxu0 0
      %814 = vmatprep.subr.bf16.mxu0 0
      %815 = vmatpush1.bf16.msra.mxu0 0
      %816 = vmatprep.subr.bf16.mxu0 0
      %817 = vmatpush1.bf16.msra.mxu0 0
      %818 = vmatprep.subr.bf16.mxu0 0
      %819 = vmatpush1.bf16.msra.mxu0 0
      %820 = vmatprep.subr.bf16.mxu0 0
      %821 = vmatpush1.bf16.msra.mxu0 0
      %822 = vmatprep.mubr.bf16.mxu0 0
      %823 = vmatmul.mubr.bf16.gmra.mrb[0].mxu0 %v718
      %v824 = vpop.f32.mrb[0].mxu0
      %v825 = vadd.f32 %v740, %v824
      %v826 = vpop.f32.mrb[0].mxu0
      %v827 = vpop.f32.mrb[0].mxu0
      %v828 = vpop.f32.mrb[0].mxu0
      %829 = vdwg.mxu0
      %v830 = vlaneseq
      %v831 = vand.u32 %v830, 127
      %vm832 = vcmp.lt.s32.totalorder %v831, 4
      %v833 = vsel %vm832, %v825, -1e+30
      %834 = vmax.xlane.f32.xlu0 %v833
      %v835 = vpop.xlane.xlu0 %834
      %v836 = vsub.f32 %v833, %v835
      %v837 = vmul.f32 %v836, 1.442695
      %v838 = vpow.pop %v837
      %v839 = vsel %vm832, %v838, 0.0
      %840 = vadd.xlane.f32.xlu0 %v839
      %v841 = vpop.xlane.xlu0 %840
      %v842 = vrcp.pop %v841
      %v843 = vmul.f32 %v839, %v842
      %v844 = vsel %vm832, %v843, %v825
      %845 = vst [vmem:[%s331] sm:$0xff] %v844
      %p846 = scmp.lt.s32.totalorder %s19, 1
      %s847 = scalar_select %p846, %s19, 1
      %s848 = smul.addr %s847, 8
      %s849 = scalar_lea.vmem %s8, %s848
      // Predicated region
      $region53: #{faster_rcnn_forward.11} parent=51 // pred_check
        %p850 = pneg %p220
      $region54: #{faster_rcnn_forward.11} parent=51 // pred_check_branch
        %852 = sbr.rel (%p850) target = $region56
      $region55: #{faster_rcnn_forward.11} parent=51 // pred_region
        _
      $region56: #{faster_rcnn_forward.11} parent=51 // pred_fallthru
        _
    $region52: #{faster_rcnn_forward.11} parent=5 // pred_fallthru
      _
    %p853 = scmp.le.s32.totalorder 2, %s14
    // Predicated region
    $region57: #{faster_rcnn_forward.11} parent=5 // pred_check
      %p854 = pneg %p853
    $region58: #{faster_rcnn_forward.11} parent=5 // pred_check_branch
      %856 = sbr.rel (%p854) target = $region60
    $region59: #{faster_rcnn_forward.11} parent=5 // pred_region
      %s857 = ssub.s32 %s14, 2
      // Predicated region
      $region61: #{faster_rcnn_forward.11} parent=59 // pred_check
        %p858 = pneg %p226
      $region62: #{faster_rcnn_forward.11} parent=59 // pred_check_branch
        %860 = sbr.rel (%p858) target = $region64
      $region63: #{faster_rcnn_forward.11} parent=59 // pred_region
        %p861 = scmp.lt.s32.totalorder %s20, 1
        %s862 = scalar_select %p861, %s20, 1
        %s863 = smul.addr %s862, 8
        %s864 = scalar_lea.vmem %s8, %s863
      $region64: #{faster_rcnn_forward.11} parent=59 // pred_fallthru
        _
    $region60: #{faster_rcnn_forward.11} parent=5 // pred_fallthru
      _
  $region6: #{faster_rcnn_forward.11} parent=0 // loop_footer
    %s18 = sadd.s32 1, %s14
  $region7: #{faster_rcnn_forward.11} parent=0 // loop_footer_branch
    %13 = sbr.rel target = $region3
  $region8: #{faster_rcnn_forward.11} parent=0 // loop_exit
    _

</llo_original>
